<compile_context>
chip_gen: v7x
topology: tpu7x:2x2x1
jax: 0.10.0
libtpu: 0.0.40
codegen_flags: <defaults>
</compile_context>

<pallas_src>
import math

import jax
import jax.numpy as jnp
from jax.experimental import pallas as pl
from jax.experimental.pallas import tpu as pltpu

_HIDDEN = (512, 1024, 1024)
_LANE = 128


def _round_up(n, m):
    return ((n + m - 1) // m) * m


def _mlp_kernel(x_ref,
                w1_ref, b1_ref,
                w2_ref, b2_ref,
                w3_ref, b3_ref,
                w4_ref, b4_ref,
                o_ref):
    """One batch tile through the 4-layer MLP (BN folded, all weights VMEM-resident)."""
    h = jnp.dot(x_ref[...], w1_ref[...],
                preferred_element_type=jnp.float32) + b1_ref[...]
    h = jnp.maximum(h, 0.0).astype(jnp.bfloat16)

    h = jnp.dot(h, w2_ref[...],
                preferred_element_type=jnp.float32) + b2_ref[...]
    h = jnp.maximum(h, 0.0).astype(jnp.bfloat16)

    h = jnp.dot(h, w3_ref[...],
                preferred_element_type=jnp.float32) + b3_ref[...]
    h = jnp.maximum(h, 0.0).astype(jnp.bfloat16)

    out = jnp.dot(h, w4_ref[...],
                  preferred_element_type=jnp.float32) + b4_ref[...]
    o_ref[...] = out.astype(o_ref.dtype)


def _mlp_kernel_prefetch(x_ref,
                         w1_ref, b1_ref,
                         w2_ref, b2_ref,
                         w3_hbm, b3_ref,
                         w4_hbm, b4_ref,
                         o_ref,
                         w3_vmem, w4_vmem, sem):
    """Single-tile (tiny batch) variant: w3/w4 DMA overlapped with layers 1-2."""
    cp3 = pltpu.make_async_copy(w3_hbm, w3_vmem, sem.at[0])
    cp4 = pltpu.make_async_copy(w4_hbm, w4_vmem, sem.at[1])
    cp3.start()
    cp4.start()

    h = jnp.dot(x_ref[...], w1_ref[...],
                preferred_element_type=jnp.float32) + b1_ref[...]
    h = jnp.maximum(h, 0.0).astype(jnp.bfloat16)

    h = jnp.dot(h, w2_ref[...],
                preferred_element_type=jnp.float32) + b2_ref[...]
    h = jnp.maximum(h, 0.0).astype(jnp.bfloat16)

    cp3.wait()
    h = jnp.dot(h, w3_vmem[...],
                preferred_element_type=jnp.float32) + b3_ref[...]
    h = jnp.maximum(h, 0.0).astype(jnp.bfloat16)

    cp4.wait()
    out = jnp.dot(h, w4_vmem[...],
                  preferred_element_type=jnp.float32) + b4_ref[...]
    o_ref[...] = out.astype(o_ref.dtype)


def _tile_config():
    """(max rows per batch tile, scoped VMEM limit) per TPU generation."""
    kind = ""
    try:
        kind = jax.devices()[0].device_kind.lower()
    except Exception:
        pass
    if ("v5" in kind) or ("v6" in kind):
        return 512, 64 << 20      # 128 MiB physical VMEM -> bigger tiles
    return 256, 32 << 20          # conservative default (v7x: 64 MiB physical)


def feedforward_isoform_medium(x, params, *, block_b=None):
    """x: (B, F_in) float32.  params: folded/padded params from make_params()."""
    B = x.shape[0]
    f_out = int(params["f_out"])
    f_in_pad = params["w1"].shape[0]
    f_out_pad = params["w4"].shape[1]

    max_block_b, vmem_limit = _tile_config()

    # bf16 x, zero-padded to the lane-dense input width matching padded w1.
    x = x.astype(jnp.bfloat16)
    if x.shape[1] != f_in_pad:
        x = jnp.pad(x, ((0, 0), (0, f_in_pad - x.shape[1])))

    if block_b is None:
        # Split B as evenly as possible into tiles of <= max_block_b rows:
        # padding never overshoots (at most a few rows per tile).
        n_tiles = max(1, pl.cdiv(B, max_block_b))
        block_b = _round_up(pl.cdiv(B, n_tiles), 8)
    else:
        block_b = _round_up(block_b, 8)

    grid_b = pl.cdiv(B, block_b)
    b_pad = grid_b * block_b
    if b_pad != B:
        x = jnp.pad(x, ((0, b_pad - B), (0, 0)))

    def batch_map(i):
        return (i, 0)

    def const_map(i):                            # weights stay VMEM-resident
        return (0, 0)

    def const_spec(shape):
        # Constant-index operands don't need a second pipeline buffer.
        if hasattr(pl, "Buffered"):
            try:
                return pl.BlockSpec(shape, const_map, pipeline_mode=pl.Buffered(1))
            except TypeError:
                pass
        return pl.BlockSpec(shape, const_map)

    names = ("w1", "b1", "w2", "b2", "w3", "b3", "w4", "b4")
    operands = (x,) + tuple(params[n] for n in names)
    x_spec = pl.BlockSpec((block_b, f_in_pad), batch_map)
    out_spec = pl.BlockSpec((block_b, f_out_pad), batch_map)
    out_shape = jax.ShapeDtypeStruct((b_pad, f_out_pad), jnp.float32)

    # TODO(synk): per-generation weight quantization (fp8 on v7x, int8 on v6e)
    # with per-channel dequant scales would halve the weight DMA; kept bf16
    # here to stay close to the f32 torch parameterization.

    if grid_b == 1:
        # Tiny-batch / latency-bound case: overlap the w3/w4 HBM->VMEM DMA
        # (~2.25 MiB) with the layer-1/2 matmuls via manual async copies.
        in_specs = [x_spec]
        for n in names:
            if n in ("w3", "w4"):
                in_specs.append(pl.BlockSpec(memory_space=pl.ANY))
            else:
                in_specs.append(const_spec(params[n].shape))
        out_pad = pl.pallas_call(
            _mlp_kernel_prefetch,
            out_shape=out_shape,
            grid=(1,),
            in_specs=in_specs,
            out_specs=out_spec,
            scratch_shapes=[
                pltpu.VMEM(params["w3"].shape, params["w3"].dtype),
                pltpu.VMEM(params["w4"].shape, params["w4"].dtype),
                pltpu.SemaphoreType.DMA((2,)),
            ],
            compiler_params=pltpu.CompilerParams(
                dimension_semantics=("arbitrary",),
                vmem_limit_bytes=vmem_limit,
            ),
        )(*operands)
    else:
        in_specs = [x_spec] + [const_spec(params[n].shape) for n in names]
        out_pad = pl.pallas_call(
            _mlp_kernel,
            out_shape=out_shape,
            grid=(grid_b,),
            in_specs=in_specs,
            out_specs=out_spec,
            compiler_params=pltpu.CompilerParams(
                dimension_semantics=("parallel",),   # batch tiles across TCs (v7x)
                vmem_limit_bytes=vmem_limit,
            ),
        )(*operands)

    return out_pad[:B, :f_out]


def make_params(key, f_in, f_out, eps=1e-5):
    """Deterministic params mirroring the torch module: xavier_uniform_ weights,
    torch-default uniform biases, eval-mode BN folded into the following Linear,
    lane-dense padding of F_in / F_out, weights quantized to bf16 (biases f32)."""
    ks = jax.random.split(key, 8)
    dims = [(f_in, 512), (512, 1024), (1024, 1024), (1024, f_out)]

    ws, bs = [], []
    for i, (di, do) in enumerate(dims):
        bound = math.sqrt(6.0 / (di + do))               # xavier_uniform_
        ws.append(jax.random.uniform(ks[2 * i], (di, do), jnp.float32,
                                     -bound, bound))
        bb = 1.0 / math.sqrt(di)                          # torch Linear bias default
        bs.append(jax.random.uniform(ks[2 * i + 1], (do,), jnp.float32, -bb, bb))

    # BatchNorm1d defaults: gamma=1, beta=0, running_mean=0, running_var=1.
    # Eval-mode BN after block i is y = r*s + t; fold exactly into layer i+1:
    #   (r*s + t) @ W + b == r @ (diag(s) @ W) + (t @ W + b)
    for i, h in enumerate(_HIDDEN):
        gamma = jnp.ones((h,), jnp.float32)
        beta = jnp.zeros((h,), jnp.float32)
        rmean = jnp.zeros((h,), jnp.float32)
        rvar = jnp.ones((h,), jnp.float32)
        s = gamma / jnp.sqrt(rvar + eps)
        t = beta - rmean * s
        bs[i + 1] = bs[i + 1] + t @ ws[i + 1]            # use original W for t-term
        ws[i + 1] = ws[i + 1] * s[:, None]

    # Lane-dense input: pad F_in to a multiple of 128 with zero rows of w1
    # (x columns are zero-padded to match in the wrapper -> no effect on math).
    f_in_pad = max(_LANE, _round_up(f_in, _LANE))
    if f_in_pad != f_in:
        ws[0] = jnp.pad(ws[0], ((0, f_in_pad - f_in), (0, 0)))

    # Lane-dense head: pad F_out to a multiple of 128 (zeros -> sliced off).
    f_out_pad = max(_LANE, _round_up(f_out, _LANE))
    if f_out_pad != f_out:
        ws[3] = jnp.pad(ws[3], ((0, 0), (0, f_out_pad - f_out)))
        bs[3] = jnp.pad(bs[3], ((0, f_out_pad - f_out),))

    params = {"f_out": f_out}
    for i in range(4):
        params[f"w{i + 1}"] = ws[i].astype(jnp.bfloat16)
        params[f"b{i + 1}"] = bs[i].reshape(1, -1).astype(jnp.float32)
    return params


def reference_forward(x, params):
    """Pure-JAX reference mirroring the kernel math (bf16 matmul inputs,
    f32 accumulation, bf16 downcast at each ReLU, folded BN, padded F_in/F_out)."""
    f_in_pad = params["w1"].shape[0]
    h = x.astype(jnp.bfloat16)
    if h.shape[1] != f_in_pad:
        h = jnp.pad(h, ((0, 0), (0, f_in_pad - h.shape[1])))
    for i in (1, 2, 3):
        h = jnp.dot(h, params[f"w{i}"],
                    preferred_element_type=jnp.float32) + params[f"b{i}"]
        h = jnp.maximum(h, 0.0).astype(jnp.bfloat16)
    out = jnp.dot(h, params["w4"],
                  preferred_element_type=jnp.float32) + params["b4"]
    return out[:, :int(params["f_out"])]


if __name__ == "__main__":
    # Shapes consistent with the module:
    #   input_shape = (4, 16) -> F_in = 64;  output_shape = (32,) -> F_out = 32
    key = jax.random.PRNGKey(0)
    k_x, k_p, k_x2 = jax.random.split(key, 3)

    B, input_shape, output_shape = 8, (4, 16), (32,)
    f_in = math.prod(input_shape)
    f_out = math.prod(output_shape)

    params = make_params(k_p, f_in, f_out)

    # Case 1: tiny batch -> single-tile path with manual w3/w4 prefetch.
    x_nd = jax.random.normal(k_x, (B,) + input_shape, jnp.float32)
    x = x_nd.reshape(B, -1)                      # == torch x.view(x.size(0), -1)
    out = jax.block_until_ready(feedforward_isoform_medium(x, params))
    ref = reference_forward(x, params)
    assert out.shape == (B, f_out), out.shape
    assert jnp.allclose(out, ref, atol=5e-2, rtol=1e-2), "mismatch vs reference (tiny batch)"

    # Case 2: multi-tile path (grid > 1, even batch split, parallel batch axis).
    B2 = 272
    x2 = jax.random.normal(k_x2, (B2, f_in), jnp.float32)
    out2 = jax.block_until_ready(
        feedforward_isoform_medium(x2, params, block_b=136))
    ref2 = reference_forward(x2, params)
    assert out2.shape == (B2, f_out), out2.shape
    assert jnp.allclose(out2, ref2, atol=5e-2, rtol=1e-2), "mismatch vs reference (tiled)"

    # TODO(synk): training-mode Dropout / batch-statistics BatchNorm are
    # intentionally not implemented (eval-mode semantics only).
    print("KERNEL_OK")
</pallas_src>

<mosaic_0001>
module attributes {stable_mosaic.version = 11 : i64} {
  func.func @_mlp_kernel_prefetch(%arg0: i32, %arg1: memref<8x128xbf16, #tpu.memory_space<vmem>>, %arg2: memref<128x512xbf16, #tpu.memory_space<vmem>>, %arg3: memref<1x512xf32, #tpu.memory_space<vmem>>, %arg4: memref<512x1024xbf16, #tpu.memory_space<vmem>>, %arg5: memref<1x1024xf32, #tpu.memory_space<vmem>>, %arg6: memref<1024x1024xbf16, #tpu.memory_space<any>>, %arg7: memref<1x1024xf32, #tpu.memory_space<vmem>>, %arg8: memref<1024x128xbf16, #tpu.memory_space<any>>, %arg9: memref<1x128xf32, #tpu.memory_space<vmem>>, %arg10: memref<8x128xf32, #tpu.memory_space<vmem>>, %arg11: memref<1024x1024xbf16, #tpu.memory_space<vmem>>, %arg12: memref<1024x128xbf16, #tpu.memory_space<vmem>>, %arg13: memref<2x!tpu.dma_semaphore, #tpu.memory_space<semaphore_mem>>) attributes {dimension_semantics = [#tpu.dimension_semantics<arbitrary>], iteration_bounds = array<i64: 1>, scalar_prefetch = 0 : i64, scratch_operands = 3 : i64, tpu.core_type = #tpu.core_type<tc>, window_params = [{transform_indices = @transform_0, window_bounds = array<i64: 8, 128>}, {pipeline_mode = #tpu.pipeline_mode<synchronous>, transform_indices = @transform_1, window_bounds = array<i64: 128, 512>}, {pipeline_mode = #tpu.pipeline_mode<synchronous>, transform_indices = @transform_2, window_bounds = array<i64: 1, 512>}, {pipeline_mode = #tpu.pipeline_mode<synchronous>, transform_indices = @transform_3, window_bounds = array<i64: 512, 1024>}, {pipeline_mode = #tpu.pipeline_mode<synchronous>, transform_indices = @transform_4, window_bounds = array<i64: 1, 1024>}, {}, {pipeline_mode = #tpu.pipeline_mode<synchronous>, transform_indices = @transform_6, window_bounds = array<i64: 1, 1024>}, {}, {pipeline_mode = #tpu.pipeline_mode<synchronous>, transform_indices = @transform_8, window_bounds = array<i64: 1, 128>}, {transform_indices = @transform_9, window_bounds = array<i64: 8, 128>}]} {
    %c0_i32 = arith.constant 0 : i32
    %0 = tpu.memref_slice %arg13[%c0_i32] : memref<2x!tpu.dma_semaphore, #tpu.memory_space<semaphore_mem>> -> memref<1x!tpu.dma_semaphore, #tpu.memory_space<semaphore_mem>>
    %1 = tpu.memref_squeeze %0 : memref<1x!tpu.dma_semaphore, #tpu.memory_space<semaphore_mem>> -> memref<!tpu.dma_semaphore, #tpu.memory_space<semaphore_mem>>
    tpu.enqueue_dma source(%arg6 : memref<1024x1024xbf16, #tpu.memory_space<any>>) target(%arg11 : memref<1024x1024xbf16, #tpu.memory_space<vmem>>) target_semaphore(%1 : memref<!tpu.dma_semaphore, #tpu.memory_space<semaphore_mem>>)
    %c1_i32 = arith.constant 1 : i32
    %2 = tpu.memref_slice %arg13[%c1_i32] : memref<2x!tpu.dma_semaphore, #tpu.memory_space<semaphore_mem>> -> memref<1x!tpu.dma_semaphore, #tpu.memory_space<semaphore_mem>>
    %3 = tpu.memref_squeeze %2 : memref<1x!tpu.dma_semaphore, #tpu.memory_space<semaphore_mem>> -> memref<!tpu.dma_semaphore, #tpu.memory_space<semaphore_mem>>
    tpu.enqueue_dma source(%arg8 : memref<1024x128xbf16, #tpu.memory_space<any>>) target(%arg12 : memref<1024x128xbf16, #tpu.memory_space<vmem>>) target_semaphore(%3 : memref<!tpu.dma_semaphore, #tpu.memory_space<semaphore_mem>>)
    %c0 = arith.constant 0 : index
    %c0_0 = arith.constant 0 : index
    %4 = vector.load %arg1[%c0, %c0_0] : memref<8x128xbf16, #tpu.memory_space<vmem>>, vector<8x128xbf16>
    %c0_1 = arith.constant 0 : index
    %c0_2 = arith.constant 0 : index
    %5 = vector.load %arg2[%c0_1, %c0_2] : memref<128x512xbf16, #tpu.memory_space<vmem>>, vector<128x512xbf16>
    %cst = arith.constant dense<0.000000e+00> : vector<8x512xf32>
    %6 = tpu.matmul %4, %5, %cst {dimension_numbers = #tpu.dot_dimension_numbers<[1], [0], [0], [1], [0, 0, 1, 1], [], []>} : vector<8x128xbf16>, vector<128x512xbf16>, vector<8x512xf32> -> vector<8x512xf32>
    %c0_3 = arith.constant 0 : index
    %c0_4 = arith.constant 0 : index
    %7 = vector.load %arg3[%c0_3, %c0_4] : memref<1x512xf32, #tpu.memory_space<vmem>>, vector<1x512xf32>
    %8 = vector.broadcast %7 : vector<1x512xf32> to vector<8x512xf32>
    %9 = arith.addf %6, %8 : vector<8x512xf32>
    %cst_5 = arith.constant 0.000000e+00 : f32
    %10 = vector.broadcast %cst_5 : f32 to vector<8x512xf32>
    %11 = arith.maximumf %9, %10 : vector<8x512xf32>
    %12 = arith.truncf %11 : vector<8x512xf32> to vector<8x512xbf16>
    %c0_6 = arith.constant 0 : index
    %c0_7 = arith.constant 0 : index
    %13 = vector.load %arg4[%c0_6, %c0_7] : memref<512x1024xbf16, #tpu.memory_space<vmem>>, vector<512x1024xbf16>
    %cst_8 = arith.constant dense<0.000000e+00> : vector<8x1024xf32>
    %14 = tpu.matmul %12, %13, %cst_8 {dimension_numbers = #tpu.dot_dimension_numbers<[1], [0], [0], [1], [0, 0, 1, 1], [], []>} : vector<8x512xbf16>, vector<512x1024xbf16>, vector<8x1024xf32> -> vector<8x1024xf32>
    %c0_9 = arith.constant 0 : index
    %c0_10 = arith.constant 0 : index
    %15 = vector.load %arg5[%c0_9, %c0_10] : memref<1x1024xf32, #tpu.memory_space<vmem>>, vector<1x1024xf32>
    %16 = vector.broadcast %15 : vector<1x1024xf32> to vector<8x1024xf32>
    %17 = arith.addf %14, %16 : vector<8x1024xf32>
    %cst_11 = arith.constant 0.000000e+00 : f32
    %18 = vector.broadcast %cst_11 : f32 to vector<8x1024xf32>
    %19 = arith.maximumf %17, %18 : vector<8x1024xf32>
    %20 = arith.truncf %19 : vector<8x1024xf32> to vector<8x1024xbf16>
    %c0_i32_12 = arith.constant 0 : i32
    %21 = tpu.memref_slice %arg13[%c0_i32_12] : memref<2x!tpu.dma_semaphore, #tpu.memory_space<semaphore_mem>> -> memref<1x!tpu.dma_semaphore, #tpu.memory_space<semaphore_mem>>
    %22 = tpu.memref_squeeze %21 : memref<1x!tpu.dma_semaphore, #tpu.memory_space<semaphore_mem>> -> memref<!tpu.dma_semaphore, #tpu.memory_space<semaphore_mem>>
    tpu.wait_dma2 semaphore(%22 : memref<!tpu.dma_semaphore, #tpu.memory_space<semaphore_mem>>) src(%arg6 : memref<1024x1024xbf16, #tpu.memory_space<any>>) dst(%arg11 : memref<1024x1024xbf16, #tpu.memory_space<vmem>>)
    %c0_13 = arith.constant 0 : index
    %c0_14 = arith.constant 0 : index
    %23 = vector.load %arg11[%c0_13, %c0_14] : memref<1024x1024xbf16, #tpu.memory_space<vmem>>, vector<1024x1024xbf16>
    %cst_15 = arith.constant dense<0.000000e+00> : vector<8x1024xf32>
    %24 = tpu.matmul %20, %23, %cst_15 {dimension_numbers = #tpu.dot_dimension_numbers<[1], [0], [0], [1], [0, 0, 1, 1], [], []>} : vector<8x1024xbf16>, vector<1024x1024xbf16>, vector<8x1024xf32> -> vector<8x1024xf32>
    %c0_16 = arith.constant 0 : index
    %c0_17 = arith.constant 0 : index
    %25 = vector.load %arg7[%c0_16, %c0_17] : memref<1x1024xf32, #tpu.memory_space<vmem>>, vector<1x1024xf32>
    %26 = vector.broadcast %25 : vector<1x1024xf32> to vector<8x1024xf32>
    %27 = arith.addf %24, %26 : vector<8x1024xf32>
    %cst_18 = arith.constant 0.000000e+00 : f32
    %28 = vector.broadcast %cst_18 : f32 to vector<8x1024xf32>
    %29 = arith.maximumf %27, %28 : vector<8x1024xf32>
    %30 = arith.truncf %29 : vector<8x1024xf32> to vector<8x1024xbf16>
    %c1_i32_19 = arith.constant 1 : i32
    %31 = tpu.memref_slice %arg13[%c1_i32_19] : memref<2x!tpu.dma_semaphore, #tpu.memory_space<semaphore_mem>> -> memref<1x!tpu.dma_semaphore, #tpu.memory_space<semaphore_mem>>
    %32 = tpu.memref_squeeze %31 : memref<1x!tpu.dma_semaphore, #tpu.memory_space<semaphore_mem>> -> memref<!tpu.dma_semaphore, #tpu.memory_space<semaphore_mem>>
    tpu.wait_dma2 semaphore(%32 : memref<!tpu.dma_semaphore, #tpu.memory_space<semaphore_mem>>) src(%arg8 : memref<1024x128xbf16, #tpu.memory_space<any>>) dst(%arg12 : memref<1024x128xbf16, #tpu.memory_space<vmem>>)
    %c0_20 = arith.constant 0 : index
    %c0_21 = arith.constant 0 : index
    %33 = vector.load %arg12[%c0_20, %c0_21] : memref<1024x128xbf16, #tpu.memory_space<vmem>>, vector<1024x128xbf16>
    %cst_22 = arith.constant dense<0.000000e+00> : vector<8x128xf32>
    %34 = tpu.matmul %30, %33, %cst_22 {dimension_numbers = #tpu.dot_dimension_numbers<[1], [0], [0], [1], [0, 0, 1, 1], [], []>} : vector<8x1024xbf16>, vector<1024x128xbf16>, vector<8x128xf32> -> vector<8x128xf32>
    %c0_23 = arith.constant 0 : index
    %c0_24 = arith.constant 0 : index
    %35 = vector.load %arg9[%c0_23, %c0_24] : memref<1x128xf32, #tpu.memory_space<vmem>>, vector<1x128xf32>
    %36 = vector.broadcast %35 : vector<1x128xf32> to vector<8x128xf32>
    %37 = arith.addf %34, %36 : vector<8x128xf32>
    %c0_25 = arith.constant 0 : index
    %c0_26 = arith.constant 0 : index
    %38 = vector.load %arg10[%c0_25, %c0_26] : memref<8x128xf32, #tpu.memory_space<vmem>>, vector<8x128xf32>
    tpu.vector_store %arg10[%c0_25, %c0_26], %37 {strides = array<i32>} : memref<8x128xf32, #tpu.memory_space<vmem>>, vector<8x128xf32>,
    return
  }
  func.func @transform_0(%arg0: i32) -> (i32, i32) {
    %c0_i32 = arith.constant 0 : i32
    %c0_i32_0 = arith.constant 0 : i32
    return %arg0, %c0_i32 : i32, i32
  }
  func.func @transform_1(%arg0: i32) -> (i32, i32) {
    %c0_i32 = arith.constant 0 : i32
    %c0_i32_0 = arith.constant 0 : i32
    %c0_i32_1 = arith.constant 0 : i32
    return %c0_i32, %c0_i32_0 : i32, i32
  }
  func.func @transform_2(%arg0: i32) -> (i32, i32) {
    %c0_i32 = arith.constant 0 : i32
    %c0_i32_0 = arith.constant 0 : i32
    %c0_i32_1 = arith.constant 0 : i32
    return %c0_i32, %c0_i32_0 : i32, i32
  }
  func.func @transform_3(%arg0: i32) -> (i32, i32) {
    %c0_i32 = arith.constant 0 : i32
    %c0_i32_0 = arith.constant 0 : i32
    %c0_i32_1 = arith.constant 0 : i32
    return %c0_i32, %c0_i32_0 : i32, i32
  }
  func.func @transform_4(%arg0: i32) -> (i32, i32) {
    %c0_i32 = arith.constant 0 : i32
    %c0_i32_0 = arith.constant 0 : i32
    %c0_i32_1 = arith.constant 0 : i32
    return %c0_i32, %c0_i32_0 : i32, i32
  }
  func.func @transform_6(%arg0: i32) -> (i32, i32) {
    %c0_i32 = arith.constant 0 : i32
    %c0_i32_0 = arith.constant 0 : i32
    %c0_i32_1 = arith.constant 0 : i32
    return %c0_i32, %c0_i32_0 : i32, i32
  }
  func.func @transform_8(%arg0: i32) -> (i32, i32) {
    %c0_i32 = arith.constant 0 : i32
    %c0_i32_0 = arith.constant 0 : i32
    %c0_i32_1 = arith.constant 0 : i32
    return %c0_i32, %c0_i32_0 : i32, i32
  }
  func.func @transform_9(%arg0: i32) -> (i32, i32) {
    %c0_i32 = arith.constant 0 : i32
    %c0_i32_0 = arith.constant 0 : i32
    return %arg0, %c0_i32 : i32, i32
  }
}

</mosaic_0001>

<llo_original>
// kernel: tpu_custom_call.1
$region0: #{tpu_custom_call.1}
  #allocation0 [shape = 'u32[]', space=smem, size = 0x4, offset = 0x4, fixed_abs, tag = 'smem constant byte address 0x4 - core index']
  #allocation1 [shape = 'u32[144,128]{1,0:T(1,128)}', space=vmem, size = 0x12000, scoped, tag = 'internal scratch']
  #allocation2 [shape = 'bf16[1024,1024]{1,0:T(16,128)(2,1)}', space=vmem, size = 0x200000, scoped, tag = 'scratch operand']
  #allocation3 [shape = 'bf16[1024,128]{1,0:T(16,128)(2,1)}', space=vmem, size = 0x40000, scoped, tag = 'scratch operand']
  #allocation4 [shape = 's32[2]{0}', space=sflag, size = 0x8, scoped, tag = 'scratch operand']
  #allocation18 [shape = 's32[]', space=sflag, size = 0x4, offset = 0, fixed_abs, tag = 'sflag constant byte address 0x0 - dummy sync flag']
  #allocation20 [shape = 's32[]', space=sflag, size = 0x4, offset = 0, fixed_abs, tag = 'sflag constant byte address 0x0 - dummy sync flag']
  #allocation21 [shape = 's32[]', space=sflag, size = 0x4, offset = 0, fixed_abs, tag = 'sflag constant byte address 0x0 - dummy sync flag']
  #allocation22 [shape = 'u32[]', space=smem, size = 0x4, offset = 0x44, fixed_abs, tag = 'smem constant byte address 0x44 - assertion arg 0']
  #allocation23 [shape = 'u32[]', space=smem, size = 0x4, offset = 0x48, fixed_abs, tag = 'smem constant byte address 0x48 - assertion arg 1']
  %s0 = inlined_call_operand.hbm [shape: bf16[8,128], index: 0, kind: input, shape index: {}]
  %s1 = inlined_call_operand.hbm [shape: bf16[128,512], index: 1, kind: input, shape index: {}]
  %s2 = inlined_call_operand.hbm [shape: f32[1,512], index: 2, kind: input, shape index: {}]
  %s3 = inlined_call_operand.hbm [shape: bf16[512,1024], index: 3, kind: input, shape index: {}]
  %s4 = inlined_call_operand.hbm [shape: f32[1,1024], index: 4, kind: input, shape index: {}]
  %s5 = inlined_call_operand.hbm [shape: bf16[1024,1024], index: 5, kind: input, shape index: {}]
  %s6 = inlined_call_operand.hbm [shape: f32[1,1024], index: 6, kind: input, shape index: {}]
  %s7 = inlined_call_operand.hbm [shape: bf16[1024,128], index: 7, kind: input, shape index: {}]
  %s8 = inlined_call_operand.hbm [shape: f32[1,128], index: 8, kind: input, shape index: {}]
  %s9 = inlined_call_operand.hbm [shape: f32[8,128], index: 9, kind: output, shape index: {}]
  %s10 = sld [smem:[#allocation0]]
  $region70: #{tpu_custom_call.1} parent=0
    _
  %s12 = ssub.s32 1, %s10
  %s13 = scalar_select 0, %s12, %s10
  $region1: #{tpu_custom_call.1} parent=0
    #allocation5 [shape = 'u8[2048]{0}', space=vmem, size = 0x800, scoped, tag = 'input window, operand 0, single buffered']
    #allocation6 [shape = 's32[1]{0}', space=sflag, size = 0x4, scoped, tag = 'scoped memory for tpu_custom_call.1']
    #allocation7 [shape = 's32[1]{0}', space=sflag, size = 0x4, scoped, tag = 'scoped memory for tpu_custom_call.1']
    #allocation8 [shape = 'u8[131072]{0}', space=vmem, size = 0x20000, scoped, tag = 'input window, operand 1, single buffered']
    #allocation9 [shape = 's32[1]{0}', space=sflag, size = 0x4, scoped, tag = 'scoped memory for tpu_custom_call.1']
    #allocation10 [shape = 'u8[2048]{0}', space=vmem, size = 0x800, scoped, tag = 'input window, operand 2, single buffered']
    #allocation11 [shape = 'u8[1048576]{0}', space=vmem, size = 0x100000, scoped, tag = 'input window, operand 3, single buffered']
    #allocation12 [shape = 's32[1]{0}', space=sflag, size = 0x4, scoped, tag = 'scoped memory for tpu_custom_call.1']
    #allocation13 [shape = 'u8[4096]{0}', space=vmem, size = 0x1000, scoped, tag = 'input window, operand 4, single buffered']
    #allocation14 [shape = 'u8[4096]{0}', space=vmem, size = 0x1000, scoped, tag = 'input window, operand 6, single buffered']
    #allocation15 [shape = 's32[1]{0}', space=sflag, size = 0x4, scoped, tag = 'scoped memory for tpu_custom_call.1']
    #allocation16 [shape = 'u8[512]{0}', space=vmem, size = 0x400, scoped, tag = 'input window, operand 8, single buffered']
    #allocation17 [shape = 'u8[4096]{0}', space=vmem, size = 0x1000, scoped, tag = 'output window, operand 0, single buffered']
    #allocation19 [shape = 'u32[9]{0}', space=smem, size = 0x24, scoped, tag = 'DMA stride descriptor']
    %14 = vsyncpa [#allocation6], 0
    %15 = vsyncpa [#allocation9], 0
    %16 = vsyncpa [#allocation12], 0
    %17 = vsyncpa [#allocation15], 0
    %18 = vsyncpa [#allocation7], 0
    // Predicated region
    $region2: #{tpu_custom_call.1} parent=1 // pred_check
      _
    $region3: #{tpu_custom_call.1} parent=1 // pred_check_branch
      %20 = sbr.rel (0) target = $region5
    $region4: #{tpu_custom_call.1} parent=1 // pred_region
      %s22 = ssub.s32 64, 64
      %23 = vsyncadd [#allocation6], %s22
      %s25 = sshll.u32 [#allocation5], 4
      %s26 = int_to_ptr.vmem [resolvable:$true] %s25
      %28 = dma.hbm_to_vmem [thread:$0]  %s0, 64, %s26, [#allocation6]
    $region5: #{tpu_custom_call.1} parent=1 // pred_fallthru
      _
    // Predicated region
    $region6: #{tpu_custom_call.1} parent=1 // pred_check
      _
    $region7: #{tpu_custom_call.1} parent=1 // pred_check_branch
      %30 = sbr.rel (0) target = $region9
    $region8: #{tpu_custom_call.1} parent=1 // pred_region
      %s32 = ssub.s32 4096, 4096
      %33 = vsyncadd [#allocation9], %s32
      %s34 = sshll.u32 [#allocation8], 4
      %s35 = int_to_ptr.vmem [resolvable:$true] %s34
      %40 = dma.hbm_to_vmem [thread:$0]  %s1, 4096, %s35, [#allocation9], 256, 256, 16
    $region9: #{tpu_custom_call.1} parent=1 // pred_fallthru
      _
    // Predicated region
    $region10: #{tpu_custom_call.1} parent=1 // pred_check
      _
    $region11: #{tpu_custom_call.1} parent=1 // pred_check_branch
      %42 = sbr.rel (0) target = $region13
    $region12: #{tpu_custom_call.1} parent=1 // pred_region
      %s44 = ssub.s32 64, 64
      %45 = vsyncadd [#allocation9], %s44
      %s47 = sshll.u32 [#allocation10], 4
      %s48 = int_to_ptr.vmem [resolvable:$true] %s47
      %50 = dma.hbm_to_vmem [thread:$0]  %s2, 64, %s48, [#allocation9]
    $region13: #{tpu_custom_call.1} parent=1 // pred_fallthru
      _
    // Predicated region
    $region14: #{tpu_custom_call.1} parent=1 // pred_check
      _
    $region15: #{tpu_custom_call.1} parent=1 // pred_check_branch
      %52 = sbr.rel (0) target = $region17
    $region16: #{tpu_custom_call.1} parent=1 // pred_region
      %s54 = ssub.s32 32768, 32768
      %55 = vsyncadd [#allocation12], %s54
      %s56 = sshll.u32 [#allocation11], 4
      %s57 = int_to_ptr.vmem [resolvable:$true] %s56
      %62 = dma.hbm_to_vmem [thread:$0]  %s3, 32768, %s57, [#allocation12], 512, 512, 32
    $region17: #{tpu_custom_call.1} parent=1 // pred_fallthru
      _
    // Predicated region
    $region18: #{tpu_custom_call.1} parent=1 // pred_check
      _
    $region19: #{tpu_custom_call.1} parent=1 // pred_check_branch
      %64 = sbr.rel (0) target = $region21
    $region20: #{tpu_custom_call.1} parent=1 // pred_region
      %s66 = ssub.s32 128, 128
      %67 = vsyncadd [#allocation12], %s66
      %s69 = sshll.u32 [#allocation13], 4
      %s70 = int_to_ptr.vmem [resolvable:$true] %s69
      %72 = dma.hbm_to_vmem [thread:$0]  %s4, 128, %s70, [#allocation12]
    $region21: #{tpu_custom_call.1} parent=1 // pred_fallthru
      _
    // Predicated region
    $region22: #{tpu_custom_call.1} parent=1 // pred_check
      _
    $region23: #{tpu_custom_call.1} parent=1 // pred_check_branch
      %74 = sbr.rel (0) target = $region25
    $region24: #{tpu_custom_call.1} parent=1 // pred_region
      %s76 = ssub.s32 128, 128
      %77 = vsyncadd [#allocation15], %s76
      %s79 = sshll.u32 [#allocation14], 4
      %s80 = int_to_ptr.vmem [resolvable:$true] %s79
      %82 = dma.hbm_to_vmem [thread:$0]  %s6, 128, %s80, [#allocation15]
    $region25: #{tpu_custom_call.1} parent=1 // pred_fallthru
      _
    // Predicated region
    $region26: #{tpu_custom_call.1} parent=1 // pred_check
      _
    $region27: #{tpu_custom_call.1} parent=1 // pred_check_branch
      %84 = sbr.rel (0) target = $region29
    $region28: #{tpu_custom_call.1} parent=1 // pred_region
      %s86 = ssub.s32 16, 16
      %87 = vsyncadd [#allocation15], %s86
      %s89 = sshll.u32 [#allocation16], 4
      %s90 = int_to_ptr.vmem [resolvable:$true] %s89
      %92 = dma.hbm_to_vmem [thread:$0]  %s8, 16, %s90, [#allocation15]
    $region29: #{tpu_custom_call.1} parent=1 // pred_fallthru
      _
    // Predicated region
    $region30: #{tpu_custom_call.1} parent=1 // pred_check
      _
    $region31: #{tpu_custom_call.1} parent=1 // pred_check_branch
      %94 = sbr.rel (0) target = $region33
    $region32: #{tpu_custom_call.1} parent=1 // pred_region
      %95 = dma.done [#allocation6], 64
    $region33: #{tpu_custom_call.1} parent=1 // pred_fallthru
      _
    // Predicated region
    $region34: #{tpu_custom_call.1} parent=1 // pred_check
      _
    $region35: #{tpu_custom_call.1} parent=1 // pred_check_branch
      %97 = sbr.rel (0) target = $region37
    $region36: #{tpu_custom_call.1} parent=1 // pred_region
      %98 = dma.done [#allocation9], 4096
    $region37: #{tpu_custom_call.1} parent=1 // pred_fallthru
      _
    // Predicated region
    $region38: #{tpu_custom_call.1} parent=1 // pred_check
      _
    $region39: #{tpu_custom_call.1} parent=1 // pred_check_branch
      %100 = sbr.rel (0) target = $region41
    $region40: #{tpu_custom_call.1} parent=1 // pred_region
      %101 = dma.done [#allocation9], 64
    $region41: #{tpu_custom_call.1} parent=1 // pred_fallthru
      _
    // Predicated region
    $region42: #{tpu_custom_call.1} parent=1 // pred_check
      _
    $region43: #{tpu_custom_call.1} parent=1 // pred_check_branch
      %103 = sbr.rel (0) target = $region45
    $region44: #{tpu_custom_call.1} parent=1 // pred_region
      %104 = dma.done [#allocation12], 32768
    $region45: #{tpu_custom_call.1} parent=1 // pred_fallthru
      _
    // Predicated region
    $region46: #{tpu_custom_call.1} parent=1 // pred_check
      _
    $region47: #{tpu_custom_call.1} parent=1 // pred_check_branch
      %106 = sbr.rel (0) target = $region49
    $region48: #{tpu_custom_call.1} parent=1 // pred_region
      %107 = dma.done [#allocation12], 128
    $region49: #{tpu_custom_call.1} parent=1 // pred_fallthru
      _
    // Predicated region
    $region50: #{tpu_custom_call.1} parent=1 // pred_check
      _
    $region51: #{tpu_custom_call.1} parent=1 // pred_check_branch
      %109 = sbr.rel (0) target = $region53
    $region52: #{tpu_custom_call.1} parent=1 // pred_region
      %110 = dma.done [#allocation15], 128
    $region53: #{tpu_custom_call.1} parent=1 // pred_fallthru
      _
    // Predicated region
    $region54: #{tpu_custom_call.1} parent=1 // pred_check
      _
    $region55: #{tpu_custom_call.1} parent=1 // pred_check_branch
      %112 = sbr.rel (0) target = $region57
    $region56: #{tpu_custom_call.1} parent=1 // pred_region
      %113 = dma.done [#allocation15], 16
    $region57: #{tpu_custom_call.1} parent=1 // pred_fallthru
      _
    %s116 = sshll.u32 1, 14
    %s117 = sxor.u32 4294967295, %s116
    %s119 = sld [smem:[#allocation0]]
    %s120 = sadd.s32 2, %s119
    %s122 = sshll.u32 7, 26
    %s123 = sxor.u32 4294967295, %s122
    %s124 = sand.u32 0, %s123
    %s125 = sshll.u32 %s120, 26
    %s126 = sor.u32 %s124, %s125
    %s127 = sshll.u32 [#allocation2], 4
    %s128 = int_to_ptr.vmem [resolvable:$true] %s127
    %131 = sst [smem:[#allocation19]] 1024
    %s132 = scalar_lea.smem [#allocation19], 1
    %133 = sst [smem:[%s132]] 1024
    %s134 = scalar_lea.smem [#allocation19], 2
    %135 = sst [smem:[%s134]] 8
    %s136 = scalar_lea.smem [#allocation19], 3
    %137 = sst [smem:[%s136]] 64
    %s138 = scalar_lea.smem [#allocation19], 4
    %139 = sst [smem:[%s138]] 128
    %s140 = scalar_lea.smem [#allocation19], 5
    %141 = sst [smem:[%s140]] 2
    %s142 = scalar_lea.smem [#allocation19], 6
    %143 = sst [smem:[%s142]] 512
    %s144 = scalar_lea.smem [#allocation19], 7
    %145 = sst [smem:[%s144]] 64
    %s146 = scalar_lea.smem [#allocation19], 8
    %147 = sst [smem:[%s146]] 4
    %149 = dma.general %s5, 65536, %s128, [#allocation4], [#allocation18], [#allocation19], %s126, 0
    %s150 = scalar_lea.sflag [#allocation4], 1
    // Predicated region
    $region58: #{tpu_custom_call.1} parent=1 // pred_check
      _
    $region59: #{tpu_custom_call.1} parent=1 // pred_check_branch
      %152 = sbr.rel target = $region61
    $region60: #{tpu_custom_call.1} parent=1 // pred_region
      %153 = sst [smem:[#allocation22]] [#allocation21]
      %154 = sst [smem:[#allocation23]] [#allocation20]
    $region61: #{tpu_custom_call.1} parent=1 // pred_fallthru
      _
    %156 = shalt.err (0)
    %s158 = sshll.u32 [#allocation3], 4
    %s159 = int_to_ptr.vmem [resolvable:$true] %s158
    %161 = dma.hbm_to_vmem [thread:$0]  %s7, 8192, %s159, %s150
    %v162 = vld [vmem:[#allocation5] sm:$0xf]
    %v163 = vld [vmem:[#allocation8] sm:$0xff]
    %v164 = vld [vmem:[#allocation8 + $0x8] sm:$0xff]
    %v165 = vld [vmem:[#allocation8 + $0x10] sm:$0xff]
    %v166 = vld [vmem:[#allocation8 + $0x18] sm:$0xff]
    %v167 = vld [vmem:[#allocation8 + $0x20] sm:$0xff]
    %v168 = vld [vmem:[#allocation8 + $0x28] sm:$0xff]
    %v169 = vld [vmem:[#allocation8 + $0x30] sm:$0xff]
    %v170 = vld [vmem:[#allocation8 + $0x38] sm:$0xff]
    %v171 = vld [vmem:[#allocation8 + $0x40] sm:$0xff]
    %v172 = vld [vmem:[#allocation8 + $0x48] sm:$0xff]
    %v173 = vld [vmem:[#allocation8 + $0x50] sm:$0xff]
    %v174 = vld [vmem:[#allocation8 + $0x58] sm:$0xff]
    %v175 = vld [vmem:[#allocation8 + $0x60] sm:$0xff]
    %v176 = vld [vmem:[#allocation8 + $0x68] sm:$0xff]
    %v177 = vld [vmem:[#allocation8 + $0x70] sm:$0xff]
    %v178 = vld [vmem:[#allocation8 + $0x78] sm:$0xff]
    %v179 = vld [vmem:[#allocation8 + $0x80] sm:$0xff]
    %v180 = vld [vmem:[#allocation8 + $0x88] sm:$0xff]
    %v181 = vld [vmem:[#allocation8 + $0x90] sm:$0xff]
    %v182 = vld [vmem:[#allocation8 + $0x98] sm:$0xff]
    %v183 = vld [vmem:[#allocation8 + $0xa0] sm:$0xff]
    %v184 = vld [vmem:[#allocation8 + $0xa8] sm:$0xff]
    %v185 = vld [vmem:[#allocation8 + $0xb0] sm:$0xff]
    %v186 = vld [vmem:[#allocation8 + $0xb8] sm:$0xff]
    %v187 = vld [vmem:[#allocation8 + $0xc0] sm:$0xff]
    %v188 = vld [vmem:[#allocation8 + $0xc8] sm:$0xff]
    %v189 = vld [vmem:[#allocation8 + $0xd0] sm:$0xff]
    %v190 = vld [vmem:[#allocation8 + $0xd8] sm:$0xff]
    %v191 = vld [vmem:[#allocation8 + $0xe0] sm:$0xff]
    %v192 = vld [vmem:[#allocation8 + $0xe8] sm:$0xff]
    %v193 = vld [vmem:[#allocation8 + $0xf0] sm:$0xff]
    %v194 = vld [vmem:[#allocation8 + $0xf8] sm:$0xff]
    %v195 = vld [vmem:[#allocation10] sm:$0xf]
    %v197 = vlaneseq
    %v198 = vshrl.u32 %v197, 7
    %v199 = vsub.s32 0, %v198
    %v200 = vrot.slane %v195, %v199
    %v201 = vlaneseq
    %v202 = vshrl.u32 %v201, 7
    %v203 = vsub.s32 1, %v202
    %v204 = vrot.slane %v195, %v203
    %v205 = vlaneseq
    %v206 = vshrl.u32 %v205, 7
    %v207 = vsub.s32 2, %v206
    %v208 = vrot.slane %v195, %v207
    %v209 = vlaneseq
    %v210 = vshrl.u32 %v209, 7
    %v211 = vsub.s32 3, %v210
    %v212 = vrot.slane %v195, %v211
    %v249 = vunpack.c.l.b16 %v163
    %v250 = vunpack.c.h.b16 %v163
    %v251 = vunpack.c.l.b16 %v164
    %v252 = vunpack.c.h.b16 %v164
    %v253 = vunpack.c.l.b16 %v165
    %v254 = vunpack.c.h.b16 %v165
    %v255 = vunpack.c.l.b16 %v166
    %v256 = vunpack.c.h.b16 %v166
    %v257 = vunpack.c.l.b16 %v167
    %v258 = vunpack.c.h.b16 %v167
    %v259 = vunpack.c.l.b16 %v168
    %v260 = vunpack.c.h.b16 %v168
    %v261 = vunpack.c.l.b16 %v169
    %v262 = vunpack.c.h.b16 %v169
    %v263 = vunpack.c.l.b16 %v170
    %v264 = vunpack.c.h.b16 %v170
    %v265 = vunpack.c.l.b16 %v171
    %v266 = vunpack.c.h.b16 %v171
    %v267 = vunpack.c.l.b16 %v172
    %v268 = vunpack.c.h.b16 %v172
    %v269 = vunpack.c.l.b16 %v173
    %v270 = vunpack.c.h.b16 %v173
    %v271 = vunpack.c.l.b16 %v174
    %v272 = vunpack.c.h.b16 %v174
    %v273 = vunpack.c.l.b16 %v175
    %v274 = vunpack.c.h.b16 %v175
    %v275 = vunpack.c.l.b16 %v176
    %v276 = vunpack.c.h.b16 %v176
    %v277 = vunpack.c.l.b16 %v177
    %v278 = vunpack.c.h.b16 %v177
    %v279 = vunpack.c.l.b16 %v178
    %v280 = vunpack.c.h.b16 %v178
    %v281 = vunpack.c.l.b16 %v179
    %v282 = vunpack.c.h.b16 %v179
    %v283 = vunpack.c.l.b16 %v180
    %v284 = vunpack.c.h.b16 %v180
    %v285 = vunpack.c.l.b16 %v181
    %v286 = vunpack.c.h.b16 %v181
    %v287 = vunpack.c.l.b16 %v182
    %v288 = vunpack.c.h.b16 %v182
    %v289 = vunpack.c.l.b16 %v183
    %v290 = vunpack.c.h.b16 %v183
    %v291 = vunpack.c.l.b16 %v184
    %v292 = vunpack.c.h.b16 %v184
    %v293 = vunpack.c.l.b16 %v185
    %v294 = vunpack.c.h.b16 %v185
    %v295 = vunpack.c.l.b16 %v186
    %v296 = vunpack.c.h.b16 %v186
    %v297 = vunpack.c.l.b16 %v187
    %v298 = vunpack.c.h.b16 %v187
    %v299 = vunpack.c.l.b16 %v188
    %v300 = vunpack.c.h.b16 %v188
    %v301 = vunpack.c.l.b16 %v189
    %v302 = vunpack.c.h.b16 %v189
    %v303 = vunpack.c.l.b16 %v190
    %v304 = vunpack.c.h.b16 %v190
    %v305 = vunpack.c.l.b16 %v191
    %v306 = vunpack.c.h.b16 %v191
    %v307 = vunpack.c.l.b16 %v192
    %v308 = vunpack.c.h.b16 %v192
    %v309 = vunpack.c.l.b16 %v193
    %v310 = vunpack.c.h.b16 %v193
    %v311 = vunpack.c.l.b16 %v194
    %v312 = vunpack.c.h.b16 %v194
    %v313 = vpack.c.b16 %v253, %v249
    %v314 = vpack.c.b16 %v254, %v250
    %v315 = vpack.c.b16 %v255, %v251
    %v316 = vpack.c.b16 %v256, %v252
    %v317 = vpack.c.b16 %v261, %v257
    %v318 = vpack.c.b16 %v262, %v258
    %v319 = vpack.c.b16 %v263, %v259
    %v320 = vpack.c.b16 %v264, %v260
    %v321 = vpack.c.b16 %v269, %v265
    %v322 = vpack.c.b16 %v270, %v266
    %v323 = vpack.c.b16 %v271, %v267
    %v324 = vpack.c.b16 %v272, %v268
    %v325 = vpack.c.b16 %v277, %v273
    %v326 = vpack.c.b16 %v278, %v274
    %v327 = vpack.c.b16 %v279, %v275
    %v328 = vpack.c.b16 %v280, %v276
    %v329 = vpack.c.b16 %v285, %v281
    %v330 = vpack.c.b16 %v286, %v282
    %v331 = vpack.c.b16 %v287, %v283
    %v332 = vpack.c.b16 %v288, %v284
    %v333 = vpack.c.b16 %v293, %v289
    %v334 = vpack.c.b16 %v294, %v290
    %v335 = vpack.c.b16 %v295, %v291
    %v336 = vpack.c.b16 %v296, %v292
    %v337 = vpack.c.b16 %v301, %v297
    %v338 = vpack.c.b16 %v302, %v298
    %v339 = vpack.c.b16 %v303, %v299
    %v340 = vpack.c.b16 %v304, %v300
    %v341 = vpack.c.b16 %v309, %v305
    %v342 = vpack.c.b16 %v310, %v306
    %v343 = vpack.c.b16 %v311, %v307
    %v344 = vpack.c.b16 %v312, %v308
    %377 = vmatprep.subr.bf16.mxu0 %v314
    %378 = vmatpush1.bf16.msra.mxu0 %v313
    %379 = vmatprep.subr.bf16.mxu0 %v318
    %380 = vmatpush1.bf16.msra.mxu0 %v317
    %381 = vmatprep.subr.bf16.mxu0 %v322
    %382 = vmatpush1.bf16.msra.mxu0 %v321
    %383 = vmatprep.subr.bf16.mxu0 %v326
    %384 = vmatpush1.bf16.msra.mxu0 %v325
    %385 = vmatprep.subr.bf16.mxu0 %v330
    %386 = vmatpush1.bf16.msra.mxu0 %v329
    %387 = vmatprep.subr.bf16.mxu0 %v334
    %388 = vmatpush1.bf16.msra.mxu0 %v333
    %389 = vmatprep.subr.bf16.mxu0 %v338
    %390 = vmatpush1.bf16.msra.mxu0 %v337
    %391 = vmatprep.subr.bf16.mxu0 %v342
    %392 = vmatpush1.bf16.msra.mxu0 %v341
    %393 = vmatprep.subr.bf16.mxu0 0
    %394 = vmatpush1.bf16.msra.mxu0 0
    %395 = vmatprep.subr.bf16.mxu0 0
    %396 = vmatpush1.bf16.msra.mxu0 0
    %397 = vmatprep.subr.bf16.mxu0 0
    %398 = vmatpush1.bf16.msra.mxu0 0
    %399 = vmatprep.subr.bf16.mxu0 0
    %400 = vmatpush1.bf16.msra.mxu0 0
    %401 = vmatprep.subr.bf16.mxu0 0
    %402 = vmatpush1.bf16.msra.mxu0 0
    %403 = vmatprep.subr.bf16.mxu0 0
    %404 = vmatpush1.bf16.msra.mxu0 0
    %405 = vmatprep.subr.bf16.mxu0 0
    %406 = vmatpush1.bf16.msra.mxu0 0
    %407 = vmatprep.subr.bf16.mxu0 0
    %408 = vmatpush1.bf16.msra.mxu0 0
    %409 = vmatprep.mubr.bf16.mxu0 0
    %410 = vmatmul.mubr.bf16.gmra.mrb[0].mxu0 %v162
    %v411 = vpop.f32.mrb[0].mxu0
    %v412 = vadd.f32 %v200, %v411
    %v413 = vpop.f32.mrb[0].mxu0
    %v414 = vadd.f32 %v204, %v413
    %v415 = vpop.f32.mrb[0].mxu0
    %v416 = vpop.f32.mrb[0].mxu0
    %417 = vdwg.mxu0
    %418 = vmatprep.subr.bf16.mxu0 %v316
    %419 = vmatpush1.bf16.msra.mxu0 %v315
    %420 = vmatprep.subr.bf16.mxu0 %v320
    %421 = vmatpush1.bf16.msra.mxu0 %v319
    %422 = vmatprep.subr.bf16.mxu0 %v324
    %423 = vmatpush1.bf16.msra.mxu0 %v323
    %424 = vmatprep.subr.bf16.mxu0 %v328
    %425 = vmatpush1.bf16.msra.mxu0 %v327
    %426 = vmatprep.subr.bf16.mxu0 %v332
    %427 = vmatpush1.bf16.msra.mxu0 %v331
    %428 = vmatprep.subr.bf16.mxu0 %v336
    %429 = vmatpush1.bf16.msra.mxu0 %v335
    %430 = vmatprep.subr.bf16.mxu0 %v340
    %431 = vmatpush1.bf16.msra.mxu0 %v339
    %432 = vmatprep.subr.bf16.mxu0 %v344
    %433 = vmatpush1.bf16.msra.mxu0 %v343
    %434 = vmatprep.subr.bf16.mxu0 0
    %435 = vmatpush1.bf16.msra.mxu0 0
    %436 = vmatprep.subr.bf16.mxu0 0
    %437 = vmatpush1.bf16.msra.mxu0 0
    %438 = vmatprep.subr.bf16.mxu0 0
    %439 = vmatpush1.bf16.msra.mxu0 0
    %440 = vmatprep.subr.bf16.mxu0 0
    %441 = vmatpush1.bf16.msra.mxu0 0
    %442 = vmatprep.subr.bf16.mxu0 0
    %443 = vmatpush1.bf16.msra.mxu0 0
    %444 = vmatprep.subr.bf16.mxu0 0
    %445 = vmatpush1.bf16.msra.mxu0 0
    %446 = vmatprep.subr.bf16.mxu0 0
    %447 = vmatpush1.bf16.msra.mxu0 0
    %448 = vmatprep.subr.bf16.mxu0 0
    %449 = vmatpush1.bf16.msra.mxu0 0
    %450 = vmatprep.mubr.bf16.mxu0 0
    %451 = vmatmul.mubr.bf16.gmra.mrb[0].mxu0 %v162
    %v452 = vpop.f32.mrb[0].mxu0
    %v453 = vadd.f32 %v208, %v452
    %v454 = vpop.f32.mrb[0].mxu0
    %v455 = vadd.f32 %v212, %v454
    %v456 = vpop.f32.mrb[0].mxu0
    %v457 = vpop.f32.mrb[0].mxu0
    %458 = vdwg.mxu0
    %v459 = vmax.f32 %v412, 0.0
    %v460 = vmax.f32 %v414, 0.0
    %v461 = vmax.f32 %v453, 0.0
    %v462 = vmax.f32 %v455, 0.0
    %v463 = vpack.c.bf16 %v459, %v459
    %v464 = vpack.c.bf16 %v460, %v460
    %v465 = vpack.c.bf16 %v461, %v461
    %v466 = vpack.c.bf16 %v462, %v462
    %v467 = vld [vmem:[#allocation11] sm:$0xff]
    %v468 = vld [vmem:[#allocation11 + $0x8] sm:$0xff]
    %v469 = vld [vmem:[#allocation11 + $0x10] sm:$0xff]
    %v470 = vld [vmem:[#allocation11 + $0x18] sm:$0xff]
    %v471 = vld [vmem:[#allocation11 + $0x20] sm:$0xff]
    %v472 = vld [vmem:[#allocation11 + $0x28] sm:$0xff]
    %v473 = vld [vmem:[#allocation11 + $0x30] sm:$0xff]
    %v474 = vld [vmem:[#allocation11 + $0x38] sm:$0xff]
    %v475 = vld [vmem:[#allocation11 + $0x40] sm:$0xff]
    %v476 = vld [vmem:[#allocation11 + $0x48] sm:$0xff]
    %v477 = vld [vmem:[#allocation11 + $0x50] sm:$0xff]
    %v478 = vld [vmem:[#allocation11 + $0x58] sm:$0xff]
    %v479 = vld [vmem:[#allocation11 + $0x60] sm:$0xff]
    %v480 = vld [vmem:[#allocation11 + $0x68] sm:$0xff]
    %v481 = vld [vmem:[#allocation11 + $0x70] sm:$0xff]
    %v482 = vld [vmem:[#allocation11 + $0x78] sm:$0xff]
    %v483 = vld [vmem:[#allocation11 + $0x80] sm:$0xff]
    %v484 = vld [vmem:[#allocation11 + $0x88] sm:$0xff]
    %v485 = vld [vmem:[#allocation11 + $0x90] sm:$0xff]
    %v486 = vld [vmem:[#allocation11 + $0x98] sm:$0xff]
    %v487 = vld [vmem:[#allocation11 + $0xa0] sm:$0xff]
    %v488 = vld [vmem:[#allocation11 + $0xa8] sm:$0xff]
    %v489 = vld [vmem:[#allocation11 + $0xb0] sm:$0xff]
    %v490 = vld [vmem:[#allocation11 + $0xb8] sm:$0xff]
    %v491 = vld [vmem:[#allocation11 + $0xc0] sm:$0xff]
    %v492 = vld [vmem:[#allocation11 + $0xc8] sm:$0xff]
    %v493 = vld [vmem:[#allocation11 + $0xd0] sm:$0xff]
    %v494 = vld [vmem:[#allocation11 + $0xd8] sm:$0xff]
    %v495 = vld [vmem:[#allocation11 + $0xe0] sm:$0xff]
    %v496 = vld [vmem:[#allocation11 + $0xe8] sm:$0xff]
    %v497 = vld [vmem:[#allocation11 + $0xf0] sm:$0xff]
    %v498 = vld [vmem:[#allocation11 + $0xf8] sm:$0xff]
    %v499 = vld [vmem:[#allocation11 + $0x100] sm:$0xff]
    %v500 = vld [vmem:[#allocation11 + $0x108] sm:$0xff]
    %v501 = vld [vmem:[#allocation11 + $0x110] sm:$0xff]
    %v502 = vld [vmem:[#allocation11 + $0x118] sm:$0xff]
    %v503 = vld [vmem:[#allocation11 + $0x120] sm:$0xff]
    %v504 = vld [vmem:[#allocation11 + $0x128] sm:$0xff]
    %v505 = vld [vmem:[#allocation11 + $0x130] sm:$0xff]
    %v506 = vld [vmem:[#allocation11 + $0x138] sm:$0xff]
    %v507 = vld [vmem:[#allocation11 + $0x140] sm:$0xff]
    %v508 = vld [vmem:[#allocation11 + $0x148] sm:$0xff]
    %v509 = vld [vmem:[#allocation11 + $0x150] sm:$0xff]
    %v510 = vld [vmem:[#allocation11 + $0x158] sm:$0xff]
    %v511 = vld [vmem:[#allocation11 + $0x160] sm:$0xff]
    %v512 = vld [vmem:[#allocation11 + $0x168] sm:$0xff]
    %v513 = vld [vmem:[#allocation11 + $0x170] sm:$0xff]
    %v514 = vld [vmem:[#allocation11 + $0x178] sm:$0xff]
    %v515 = vld [vmem:[#allocation11 + $0x180] sm:$0xff]
    %v516 = vld [vmem:[#allocation11 + $0x188] sm:$0xff]
    %v517 = vld [vmem:[#allocation11 + $0x190] sm:$0xff]
    %v518 = vld [vmem:[#allocation11 + $0x198] sm:$0xff]
    %v519 = vld [vmem:[#allocation11 + $0x1a0] sm:$0xff]
    %v520 = vld [vmem:[#allocation11 + $0x1a8] sm:$0xff]
    %v521 = vld [vmem:[#allocation11 + $0x1b0] sm:$0xff]
    %v522 = vld [vmem:[#allocation11 + $0x1b8] sm:$0xff]
    %v523 = vld [vmem:[#allocation11 + $0x1c0] sm:$0xff]
    %v524 = vld [vmem:[#allocation11 + $0x1c8] sm:$0xff]
    %v525 = vld [vmem:[#allocation11 + $0x1d0] sm:$0xff]
    %v526 = vld [vmem:[#allocation11 + $0x1d8] sm:$0xff]
    %v527 = vld [vmem:[#allocation11 + $0x1e0] sm:$0xff]
    %v528 = vld [vmem:[#allocation11 + $0x1e8] sm:$0xff]
    %v529 = vld [vmem:[#allocation11 + $0x1f0] sm:$0xff]
    %v530 = vld [vmem:[#allocation11 + $0x1f8] sm:$0xff]
    %v531 = vld [vmem:[#allocation11 + $0x200] sm:$0xff]
    %v532 = vld [vmem:[#allocation11 + $0x208] sm:$0xff]
    %v533 = vld [vmem:[#allocation11 + $0x210] sm:$0xff]
    %v534 = vld [vmem:[#allocation11 + $0x218] sm:$0xff]
    %v535 = vld [vmem:[#allocation11 + $0x220] sm:$0xff]
    %v536 = vld [vmem:[#allocation11 + $0x228] sm:$0xff]
    %v537 = vld [vmem:[#allocation11 + $0x230] sm:$0xff]
    %v538 = vld [vmem:[#allocation11 + $0x238] sm:$0xff]
    %v539 = vld [vmem:[#allocation11 + $0x240] sm:$0xff]
    %v540 = vld [vmem:[#allocation11 + $0x248] sm:$0xff]
    %v541 = vld [vmem:[#allocation11 + $0x250] sm:$0xff]
    %v542 = vld [vmem:[#allocation11 + $0x258] sm:$0xff]
    %v543 = vld [vmem:[#allocation11 + $0x260] sm:$0xff]
    %v544 = vld [vmem:[#allocation11 + $0x268] sm:$0xff]
    %v545 = vld [vmem:[#allocation11 + $0x270] sm:$0xff]
    %v546 = vld [vmem:[#allocation11 + $0x278] sm:$0xff]
    %v547 = vld [vmem:[#allocation11 + $0x280] sm:$0xff]
    %v548 = vld [vmem:[#allocation11 + $0x288] sm:$0xff]
    %v549 = vld [vmem:[#allocation11 + $0x290] sm:$0xff]
    %v550 = vld [vmem:[#allocation11 + $0x298] sm:$0xff]
    %v551 = vld [vmem:[#allocation11 + $0x2a0] sm:$0xff]
    %v552 = vld [vmem:[#allocation11 + $0x2a8] sm:$0xff]
    %v553 = vld [vmem:[#allocation11 + $0x2b0] sm:$0xff]
    %v554 = vld [vmem:[#allocation11 + $0x2b8] sm:$0xff]
    %v555 = vld [vmem:[#allocation11 + $0x2c0] sm:$0xff]
    %v556 = vld [vmem:[#allocation11 + $0x2c8] sm:$0xff]
    %v557 = vld [vmem:[#allocation11 + $0x2d0] sm:$0xff]
    %v558 = vld [vmem:[#allocation11 + $0x2d8] sm:$0xff]
    %v559 = vld [vmem:[#allocation11 + $0x2e0] sm:$0xff]
    %v560 = vld [vmem:[#allocation11 + $0x2e8] sm:$0xff]
    %v561 = vld [vmem:[#allocation11 + $0x2f0] sm:$0xff]
    %v562 = vld [vmem:[#allocation11 + $0x2f8] sm:$0xff]
    %v563 = vld [vmem:[#allocation11 + $0x300] sm:$0xff]
    %v564 = vld [vmem:[#allocation11 + $0x308] sm:$0xff]
    %v565 = vld [vmem:[#allocation11 + $0x310] sm:$0xff]
    %v566 = vld [vmem:[#allocation11 + $0x318] sm:$0xff]
    %v567 = vld [vmem:[#allocation11 + $0x320] sm:$0xff]
    %v568 = vld [vmem:[#allocation11 + $0x328] sm:$0xff]
    %v569 = vld [vmem:[#allocation11 + $0x330] sm:$0xff]
    %v570 = vld [vmem:[#allocation11 + $0x338] sm:$0xff]
    %v571 = vld [vmem:[#allocation11 + $0x340] sm:$0xff]
    %v572 = vld [vmem:[#allocation11 + $0x348] sm:$0xff]
    %v573 = vld [vmem:[#allocation11 + $0x350] sm:$0xff]
    %v574 = vld [vmem:[#allocation11 + $0x358] sm:$0xff]
    %v575 = vld [vmem:[#allocation11 + $0x360] sm:$0xff]
    %v576 = vld [vmem:[#allocation11 + $0x368] sm:$0xff]
    %v577 = vld [vmem:[#allocation11 + $0x370] sm:$0xff]
    %v578 = vld [vmem:[#allocation11 + $0x378] sm:$0xff]
    %v579 = vld [vmem:[#allocation11 + $0x380] sm:$0xff]
    %v580 = vld [vmem:[#allocation11 + $0x388] sm:$0xff]
    %v581 = vld [vmem:[#allocation11 + $0x390] sm:$0xff]
    %v582 = vld [vmem:[#allocation11 + $0x398] sm:$0xff]
    %v583 = vld [vmem:[#allocation11 + $0x3a0] sm:$0xff]
    %v584 = vld [vmem:[#allocation11 + $0x3a8] sm:$0xff]
    %v585 = vld [vmem:[#allocation11 + $0x3b0] sm:$0xff]
    %v586 = vld [vmem:[#allocation11 + $0x3b8] sm:$0xff]
    %v587 = vld [vmem:[#allocation11 + $0x3c0] sm:$0xff]
    %v588 = vld [vmem:[#allocation11 + $0x3c8] sm:$0xff]
    %v589 = vld [vmem:[#allocation11 + $0x3d0] sm:$0xff]
    %v590 = vld [vmem:[#allocation11 + $0x3d8] sm:$0xff]
    %v591 = vld [vmem:[#allocation11 + $0x3e0] sm:$0xff]
    %v592 = vld [vmem:[#allocation11 + $0x3e8] sm:$0xff]
    %v593 = vld [vmem:[#allocation11 + $0x3f0] sm:$0xff]
    %v594 = vld [vmem:[#allocation11 + $0x3f8] sm:$0xff]
    %v595 = vld [vmem:[#allocation11 + $0x400] sm:$0xff]
    %v596 = vld [vmem:[#allocation11 + $0x408] sm:$0xff]
    %v597 = vld [vmem:[#allocation11 + $0x410] sm:$0xff]
    %v598 = vld [vmem:[#allocation11 + $0x418] sm:$0xff]
    %v599 = vld [vmem:[#allocation11 + $0x420] sm:$0xff]
    %v600 = vld [vmem:[#allocation11 + $0x428] sm:$0xff]
    %v601 = vld [vmem:[#allocation11 + $0x430] sm:$0xff]
    %v602 = vld [vmem:[#allocation11 + $0x438] sm:$0xff]
    %v603 = vld [vmem:[#allocation11 + $0x440] sm:$0xff]
    %v604 = vld [vmem:[#allocation11 + $0x448] sm:$0xff]
    %v605 = vld [vmem:[#allocation11 + $0x450] sm:$0xff]
    %v606 = vld [vmem:[#allocation11 + $0x458] sm:$0xff]
    %v607 = vld [vmem:[#allocation11 + $0x460] sm:$0xff]
    %v608 = vld [vmem:[#allocation11 + $0x468] sm:$0xff]
    %v609 = vld [vmem:[#allocation11 + $0x470] sm:$0xff]
    %v610 = vld [vmem:[#allocation11 + $0x478] sm:$0xff]
    %v611 = vld [vmem:[#allocation11 + $0x480] sm:$0xff]
    %v612 = vld [vmem:[#allocation11 + $0x488] sm:$0xff]
    %v613 = vld [vmem:[#allocation11 + $0x490] sm:$0xff]
    %v614 = vld [vmem:[#allocation11 + $0x498] sm:$0xff]
    %v615 = vld [vmem:[#allocation11 + $0x4a0] sm:$0xff]
    %v616 = vld [vmem:[#allocation11 + $0x4a8] sm:$0xff]
    %v617 = vld [vmem:[#allocation11 + $0x4b0] sm:$0xff]
    %v618 = vld [vmem:[#allocation11 + $0x4b8] sm:$0xff]
    %v619 = vld [vmem:[#allocation11 + $0x4c0] sm:$0xff]
    %v620 = vld [vmem:[#allocation11 + $0x4c8] sm:$0xff]
    %v621 = vld [vmem:[#allocation11 + $0x4d0] sm:$0xff]
    %v622 = vld [vmem:[#allocation11 + $0x4d8] sm:$0xff]
    %v623 = vld [vmem:[#allocation11 + $0x4e0] sm:$0xff]
    %v624 = vld [vmem:[#allocation11 + $0x4e8] sm:$0xff]
    %v625 = vld [vmem:[#allocation11 + $0x4f0] sm:$0xff]
    %v626 = vld [vmem:[#allocation11 + $0x4f8] sm:$0xff]
    %v627 = vld [vmem:[#allocation11 + $0x500] sm:$0xff]
    %v628 = vld [vmem:[#allocation11 + $0x508] sm:$0xff]
    %v629 = vld [vmem:[#allocation11 + $0x510] sm:$0xff]
    %v630 = vld [vmem:[#allocation11 + $0x518] sm:$0xff]
    %v631 = vld [vmem:[#allocation11 + $0x520] sm:$0xff]
    %v632 = vld [vmem:[#allocation11 + $0x528] sm:$0xff]
    %v633 = vld [vmem:[#allocation11 + $0x530] sm:$0xff]
    %v634 = vld [vmem:[#allocation11 + $0x538] sm:$0xff]
    %v635 = vld [vmem:[#allocation11 + $0x540] sm:$0xff]
    %v636 = vld [vmem:[#allocation11 + $0x548] sm:$0xff]
    %v637 = vld [vmem:[#allocation11 + $0x550] sm:$0xff]
    %v638 = vld [vmem:[#allocation11 + $0x558] sm:$0xff]
    %v639 = vld [vmem:[#allocation11 + $0x560] sm:$0xff]
    %v640 = vld [vmem:[#allocation11 + $0x568] sm:$0xff]
    %v641 = vld [vmem:[#allocation11 + $0x570] sm:$0xff]
    %v642 = vld [vmem:[#allocation11 + $0x578] sm:$0xff]
    %v643 = vld [vmem:[#allocation11 + $0x580] sm:$0xff]
    %v644 = vld [vmem:[#allocation11 + $0x588] sm:$0xff]
    %v645 = vld [vmem:[#allocation11 + $0x590] sm:$0xff]
    %v646 = vld [vmem:[#allocation11 + $0x598] sm:$0xff]
    %v647 = vld [vmem:[#allocation11 + $0x5a0] sm:$0xff]
    %v648 = vld [vmem:[#allocation11 + $0x5a8] sm:$0xff]
    %v649 = vld [vmem:[#allocation11 + $0x5b0] sm:$0xff]
    %v650 = vld [vmem:[#allocation11 + $0x5b8] sm:$0xff]
    %v651 = vld [vmem:[#allocation11 + $0x5c0] sm:$0xff]
    %v652 = vld [vmem:[#allocation11 + $0x5c8] sm:$0xff]
    %v653 = vld [vmem:[#allocation11 + $0x5d0] sm:$0xff]
    %v654 = vld [vmem:[#allocation11 + $0x5d8] sm:$0xff]
    %v655 = vld [vmem:[#allocation11 + $0x5e0] sm:$0xff]
    %v656 = vld [vmem:[#allocation11 + $0x5e8] sm:$0xff]
    %v657 = vld [vmem:[#allocation11 + $0x5f0] sm:$0xff]
    %v658 = vld [vmem:[#allocation11 + $0x5f8] sm:$0xff]
    %v659 = vld [vmem:[#allocation11 + $0x600] sm:$0xff]
    %v660 = vld [vmem:[#allocation11 + $0x608] sm:$0xff]
    %v661 = vld [vmem:[#allocation11 + $0x610] sm:$0xff]
    %v662 = vld [vmem:[#allocation11 + $0x618] sm:$0xff]
    %v663 = vld [vmem:[#allocation11 + $0x620] sm:$0xff]
    %v664 = vld [vmem:[#allocation11 + $0x628] sm:$0xff]
    %v665 = vld [vmem:[#allocation11 + $0x630] sm:$0xff]
    %v666 = vld [vmem:[#allocation11 + $0x638] sm:$0xff]
    %v667 = vld [vmem:[#allocation11 + $0x640] sm:$0xff]
    %v668 = vld [vmem:[#allocation11 + $0x648] sm:$0xff]
    %v669 = vld [vmem:[#allocation11 + $0x650] sm:$0xff]
    %v670 = vld [vmem:[#allocation11 + $0x658] sm:$0xff]
    %v671 = vld [vmem:[#allocation11 + $0x660] sm:$0xff]
    %v672 = vld [vmem:[#allocation11 + $0x668] sm:$0xff]
    %v673 = vld [vmem:[#allocation11 + $0x670] sm:$0xff]
    %v674 = vld [vmem:[#allocation11 + $0x678] sm:$0xff]
    %v675 = vld [vmem:[#allocation11 + $0x680] sm:$0xff]
    %v676 = vld [vmem:[#allocation11 + $0x688] sm:$0xff]
    %v677 = vld [vmem:[#allocation11 + $0x690] sm:$0xff]
    %v678 = vld [vmem:[#allocation11 + $0x698] sm:$0xff]
    %v679 = vld [vmem:[#allocation11 + $0x6a0] sm:$0xff]
    %v680 = vld [vmem:[#allocation11 + $0x6a8] sm:$0xff]
    %v681 = vld [vmem:[#allocation11 + $0x6b0] sm:$0xff]
    %v682 = vld [vmem:[#allocation11 + $0x6b8] sm:$0xff]
    %v683 = vld [vmem:[#allocation11 + $0x6c0] sm:$0xff]
    %v684 = vld [vmem:[#allocation11 + $0x6c8] sm:$0xff]
    %v685 = vld [vmem:[#allocation11 + $0x6d0] sm:$0xff]
    %v686 = vld [vmem:[#allocation11 + $0x6d8] sm:$0xff]
    %v687 = vld [vmem:[#allocation11 + $0x6e0] sm:$0xff]
    %v688 = vld [vmem:[#allocation11 + $0x6e8] sm:$0xff]
    %v689 = vld [vmem:[#allocation11 + $0x6f0] sm:$0xff]
    %v690 = vld [vmem:[#allocation11 + $0x6f8] sm:$0xff]
    %v691 = vld [vmem:[#allocation11 + $0x700] sm:$0xff]
    %v692 = vld [vmem:[#allocation11 + $0x708] sm:$0xff]
    %v693 = vld [vmem:[#allocation11 + $0x710] sm:$0xff]
    %v694 = vld [vmem:[#allocation11 + $0x718] sm:$0xff]
    %v695 = vld [vmem:[#allocation11 + $0x720] sm:$0xff]
    %v696 = vld [vmem:[#allocation11 + $0x728] sm:$0xff]
    %v697 = vld [vmem:[#allocation11 + $0x730] sm:$0xff]
    %v698 = vld [vmem:[#allocation11 + $0x738] sm:$0xff]
    %v699 = vld [vmem:[#allocation11 + $0x740] sm:$0xff]
    %v700 = vld [vmem:[#allocation11 + $0x748] sm:$0xff]
    %v701 = vld [vmem:[#allocation11 + $0x750] sm:$0xff]
    %v702 = vld [vmem:[#allocation11 + $0x758] sm:$0xff]
    %v703 = vld [vmem:[#allocation11 + $0x760] sm:$0xff]
    %v704 = vld [vmem:[#allocation11 + $0x768] sm:$0xff]
    %v705 = vld [vmem:[#allocation11 + $0x770] sm:$0xff]
    %v706 = vld [vmem:[#allocation11 + $0x778] sm:$0xff]
    %v707 = vld [vmem:[#allocation11 + $0x780] sm:$0xff]
    %v708 = vld [vmem:[#allocation11 + $0x788] sm:$0xff]
    %v709 = vld [vmem:[#allocation11 + $0x790] sm:$0xff]
    %v710 = vld [vmem:[#allocation11 + $0x798] sm:$0xff]
    %v711 = vld [vmem:[#allocation11 + $0x7a0] sm:$0xff]
    %v712 = vld [vmem:[#allocation11 + $0x7a8] sm:$0xff]
    %v713 = vld [vmem:[#allocation11 + $0x7b0] sm:$0xff]
    %v714 = vld [vmem:[#allocation11 + $0x7b8] sm:$0xff]
    %v715 = vld [vmem:[#allocation11 + $0x7c0] sm:$0xff]
    %v716 = vld [vmem:[#allocation11 + $0x7c8] sm:$0xff]
    %v717 = vld [vmem:[#allocation11 + $0x7d0] sm:$0xff]
    %v718 = vld [vmem:[#allocation11 + $0x7d8] sm:$0xff]
    %v719 = vld [vmem:[#allocation11 + $0x7e0] sm:$0xff]
    %v720 = vld [vmem:[#allocation11 + $0x7e8] sm:$0xff]
    %v721 = vld [vmem:[#allocation11 + $0x7f0] sm:$0xff]
    %v722 = vld [vmem:[#allocation11 + $0x7f8] sm:$0xff]
    %v723 = vld [vmem:[#allocation13] sm:$0xff]
    %v725 = vlaneseq
    %v726 = vshrl.u32 %v725, 7
    %v727 = vsub.s32 0, %v726
    %v728 = vrot.slane %v723, %v727
    %v729 = vlaneseq
    %v730 = vshrl.u32 %v729, 7
    %v731 = vsub.s32 1, %v730
    %v732 = vrot.slane %v723, %v731
    %v733 = vlaneseq
    %v734 = vshrl.u32 %v733, 7
    %v735 = vsub.s32 2, %v734
    %v736 = vrot.slane %v723, %v735
    %v737 = vlaneseq
    %v738 = vshrl.u32 %v737, 7
    %v739 = vsub.s32 3, %v738
    %v740 = vrot.slane %v723, %v739
    %v741 = vlaneseq
    %v742 = vshrl.u32 %v741, 7
    %v743 = vsub.s32 4, %v742
    %v744 = vrot.slane %v723, %v743
    %v745 = vlaneseq
    %v746 = vshrl.u32 %v745, 7
    %v747 = vsub.s32 5, %v746
    %v748 = vrot.slane %v723, %v747
    %v749 = vlaneseq
    %v750 = vshrl.u32 %v749, 7
    %v751 = vsub.s32 6, %v750
    %v752 = vrot.slane %v723, %v751
    %v753 = vlaneseq
    %v754 = vshrl.u32 %v753, 7
    %v755 = vsub.s32 7, %v754
    %v756 = vrot.slane %v723, %v755
    %v1021 = vunpack.c.l.b16 %v467
    %v1022 = vunpack.c.h.b16 %v467
    %v1023 = vunpack.c.l.b16 %v468
    %v1024 = vunpack.c.h.b16 %v468
    %v1025 = vunpack.c.l.b16 %v469
    %v1026 = vunpack.c.h.b16 %v469
    %v1027 = vunpack.c.l.b16 %v470
    %v1028 = vunpack.c.h.b16 %v470
    %v1029 = vunpack.c.l.b16 %v471
    %v1030 = vunpack.c.h.b16 %v471
    %v1031 = vunpack.c.l.b16 %v472
    %v1032 = vunpack.c.h.b16 %v472
    %v1033 = vunpack.c.l.b16 %v473
    %v1034 = vunpack.c.h.b16 %v473
    %v1035 = vunpack.c.l.b16 %v474
    %v1036 = vunpack.c.h.b16 %v474
    %v1037 = vunpack.c.l.b16 %v475
    %v1038 = vunpack.c.h.b16 %v475
    %v1039 = vunpack.c.l.b16 %v476
    %v1040 = vunpack.c.h.b16 %v476
    %v1041 = vunpack.c.l.b16 %v477
    %v1042 = vunpack.c.h.b16 %v477
    %v1043 = vunpack.c.l.b16 %v478
    %v1044 = vunpack.c.h.b16 %v478
    %v1045 = vunpack.c.l.b16 %v479
    %v1046 = vunpack.c.h.b16 %v479
    %v1047 = vunpack.c.l.b16 %v480
    %v1048 = vunpack.c.h.b16 %v480
    %v1049 = vunpack.c.l.b16 %v481
    %v1050 = vunpack.c.h.b16 %v481
    %v1051 = vunpack.c.l.b16 %v482
    %v1052 = vunpack.c.h.b16 %v482
    %v1053 = vunpack.c.l.b16 %v483
    %v1054 = vunpack.c.h.b16 %v483
    %v1055 = vunpack.c.l.b16 %v484
    %v1056 = vunpack.c.h.b16 %v484
    %v1057 = vunpack.c.l.b16 %v485
    %v1058 = vunpack.c.h.b16 %v485
    %v1059 = vunpack.c.l.b16 %v486
    %v1060 = vunpack.c.h.b16 %v486
    %v1061 = vunpack.c.l.b16 %v487
    %v1062 = vunpack.c.h.b16 %v487
    %v1063 = vunpack.c.l.b16 %v488
    %v1064 = vunpack.c.h.b16 %v488
    %v1065 = vunpack.c.l.b16 %v489
    %v1066 = vunpack.c.h.b16 %v489
    %v1067 = vunpack.c.l.b16 %v490
    %v1068 = vunpack.c.h.b16 %v490
    %v1069 = vunpack.c.l.b16 %v491
    %v1070 = vunpack.c.h.b16 %v491
    %v1071 = vunpack.c.l.b16 %v492
    %v1072 = vunpack.c.h.b16 %v492
    %v1073 = vunpack.c.l.b16 %v493
    %v1074 = vunpack.c.h.b16 %v493
    %v1075 = vunpack.c.l.b16 %v494
    %v1076 = vunpack.c.h.b16 %v494
    %v1077 = vunpack.c.l.b16 %v495
    %v1078 = vunpack.c.h.b16 %v495
    %v1079 = vunpack.c.l.b16 %v496
    %v1080 = vunpack.c.h.b16 %v496
    %v1081 = vunpack.c.l.b16 %v497
    %v1082 = vunpack.c.h.b16 %v497
    %v1083 = vunpack.c.l.b16 %v498
    %v1084 = vunpack.c.h.b16 %v498
    %v1085 = vunpack.c.l.b16 %v499
    %v1086 = vunpack.c.h.b16 %v499
    %v1087 = vunpack.c.l.b16 %v500
    %v1088 = vunpack.c.h.b16 %v500
    %v1089 = vunpack.c.l.b16 %v501
    %v1090 = vunpack.c.h.b16 %v501
    %v1091 = vunpack.c.l.b16 %v502
    %v1092 = vunpack.c.h.b16 %v502
    %v1093 = vunpack.c.l.b16 %v503
    %v1094 = vunpack.c.h.b16 %v503
    %v1095 = vunpack.c.l.b16 %v504
    %v1096 = vunpack.c.h.b16 %v504
    %v1097 = vunpack.c.l.b16 %v505
    %v1098 = vunpack.c.h.b16 %v505
    %v1099 = vunpack.c.l.b16 %v506
    %v1100 = vunpack.c.h.b16 %v506
    %v1101 = vunpack.c.l.b16 %v507
    %v1102 = vunpack.c.h.b16 %v507
    %v1103 = vunpack.c.l.b16 %v508
    %v1104 = vunpack.c.h.b16 %v508
    %v1105 = vunpack.c.l.b16 %v509
    %v1106 = vunpack.c.h.b16 %v509
    %v1107 = vunpack.c.l.b16 %v510
    %v1108 = vunpack.c.h.b16 %v510
    %v1109 = vunpack.c.l.b16 %v511
    %v1110 = vunpack.c.h.b16 %v511
    %v1111 = vunpack.c.l.b16 %v512
    %v1112 = vunpack.c.h.b16 %v512
    %v1113 = vunpack.c.l.b16 %v513
    %v1114 = vunpack.c.h.b16 %v513
    %v1115 = vunpack.c.l.b16 %v514
    %v1116 = vunpack.c.h.b16 %v514
    %v1117 = vunpack.c.l.b16 %v515
    %v1118 = vunpack.c.h.b16 %v515
    %v1119 = vunpack.c.l.b16 %v516
    %v1120 = vunpack.c.h.b16 %v516
    %v1121 = vunpack.c.l.b16 %v517
    %v1122 = vunpack.c.h.b16 %v517
    %v1123 = vunpack.c.l.b16 %v518
    %v1124 = vunpack.c.h.b16 %v518
    %v1125 = vunpack.c.l.b16 %v519
    %v1126 = vunpack.c.h.b16 %v519
    %v1127 = vunpack.c.l.b16 %v520
    %v1128 = vunpack.c.h.b16 %v520
    %v1129 = vunpack.c.l.b16 %v521
    %v1130 = vunpack.c.h.b16 %v521
    %v1131 = vunpack.c.l.b16 %v522
    %v1132 = vunpack.c.h.b16 %v522
    %v1133 = vunpack.c.l.b16 %v523
    %v1134 = vunpack.c.h.b16 %v523
    %v1135 = vunpack.c.l.b16 %v524
    %v1136 = vunpack.c.h.b16 %v524
    %v1137 = vunpack.c.l.b16 %v525
    %v1138 = vunpack.c.h.b16 %v525
    %v1139 = vunpack.c.l.b16 %v526
    %v1140 = vunpack.c.h.b16 %v526
    %v1141 = vunpack.c.l.b16 %v527
    %v1142 = vunpack.c.h.b16 %v527
    %v1143 = vunpack.c.l.b16 %v528
    %v1144 = vunpack.c.h.b16 %v528
    %v1145 = vunpack.c.l.b16 %v529
    %v1146 = vunpack.c.h.b16 %v529
    %v1147 = vunpack.c.l.b16 %v530
    %v1148 = vunpack.c.h.b16 %v530
    %v1149 = vunpack.c.l.b16 %v531
    %v1150 = vunpack.c.h.b16 %v531
    %v1151 = vunpack.c.l.b16 %v532
    %v1152 = vunpack.c.h.b16 %v532
    %v1153 = vunpack.c.l.b16 %v533
    %v1154 = vunpack.c.h.b16 %v533
    %v1155 = vunpack.c.l.b16 %v534
    %v1156 = vunpack.c.h.b16 %v534
    %v1157 = vunpack.c.l.b16 %v535
    %v1158 = vunpack.c.h.b16 %v535
    %v1159 = vunpack.c.l.b16 %v536
    %v1160 = vunpack.c.h.b16 %v536
    %v1161 = vunpack.c.l.b16 %v537
    %v1162 = vunpack.c.h.b16 %v537
    %v1163 = vunpack.c.l.b16 %v538
    %v1164 = vunpack.c.h.b16 %v538
    %v1165 = vunpack.c.l.b16 %v539
    %v1166 = vunpack.c.h.b16 %v539
    %v1167 = vunpack.c.l.b16 %v540
    %v1168 = vunpack.c.h.b16 %v540
    %v1169 = vunpack.c.l.b16 %v541
    %v1170 = vunpack.c.h.b16 %v541
    %v1171 = vunpack.c.l.b16 %v542
    %v1172 = vunpack.c.h.b16 %v542
    %v1173 = vunpack.c.l.b16 %v543
    %v1174 = vunpack.c.h.b16 %v543
    %v1175 = vunpack.c.l.b16 %v544
    %v1176 = vunpack.c.h.b16 %v544
    %v1177 = vunpack.c.l.b16 %v545
    %v1178 = vunpack.c.h.b16 %v545
    %v1179 = vunpack.c.l.b16 %v546
    %v1180 = vunpack.c.h.b16 %v546
    %v1181 = vunpack.c.l.b16 %v547
    %v1182 = vunpack.c.h.b16 %v547
    %v1183 = vunpack.c.l.b16 %v548
    %v1184 = vunpack.c.h.b16 %v548
    %v1185 = vunpack.c.l.b16 %v549
    %v1186 = vunpack.c.h.b16 %v549
    %v1187 = vunpack.c.l.b16 %v550
    %v1188 = vunpack.c.h.b16 %v550
    %v1189 = vunpack.c.l.b16 %v551
    %v1190 = vunpack.c.h.b16 %v551
    %v1191 = vunpack.c.l.b16 %v552
    %v1192 = vunpack.c.h.b16 %v552
    %v1193 = vunpack.c.l.b16 %v553
    %v1194 = vunpack.c.h.b16 %v553
    %v1195 = vunpack.c.l.b16 %v554
    %v1196 = vunpack.c.h.b16 %v554
    %v1197 = vunpack.c.l.b16 %v555
    %v1198 = vunpack.c.h.b16 %v555
    %v1199 = vunpack.c.l.b16 %v556
    %v1200 = vunpack.c.h.b16 %v556
    %v1201 = vunpack.c.l.b16 %v557
    %v1202 = vunpack.c.h.b16 %v557
    %v1203 = vunpack.c.l.b16 %v558
    %v1204 = vunpack.c.h.b16 %v558
    %v1205 = vunpack.c.l.b16 %v559
    %v1206 = vunpack.c.h.b16 %v559
    %v1207 = vunpack.c.l.b16 %v560
    %v1208 = vunpack.c.h.b16 %v560
    %v1209 = vunpack.c.l.b16 %v561
    %v1210 = vunpack.c.h.b16 %v561
    %v1211 = vunpack.c.l.b16 %v562
    %v1212 = vunpack.c.h.b16 %v562
    %v1213 = vunpack.c.l.b16 %v563
    %v1214 = vunpack.c.h.b16 %v563
    %v1215 = vunpack.c.l.b16 %v564
    %v1216 = vunpack.c.h.b16 %v564
    %v1217 = vunpack.c.l.b16 %v565
    %v1218 = vunpack.c.h.b16 %v565
    %v1219 = vunpack.c.l.b16 %v566
    %v1220 = vunpack.c.h.b16 %v566
    %v1221 = vunpack.c.l.b16 %v567
    %v1222 = vunpack.c.h.b16 %v567
    %v1223 = vunpack.c.l.b16 %v568
    %v1224 = vunpack.c.h.b16 %v568
    %v1225 = vunpack.c.l.b16 %v569
    %v1226 = vunpack.c.h.b16 %v569
    %v1227 = vunpack.c.l.b16 %v570
    %v1228 = vunpack.c.h.b16 %v570
    %v1229 = vunpack.c.l.b16 %v571
    %v1230 = vunpack.c.h.b16 %v571
    %v1231 = vunpack.c.l.b16 %v572
    %v1232 = vunpack.c.h.b16 %v572
    %v1233 = vunpack.c.l.b16 %v573
    %v1234 = vunpack.c.h.b16 %v573
    %v1235 = vunpack.c.l.b16 %v574
    %v1236 = vunpack.c.h.b16 %v574
    %v1237 = vunpack.c.l.b16 %v575
    %v1238 = vunpack.c.h.b16 %v575
    %v1239 = vunpack.c.l.b16 %v576
    %v1240 = vunpack.c.h.b16 %v576
    %v1241 = vunpack.c.l.b16 %v577
    %v1242 = vunpack.c.h.b16 %v577
    %v1243 = vunpack.c.l.b16 %v578
    %v1244 = vunpack.c.h.b16 %v578
    %v1245 = vunpack.c.l.b16 %v579
    %v1246 = vunpack.c.h.b16 %v579
    %v1247 = vunpack.c.l.b16 %v580
    %v1248 = vunpack.c.h.b16 %v580
    %v1249 = vunpack.c.l.b16 %v581
    %v1250 = vunpack.c.h.b16 %v581
    %v1251 = vunpack.c.l.b16 %v582
    %v1252 = vunpack.c.h.b16 %v582
    %v1253 = vunpack.c.l.b16 %v583
    %v1254 = vunpack.c.h.b16 %v583
    %v1255 = vunpack.c.l.b16 %v584
    %v1256 = vunpack.c.h.b16 %v584
    %v1257 = vunpack.c.l.b16 %v585
    %v1258 = vunpack.c.h.b16 %v585
    %v1259 = vunpack.c.l.b16 %v586
    %v1260 = vunpack.c.h.b16 %v586
    %v1261 = vunpack.c.l.b16 %v587
    %v1262 = vunpack.c.h.b16 %v587
    %v1263 = vunpack.c.l.b16 %v588
    %v1264 = vunpack.c.h.b16 %v588
    %v1265 = vunpack.c.l.b16 %v589
    %v1266 = vunpack.c.h.b16 %v589
    %v1267 = vunpack.c.l.b16 %v590
    %v1268 = vunpack.c.h.b16 %v590
    %v1269 = vunpack.c.l.b16 %v591
    %v1270 = vunpack.c.h.b16 %v591
    %v1271 = vunpack.c.l.b16 %v592
    %v1272 = vunpack.c.h.b16 %v592
    %v1273 = vunpack.c.l.b16 %v593
    %v1274 = vunpack.c.h.b16 %v593
    %v1275 = vunpack.c.l.b16 %v594
    %v1276 = vunpack.c.h.b16 %v594
    %v1277 = vunpack.c.l.b16 %v595
    %v1278 = vunpack.c.h.b16 %v595
    %v1279 = vunpack.c.l.b16 %v596
    %v1280 = vunpack.c.h.b16 %v596
    %v1281 = vunpack.c.l.b16 %v597
    %v1282 = vunpack.c.h.b16 %v597
    %v1283 = vunpack.c.l.b16 %v598
    %v1284 = vunpack.c.h.b16 %v598
    %v1285 = vunpack.c.l.b16 %v599
    %v1286 = vunpack.c.h.b16 %v599
    %v1287 = vunpack.c.l.b16 %v600
    %v1288 = vunpack.c.h.b16 %v600
    %v1289 = vunpack.c.l.b16 %v601
    %v1290 = vunpack.c.h.b16 %v601
    %v1291 = vunpack.c.l.b16 %v602
    %v1292 = vunpack.c.h.b16 %v602
    %v1293 = vunpack.c.l.b16 %v603
    %v1294 = vunpack.c.h.b16 %v603
    %v1295 = vunpack.c.l.b16 %v604
    %v1296 = vunpack.c.h.b16 %v604
    %v1297 = vunpack.c.l.b16 %v605
    %v1298 = vunpack.c.h.b16 %v605
    %v1299 = vunpack.c.l.b16 %v606
    %v1300 = vunpack.c.h.b16 %v606
    %v1301 = vunpack.c.l.b16 %v607
    %v1302 = vunpack.c.h.b16 %v607
    %v1303 = vunpack.c.l.b16 %v608
    %v1304 = vunpack.c.h.b16 %v608
    %v1305 = vunpack.c.l.b16 %v609
    %v1306 = vunpack.c.h.b16 %v609
    %v1307 = vunpack.c.l.b16 %v610
    %v1308 = vunpack.c.h.b16 %v610
    %v1309 = vunpack.c.l.b16 %v611
    %v1310 = vunpack.c.h.b16 %v611
    %v1311 = vunpack.c.l.b16 %v612
    %v1312 = vunpack.c.h.b16 %v612
    %v1313 = vunpack.c.l.b16 %v613
    %v1314 = vunpack.c.h.b16 %v613
    %v1315 = vunpack.c.l.b16 %v614
    %v1316 = vunpack.c.h.b16 %v614
    %v1317 = vunpack.c.l.b16 %v615
    %v1318 = vunpack.c.h.b16 %v615
    %v1319 = vunpack.c.l.b16 %v616
    %v1320 = vunpack.c.h.b16 %v616
    %v1321 = vunpack.c.l.b16 %v617
    %v1322 = vunpack.c.h.b16 %v617
    %v1323 = vunpack.c.l.b16 %v618
    %v1324 = vunpack.c.h.b16 %v618
    %v1325 = vunpack.c.l.b16 %v619
    %v1326 = vunpack.c.h.b16 %v619
    %v1327 = vunpack.c.l.b16 %v620
    %v1328 = vunpack.c.h.b16 %v620
    %v1329 = vunpack.c.l.b16 %v621
    %v1330 = vunpack.c.h.b16 %v621
    %v1331 = vunpack.c.l.b16 %v622
    %v1332 = vunpack.c.h.b16 %v622
    %v1333 = vunpack.c.l.b16 %v623
    %v1334 = vunpack.c.h.b16 %v623
    %v1335 = vunpack.c.l.b16 %v624
    %v1336 = vunpack.c.h.b16 %v624
    %v1337 = vunpack.c.l.b16 %v625
    %v1338 = vunpack.c.h.b16 %v625
    %v1339 = vunpack.c.l.b16 %v626
    %v1340 = vunpack.c.h.b16 %v626
    %v1341 = vunpack.c.l.b16 %v627
    %v1342 = vunpack.c.h.b16 %v627
    %v1343 = vunpack.c.l.b16 %v628
    %v1344 = vunpack.c.h.b16 %v628
    %v1345 = vunpack.c.l.b16 %v629
    %v1346 = vunpack.c.h.b16 %v629
    %v1347 = vunpack.c.l.b16 %v630
    %v1348 = vunpack.c.h.b16 %v630
    %v1349 = vunpack.c.l.b16 %v631
    %v1350 = vunpack.c.h.b16 %v631
    %v1351 = vunpack.c.l.b16 %v632
    %v1352 = vunpack.c.h.b16 %v632
    %v1353 = vunpack.c.l.b16 %v633
    %v1354 = vunpack.c.h.b16 %v633
    %v1355 = vunpack.c.l.b16 %v634
    %v1356 = vunpack.c.h.b16 %v634
    %v1357 = vunpack.c.l.b16 %v635
    %v1358 = vunpack.c.h.b16 %v635
    %v1359 = vunpack.c.l.b16 %v636
    %v1360 = vunpack.c.h.b16 %v636
    %v1361 = vunpack.c.l.b16 %v637
    %v1362 = vunpack.c.h.b16 %v637
    %v1363 = vunpack.c.l.b16 %v638
    %v1364 = vunpack.c.h.b16 %v638
    %v1365 = vunpack.c.l.b16 %v639
    %v1366 = vunpack.c.h.b16 %v639
    %v1367 = vunpack.c.l.b16 %v640
    %v1368 = vunpack.c.h.b16 %v640
    %v1369 = vunpack.c.l.b16 %v641
    %v1370 = vunpack.c.h.b16 %v641
    %v1371 = vunpack.c.l.b16 %v642
    %v1372 = vunpack.c.h.b16 %v642
    %v1373 = vunpack.c.l.b16 %v643
    %v1374 = vunpack.c.h.b16 %v643
    %v1375 = vunpack.c.l.b16 %v644
    %v1376 = vunpack.c.h.b16 %v644
    %v1377 = vunpack.c.l.b16 %v645
    %v1378 = vunpack.c.h.b16 %v645
    %v1379 = vunpack.c.l.b16 %v646
    %v1380 = vunpack.c.h.b16 %v646
    %v1381 = vunpack.c.l.b16 %v647
    %v1382 = vunpack.c.h.b16 %v647
    %v1383 = vunpack.c.l.b16 %v648
    %v1384 = vunpack.c.h.b16 %v648
    %v1385 = vunpack.c.l.b16 %v649
    %v1386 = vunpack.c.h.b16 %v649
    %v1387 = vunpack.c.l.b16 %v650
    %v1388 = vunpack.c.h.b16 %v650
    %v1389 = vunpack.c.l.b16 %v651
    %v1390 = vunpack.c.h.b16 %v651
    %v1391 = vunpack.c.l.b16 %v652
    %v1392 = vunpack.c.h.b16 %v652
    %v1393 = vunpack.c.l.b16 %v653
    %v1394 = vunpack.c.h.b16 %v653
    %v1395 = vunpack.c.l.b16 %v654
    %v1396 = vunpack.c.h.b16 %v654
    %v1397 = vunpack.c.l.b16 %v655
    %v1398 = vunpack.c.h.b16 %v655
    %v1399 = vunpack.c.l.b16 %v656
    %v1400 = vunpack.c.h.b16 %v656
    %v1401 = vunpack.c.l.b16 %v657
    %v1402 = vunpack.c.h.b16 %v657
    %v1403 = vunpack.c.l.b16 %v658
    %v1404 = vunpack.c.h.b16 %v658
    %v1405 = vunpack.c.l.b16 %v659
    %v1406 = vunpack.c.h.b16 %v659
    %v1407 = vunpack.c.l.b16 %v660
    %v1408 = vunpack.c.h.b16 %v660
    %v1409 = vunpack.c.l.b16 %v661
    %v1410 = vunpack.c.h.b16 %v661
    %v1411 = vunpack.c.l.b16 %v662
    %v1412 = vunpack.c.h.b16 %v662
    %v1413 = vunpack.c.l.b16 %v663
    %v1414 = vunpack.c.h.b16 %v663
    %v1415 = vunpack.c.l.b16 %v664
    %v1416 = vunpack.c.h.b16 %v664
    %v1417 = vunpack.c.l.b16 %v665
    %v1418 = vunpack.c.h.b16 %v665
    %v1419 = vunpack.c.l.b16 %v666
    %v1420 = vunpack.c.h.b16 %v666
    %v1421 = vunpack.c.l.b16 %v667
    %v1422 = vunpack.c.h.b16 %v667
    %v1423 = vunpack.c.l.b16 %v668
    %v1424 = vunpack.c.h.b16 %v668
    %v1425 = vunpack.c.l.b16 %v669
    %v1426 = vunpack.c.h.b16 %v669
    %v1427 = vunpack.c.l.b16 %v670
    %v1428 = vunpack.c.h.b16 %v670
    %v1429 = vunpack.c.l.b16 %v671
    %v1430 = vunpack.c.h.b16 %v671
    %v1431 = vunpack.c.l.b16 %v672
    %v1432 = vunpack.c.h.b16 %v672
    %v1433 = vunpack.c.l.b16 %v673
    %v1434 = vunpack.c.h.b16 %v673
    %v1435 = vunpack.c.l.b16 %v674
    %v1436 = vunpack.c.h.b16 %v674
    %v1437 = vunpack.c.l.b16 %v675
    %v1438 = vunpack.c.h.b16 %v675
    %v1439 = vunpack.c.l.b16 %v676
    %v1440 = vunpack.c.h.b16 %v676
    %v1441 = vunpack.c.l.b16 %v677
    %v1442 = vunpack.c.h.b16 %v677
    %v1443 = vunpack.c.l.b16 %v678
    %v1444 = vunpack.c.h.b16 %v678
    %v1445 = vunpack.c.l.b16 %v679
    %v1446 = vunpack.c.h.b16 %v679
    %v1447 = vunpack.c.l.b16 %v680
    %v1448 = vunpack.c.h.b16 %v680
    %v1449 = vunpack.c.l.b16 %v681
    %v1450 = vunpack.c.h.b16 %v681
    %v1451 = vunpack.c.l.b16 %v682
    %v1452 = vunpack.c.h.b16 %v682
    %v1453 = vunpack.c.l.b16 %v683
    %v1454 = vunpack.c.h.b16 %v683
    %v1455 = vunpack.c.l.b16 %v684
    %v1456 = vunpack.c.h.b16 %v684
    %v1457 = vunpack.c.l.b16 %v685
    %v1458 = vunpack.c.h.b16 %v685
    %v1459 = vunpack.c.l.b16 %v686
    %v1460 = vunpack.c.h.b16 %v686
    %v1461 = vunpack.c.l.b16 %v687
    %v1462 = vunpack.c.h.b16 %v687
    %v1463 = vunpack.c.l.b16 %v688
    %v1464 = vunpack.c.h.b16 %v688
    %v1465 = vunpack.c.l.b16 %v689
    %v1466 = vunpack.c.h.b16 %v689
    %v1467 = vunpack.c.l.b16 %v690
    %v1468 = vunpack.c.h.b16 %v690
    %v1469 = vunpack.c.l.b16 %v691
    %v1470 = vunpack.c.h.b16 %v691
    %v1471 = vunpack.c.l.b16 %v692
    %v1472 = vunpack.c.h.b16 %v692
    %v1473 = vunpack.c.l.b16 %v693
    %v1474 = vunpack.c.h.b16 %v693
    %v1475 = vunpack.c.l.b16 %v694
    %v1476 = vunpack.c.h.b16 %v694
    %v1477 = vunpack.c.l.b16 %v695
    %v1478 = vunpack.c.h.b16 %v695
    %v1479 = vunpack.c.l.b16 %v696
    %v1480 = vunpack.c.h.b16 %v696
    %v1481 = vunpack.c.l.b16 %v697
    %v1482 = vunpack.c.h.b16 %v697
    %v1483 = vunpack.c.l.b16 %v698
    %v1484 = vunpack.c.h.b16 %v698
    %v1485 = vunpack.c.l.b16 %v699
    %v1486 = vunpack.c.h.b16 %v699
    %v1487 = vunpack.c.l.b16 %v700
    %v1488 = vunpack.c.h.b16 %v700
    %v1489 = vunpack.c.l.b16 %v701
    %v1490 = vunpack.c.h.b16 %v701
    %v1491 = vunpack.c.l.b16 %v702
    %v1492 = vunpack.c.h.b16 %v702
    %v1493 = vunpack.c.l.b16 %v703
    %v1494 = vunpack.c.h.b16 %v703
    %v1495 = vunpack.c.l.b16 %v704
    %v1496 = vunpack.c.h.b16 %v704
    %v1497 = vunpack.c.l.b16 %v705
    %v1498 = vunpack.c.h.b16 %v705
    %v1499 = vunpack.c.l.b16 %v706
    %v1500 = vunpack.c.h.b16 %v706
    %v1501 = vunpack.c.l.b16 %v707
    %v1502 = vunpack.c.h.b16 %v707
    %v1503 = vunpack.c.l.b16 %v708
    %v1504 = vunpack.c.h.b16 %v708
    %v1505 = vunpack.c.l.b16 %v709
    %v1506 = vunpack.c.h.b16 %v709
    %v1507 = vunpack.c.l.b16 %v710
    %v1508 = vunpack.c.h.b16 %v710
    %v1509 = vunpack.c.l.b16 %v711
    %v1510 = vunpack.c.h.b16 %v711
    %v1511 = vunpack.c.l.b16 %v712
    %v1512 = vunpack.c.h.b16 %v712
    %v1513 = vunpack.c.l.b16 %v713
    %v1514 = vunpack.c.h.b16 %v713
    %v1515 = vunpack.c.l.b16 %v714
    %v1516 = vunpack.c.h.b16 %v714
    %v1517 = vunpack.c.l.b16 %v715
    %v1518 = vunpack.c.h.b16 %v715
    %v1519 = vunpack.c.l.b16 %v716
    %v1520 = vunpack.c.h.b16 %v716
    %v1521 = vunpack.c.l.b16 %v717
    %v1522 = vunpack.c.h.b16 %v717
    %v1523 = vunpack.c.l.b16 %v718
    %v1524 = vunpack.c.h.b16 %v718
    %v1525 = vunpack.c.l.b16 %v719
    %v1526 = vunpack.c.h.b16 %v719
    %v1527 = vunpack.c.l.b16 %v720
    %v1528 = vunpack.c.h.b16 %v720
    %v1529 = vunpack.c.l.b16 %v721
    %v1530 = vunpack.c.h.b16 %v721
    %v1531 = vunpack.c.l.b16 %v722
    %v1532 = vunpack.c.h.b16 %v722
    %v1533 = vpack.c.b16 %v1029, %v1021
    %v1534 = vpack.c.b16 %v1030, %v1022
    %v1535 = vpack.c.b16 %v1031, %v1023
    %v1536 = vpack.c.b16 %v1032, %v1024
    %v1537 = vpack.c.b16 %v1033, %v1025
    %v1538 = vpack.c.b16 %v1034, %v1026
    %v1539 = vpack.c.b16 %v1035, %v1027
    %v1540 = vpack.c.b16 %v1036, %v1028
    %v1541 = vpack.c.b16 %v1045, %v1037
    %v1542 = vpack.c.b16 %v1046, %v1038
    %v1543 = vpack.c.b16 %v1047, %v1039
    %v1544 = vpack.c.b16 %v1048, %v1040
    %v1545 = vpack.c.b16 %v1049, %v1041
    %v1546 = vpack.c.b16 %v1050, %v1042
    %v1547 = vpack.c.b16 %v1051, %v1043
    %v1548 = vpack.c.b16 %v1052, %v1044
    %v1549 = vpack.c.b16 %v1061, %v1053
    %v1550 = vpack.c.b16 %v1062, %v1054
    %v1551 = vpack.c.b16 %v1063, %v1055
    %v1552 = vpack.c.b16 %v1064, %v1056
    %v1553 = vpack.c.b16 %v1065, %v1057
    %v1554 = vpack.c.b16 %v1066, %v1058
    %v1555 = vpack.c.b16 %v1067, %v1059
    %v1556 = vpack.c.b16 %v1068, %v1060
    %v1557 = vpack.c.b16 %v1077, %v1069
    %v1558 = vpack.c.b16 %v1078, %v1070
    %v1559 = vpack.c.b16 %v1079, %v1071
    %v1560 = vpack.c.b16 %v1080, %v1072
    %v1561 = vpack.c.b16 %v1081, %v1073
    %v1562 = vpack.c.b16 %v1082, %v1074
    %v1563 = vpack.c.b16 %v1083, %v1075
    %v1564 = vpack.c.b16 %v1084, %v1076
    %v1565 = vpack.c.b16 %v1093, %v1085
    %v1566 = vpack.c.b16 %v1094, %v1086
    %v1567 = vpack.c.b16 %v1095, %v1087
    %v1568 = vpack.c.b16 %v1096, %v1088
    %v1569 = vpack.c.b16 %v1097, %v1089
    %v1570 = vpack.c.b16 %v1098, %v1090
    %v1571 = vpack.c.b16 %v1099, %v1091
    %v1572 = vpack.c.b16 %v1100, %v1092
    %v1573 = vpack.c.b16 %v1109, %v1101
    %v1574 = vpack.c.b16 %v1110, %v1102
    %v1575 = vpack.c.b16 %v1111, %v1103
    %v1576 = vpack.c.b16 %v1112, %v1104
    %v1577 = vpack.c.b16 %v1113, %v1105
    %v1578 = vpack.c.b16 %v1114, %v1106
    %v1579 = vpack.c.b16 %v1115, %v1107
    %v1580 = vpack.c.b16 %v1116, %v1108
    %v1581 = vpack.c.b16 %v1125, %v1117
    %v1582 = vpack.c.b16 %v1126, %v1118
    %v1583 = vpack.c.b16 %v1127, %v1119
    %v1584 = vpack.c.b16 %v1128, %v1120
    %v1585 = vpack.c.b16 %v1129, %v1121
    %v1586 = vpack.c.b16 %v1130, %v1122
    %v1587 = vpack.c.b16 %v1131, %v1123
    %v1588 = vpack.c.b16 %v1132, %v1124
    %v1589 = vpack.c.b16 %v1141, %v1133
    %v1590 = vpack.c.b16 %v1142, %v1134
    %v1591 = vpack.c.b16 %v1143, %v1135
    %v1592 = vpack.c.b16 %v1144, %v1136
    %v1593 = vpack.c.b16 %v1145, %v1137
    %v1594 = vpack.c.b16 %v1146, %v1138
    %v1595 = vpack.c.b16 %v1147, %v1139
    %v1596 = vpack.c.b16 %v1148, %v1140
    %v1597 = vpack.c.b16 %v1157, %v1149
    %v1598 = vpack.c.b16 %v1158, %v1150
    %v1599 = vpack.c.b16 %v1159, %v1151
    %v1600 = vpack.c.b16 %v1160, %v1152
    %v1601 = vpack.c.b16 %v1161, %v1153
    %v1602 = vpack.c.b16 %v1162, %v1154
    %v1603 = vpack.c.b16 %v1163, %v1155
    %v1604 = vpack.c.b16 %v1164, %v1156
    %v1605 = vpack.c.b16 %v1173, %v1165
    %v1606 = vpack.c.b16 %v1174, %v1166
    %v1607 = vpack.c.b16 %v1175, %v1167
    %v1608 = vpack.c.b16 %v1176, %v1168
    %v1609 = vpack.c.b16 %v1177, %v1169
    %v1610 = vpack.c.b16 %v1178, %v1170
    %v1611 = vpack.c.b16 %v1179, %v1171
    %v1612 = vpack.c.b16 %v1180, %v1172
    %v1613 = vpack.c.b16 %v1189, %v1181
    %v1614 = vpack.c.b16 %v1190, %v1182
    %v1615 = vpack.c.b16 %v1191, %v1183
    %v1616 = vpack.c.b16 %v1192, %v1184
    %v1617 = vpack.c.b16 %v1193, %v1185
    %v1618 = vpack.c.b16 %v1194, %v1186
    %v1619 = vpack.c.b16 %v1195, %v1187
    %v1620 = vpack.c.b16 %v1196, %v1188
    %v1621 = vpack.c.b16 %v1205, %v1197
    %v1622 = vpack.c.b16 %v1206, %v1198
    %v1623 = vpack.c.b16 %v1207, %v1199
    %v1624 = vpack.c.b16 %v1208, %v1200
    %v1625 = vpack.c.b16 %v1209, %v1201
    %v1626 = vpack.c.b16 %v1210, %v1202
    %v1627 = vpack.c.b16 %v1211, %v1203
    %v1628 = vpack.c.b16 %v1212, %v1204
    %v1629 = vpack.c.b16 %v1221, %v1213
    %v1630 = vpack.c.b16 %v1222, %v1214
    %v1631 = vpack.c.b16 %v1223, %v1215
    %v1632 = vpack.c.b16 %v1224, %v1216
    %v1633 = vpack.c.b16 %v1225, %v1217
    %v1634 = vpack.c.b16 %v1226, %v1218
    %v1635 = vpack.c.b16 %v1227, %v1219
    %v1636 = vpack.c.b16 %v1228, %v1220
    %v1637 = vpack.c.b16 %v1237, %v1229
    %v1638 = vpack.c.b16 %v1238, %v1230
    %v1639 = vpack.c.b16 %v1239, %v1231
    %v1640 = vpack.c.b16 %v1240, %v1232
    %v1641 = vpack.c.b16 %v1241, %v1233
    %v1642 = vpack.c.b16 %v1242, %v1234
    %v1643 = vpack.c.b16 %v1243, %v1235
    %v1644 = vpack.c.b16 %v1244, %v1236
    %v1645 = vpack.c.b16 %v1253, %v1245
    %v1646 = vpack.c.b16 %v1254, %v1246
    %v1647 = vpack.c.b16 %v1255, %v1247
    %v1648 = vpack.c.b16 %v1256, %v1248
    %v1649 = vpack.c.b16 %v1257, %v1249
    %v1650 = vpack.c.b16 %v1258, %v1250
    %v1651 = vpack.c.b16 %v1259, %v1251
    %v1652 = vpack.c.b16 %v1260, %v1252
    %v1653 = vpack.c.b16 %v1269, %v1261
    %v1654 = vpack.c.b16 %v1270, %v1262
    %v1655 = vpack.c.b16 %v1271, %v1263
    %v1656 = vpack.c.b16 %v1272, %v1264
    %v1657 = vpack.c.b16 %v1273, %v1265
    %v1658 = vpack.c.b16 %v1274, %v1266
    %v1659 = vpack.c.b16 %v1275, %v1267
    %v1660 = vpack.c.b16 %v1276, %v1268
    %v1661 = vpack.c.b16 %v1285, %v1277
    %v1662 = vpack.c.b16 %v1286, %v1278
    %v1663 = vpack.c.b16 %v1287, %v1279
    %v1664 = vpack.c.b16 %v1288, %v1280
    %v1665 = vpack.c.b16 %v1289, %v1281
    %v1666 = vpack.c.b16 %v1290, %v1282
    %v1667 = vpack.c.b16 %v1291, %v1283
    %v1668 = vpack.c.b16 %v1292, %v1284
    %v1669 = vpack.c.b16 %v1301, %v1293
    %v1670 = vpack.c.b16 %v1302, %v1294
    %v1671 = vpack.c.b16 %v1303, %v1295
    %v1672 = vpack.c.b16 %v1304, %v1296
    %v1673 = vpack.c.b16 %v1305, %v1297
    %v1674 = vpack.c.b16 %v1306, %v1298
    %v1675 = vpack.c.b16 %v1307, %v1299
    %v1676 = vpack.c.b16 %v1308, %v1300
    %v1677 = vpack.c.b16 %v1317, %v1309
    %v1678 = vpack.c.b16 %v1318, %v1310
    %v1679 = vpack.c.b16 %v1319, %v1311
    %v1680 = vpack.c.b16 %v1320, %v1312
    %v1681 = vpack.c.b16 %v1321, %v1313
    %v1682 = vpack.c.b16 %v1322, %v1314
    %v1683 = vpack.c.b16 %v1323, %v1315
    %v1684 = vpack.c.b16 %v1324, %v1316
    %v1685 = vpack.c.b16 %v1333, %v1325
    %v1686 = vpack.c.b16 %v1334, %v1326
    %v1687 = vpack.c.b16 %v1335, %v1327
    %v1688 = vpack.c.b16 %v1336, %v1328
    %v1689 = vpack.c.b16 %v1337, %v1329
    %v1690 = vpack.c.b16 %v1338, %v1330
    %v1691 = vpack.c.b16 %v1339, %v1331
    %v1692 = vpack.c.b16 %v1340, %v1332
    %v1693 = vpack.c.b16 %v1349, %v1341
    %v1694 = vpack.c.b16 %v1350, %v1342
    %v1695 = vpack.c.b16 %v1351, %v1343
    %v1696 = vpack.c.b16 %v1352, %v1344
    %v1697 = vpack.c.b16 %v1353, %v1345
    %v1698 = vpack.c.b16 %v1354, %v1346
    %v1699 = vpack.c.b16 %v1355, %v1347
    %v1700 = vpack.c.b16 %v1356, %v1348
    %v1701 = vpack.c.b16 %v1365, %v1357
    %v1702 = vpack.c.b16 %v1366, %v1358
    %v1703 = vpack.c.b16 %v1367, %v1359
    %v1704 = vpack.c.b16 %v1368, %v1360
    %v1705 = vpack.c.b16 %v1369, %v1361
    %v1706 = vpack.c.b16 %v1370, %v1362
    %v1707 = vpack.c.b16 %v1371, %v1363
    %v1708 = vpack.c.b16 %v1372, %v1364
    %v1709 = vpack.c.b16 %v1381, %v1373
    %v1710 = vpack.c.b16 %v1382, %v1374
    %v1711 = vpack.c.b16 %v1383, %v1375
    %v1712 = vpack.c.b16 %v1384, %v1376
    %v1713 = vpack.c.b16 %v1385, %v1377
    %v1714 = vpack.c.b16 %v1386, %v1378
    %v1715 = vpack.c.b16 %v1387, %v1379
    %v1716 = vpack.c.b16 %v1388, %v1380
    %v1717 = vpack.c.b16 %v1397, %v1389
    %v1718 = vpack.c.b16 %v1398, %v1390
    %v1719 = vpack.c.b16 %v1399, %v1391
    %v1720 = vpack.c.b16 %v1400, %v1392
    %v1721 = vpack.c.b16 %v1401, %v1393
    %v1722 = vpack.c.b16 %v1402, %v1394
    %v1723 = vpack.c.b16 %v1403, %v1395
    %v1724 = vpack.c.b16 %v1404, %v1396
    %v1725 = vpack.c.b16 %v1413, %v1405
    %v1726 = vpack.c.b16 %v1414, %v1406
    %v1727 = vpack.c.b16 %v1415, %v1407
    %v1728 = vpack.c.b16 %v1416, %v1408
    %v1729 = vpack.c.b16 %v1417, %v1409
    %v1730 = vpack.c.b16 %v1418, %v1410
    %v1731 = vpack.c.b16 %v1419, %v1411
    %v1732 = vpack.c.b16 %v1420, %v1412
    %v1733 = vpack.c.b16 %v1429, %v1421
    %v1734 = vpack.c.b16 %v1430, %v1422
    %v1735 = vpack.c.b16 %v1431, %v1423
    %v1736 = vpack.c.b16 %v1432, %v1424
    %v1737 = vpack.c.b16 %v1433, %v1425
    %v1738 = vpack.c.b16 %v1434, %v1426
    %v1739 = vpack.c.b16 %v1435, %v1427
    %v1740 = vpack.c.b16 %v1436, %v1428
    %v1741 = vpack.c.b16 %v1445, %v1437
    %v1742 = vpack.c.b16 %v1446, %v1438
    %v1743 = vpack.c.b16 %v1447, %v1439
    %v1744 = vpack.c.b16 %v1448, %v1440
    %v1745 = vpack.c.b16 %v1449, %v1441
    %v1746 = vpack.c.b16 %v1450, %v1442
    %v1747 = vpack.c.b16 %v1451, %v1443
    %v1748 = vpack.c.b16 %v1452, %v1444
    %v1749 = vpack.c.b16 %v1461, %v1453
    %v1750 = vpack.c.b16 %v1462, %v1454
    %v1751 = vpack.c.b16 %v1463, %v1455
    %v1752 = vpack.c.b16 %v1464, %v1456
    %v1753 = vpack.c.b16 %v1465, %v1457
    %v1754 = vpack.c.b16 %v1466, %v1458
    %v1755 = vpack.c.b16 %v1467, %v1459
    %v1756 = vpack.c.b16 %v1468, %v1460
    %v1757 = vpack.c.b16 %v1477, %v1469
    %v1758 = vpack.c.b16 %v1478, %v1470
    %v1759 = vpack.c.b16 %v1479, %v1471
    %v1760 = vpack.c.b16 %v1480, %v1472
    %v1761 = vpack.c.b16 %v1481, %v1473
    %v1762 = vpack.c.b16 %v1482, %v1474
    %v1763 = vpack.c.b16 %v1483, %v1475
    %v1764 = vpack.c.b16 %v1484, %v1476
    %v1765 = vpack.c.b16 %v1493, %v1485
    %v1766 = vpack.c.b16 %v1494, %v1486
    %v1767 = vpack.c.b16 %v1495, %v1487
    %v1768 = vpack.c.b16 %v1496, %v1488
    %v1769 = vpack.c.b16 %v1497, %v1489
    %v1770 = vpack.c.b16 %v1498, %v1490
    %v1771 = vpack.c.b16 %v1499, %v1491
    %v1772 = vpack.c.b16 %v1500, %v1492
    %v1773 = vpack.c.b16 %v1509, %v1501
    %v1774 = vpack.c.b16 %v1510, %v1502
    %v1775 = vpack.c.b16 %v1511, %v1503
    %v1776 = vpack.c.b16 %v1512, %v1504
    %v1777 = vpack.c.b16 %v1513, %v1505
    %v1778 = vpack.c.b16 %v1514, %v1506
    %v1779 = vpack.c.b16 %v1515, %v1507
    %v1780 = vpack.c.b16 %v1516, %v1508
    %v1781 = vpack.c.b16 %v1525, %v1517
    %v1782 = vpack.c.b16 %v1526, %v1518
    %v1783 = vpack.c.b16 %v1527, %v1519
    %v1784 = vpack.c.b16 %v1528, %v1520
    %v1785 = vpack.c.b16 %v1529, %v1521
    %v1786 = vpack.c.b16 %v1530, %v1522
    %v1787 = vpack.c.b16 %v1531, %v1523
    %v1788 = vpack.c.b16 %v1532, %v1524
    %2045 = vmatprep.subr.bf16.mxu0 %v1534
    %2046 = vmatpush1.bf16.msra.mxu0 %v1533
    %2047 = vmatprep.subr.bf16.mxu0 %v1542
    %2048 = vmatpush1.bf16.msra.mxu0 %v1541
    %2049 = vmatprep.subr.bf16.mxu0 %v1550
    %2050 = vmatpush1.bf16.msra.mxu0 %v1549
    %2051 = vmatprep.subr.bf16.mxu0 %v1558
    %2052 = vmatpush1.bf16.msra.mxu0 %v1557
    %2053 = vmatprep.subr.bf16.mxu0 %v1566
    %2054 = vmatpush1.bf16.msra.mxu0 %v1565
    %2055 = vmatprep.subr.bf16.mxu0 %v1574
    %2056 = vmatpush1.bf16.msra.mxu0 %v1573
    %2057 = vmatprep.subr.bf16.mxu0 %v1582
    %2058 = vmatpush1.bf16.msra.mxu0 %v1581
    %2059 = vmatprep.subr.bf16.mxu0 %v1590
    %2060 = vmatpush1.bf16.msra.mxu0 %v1589
    %2061 = vmatprep.subr.bf16.mxu0 %v1598
    %2062 = vmatpush1.bf16.msra.mxu0 %v1597
    %2063 = vmatprep.subr.bf16.mxu0 %v1606
    %2064 = vmatpush1.bf16.msra.mxu0 %v1605
    %2065 = vmatprep.subr.bf16.mxu0 %v1614
    %2066 = vmatpush1.bf16.msra.mxu0 %v1613
    %2067 = vmatprep.subr.bf16.mxu0 %v1622
    %2068 = vmatpush1.bf16.msra.mxu0 %v1621
    %2069 = vmatprep.subr.bf16.mxu0 %v1630
    %2070 = vmatpush1.bf16.msra.mxu0 %v1629
    %2071 = vmatprep.subr.bf16.mxu0 %v1638
    %2072 = vmatpush1.bf16.msra.mxu0 %v1637
    %2073 = vmatprep.subr.bf16.mxu0 %v1646
    %2074 = vmatpush1.bf16.msra.mxu0 %v1645
    %2075 = vmatprep.subr.bf16.mxu0 %v1654
    %2076 = vmatpush1.bf16.msra.mxu0 %v1653
    %2077 = vmatprep.mubr.bf16.mxu0 %v464
    %2078 = vmatmul.mubr.bf16.gmra.mrb[0].mxu0 %v463
    %v2079 = vpop.f32.mrb[0].mxu0
    %v2080 = vadd.f32 %v728, %v2079
    %v2081 = vpop.f32.mrb[0].mxu0
    %v2082 = vadd.f32 %v732, %v2081
    %v2083 = vpop.f32.mrb[0].mxu0
    %v2084 = vpop.f32.mrb[0].mxu0
    %2085 = vdwg.mxu0
    %2086 = vmatprep.subr.bf16.mxu0 %v1662
    %2087 = vmatpush1.bf16.msra.mxu0 %v1661
    %2088 = vmatprep.subr.bf16.mxu0 %v1670
    %2089 = vmatpush1.bf16.msra.mxu0 %v1669
    %2090 = vmatprep.subr.bf16.mxu0 %v1678
    %2091 = vmatpush1.bf16.msra.mxu0 %v1677
    %2092 = vmatprep.subr.bf16.mxu0 %v1686
    %2093 = vmatpush1.bf16.msra.mxu0 %v1685
    %2094 = vmatprep.subr.bf16.mxu0 %v1694
    %2095 = vmatpush1.bf16.msra.mxu0 %v1693
    %2096 = vmatprep.subr.bf16.mxu0 %v1702
    %2097 = vmatpush1.bf16.msra.mxu0 %v1701
    %2098 = vmatprep.subr.bf16.mxu0 %v1710
    %2099 = vmatpush1.bf16.msra.mxu0 %v1709
    %2100 = vmatprep.subr.bf16.mxu0 %v1718
    %2101 = vmatpush1.bf16.msra.mxu0 %v1717
    %2102 = vmatprep.subr.bf16.mxu0 %v1726
    %2103 = vmatpush1.bf16.msra.mxu0 %v1725
    %2104 = vmatprep.subr.bf16.mxu0 %v1734
    %2105 = vmatpush1.bf16.msra.mxu0 %v1733
    %2106 = vmatprep.subr.bf16.mxu0 %v1742
    %2107 = vmatpush1.bf16.msra.mxu0 %v1741
    %2108 = vmatprep.subr.bf16.mxu0 %v1750
    %2109 = vmatpush1.bf16.msra.mxu0 %v1749
    %2110 = vmatprep.subr.bf16.mxu0 %v1758
    %2111 = vmatpush1.bf16.msra.mxu0 %v1757
    %2112 = vmatprep.subr.bf16.mxu0 %v1766
    %2113 = vmatpush1.bf16.msra.mxu0 %v1765
    %2114 = vmatprep.subr.bf16.mxu0 %v1774
    %2115 = vmatpush1.bf16.msra.mxu0 %v1773
    %2116 = vmatprep.subr.bf16.mxu0 %v1782
    %2117 = vmatpush1.bf16.msra.mxu0 %v1781
    %2118 = vmatprep.mubr.bf16.mxu0 %v466
    %2119 = vmatmul.mubr.bf16.gmra.mrb[0].mxu0 %v465
    %v2120 = vpop.f32.mrb[0].mxu0
    %v2121 = vadd.f32 %v2080, %v2120
    %v2122 = vpop.f32.mrb[0].mxu0
    %v2123 = vadd.f32 %v2082, %v2122
    %v2124 = vpop.f32.mrb[0].mxu0
    %v2125 = vpop.f32.mrb[0].mxu0
    %2126 = vdwg.mxu0
    %2127 = vmatprep.subr.bf16.mxu0 %v1536
    %2128 = vmatpush1.bf16.msra.mxu0 %v1535
    %2129 = vmatprep.subr.bf16.mxu0 %v1544
    %2130 = vmatpush1.bf16.msra.mxu0 %v1543
    %2131 = vmatprep.subr.bf16.mxu0 %v1552
    %2132 = vmatpush1.bf16.msra.mxu0 %v1551
    %2133 = vmatprep.subr.bf16.mxu0 %v1560
    %2134 = vmatpush1.bf16.msra.mxu0 %v1559
    %2135 = vmatprep.subr.bf16.mxu0 %v1568
    %2136 = vmatpush1.bf16.msra.mxu0 %v1567
    %2137 = vmatprep.subr.bf16.mxu0 %v1576
    %2138 = vmatpush1.bf16.msra.mxu0 %v1575
    %2139 = vmatprep.subr.bf16.mxu0 %v1584
    %2140 = vmatpush1.bf16.msra.mxu0 %v1583
    %2141 = vmatprep.subr.bf16.mxu0 %v1592
    %2142 = vmatpush1.bf16.msra.mxu0 %v1591
    %2143 = vmatprep.subr.bf16.mxu0 %v1600
    %2144 = vmatpush1.bf16.msra.mxu0 %v1599
    %2145 = vmatprep.subr.bf16.mxu0 %v1608
    %2146 = vmatpush1.bf16.msra.mxu0 %v1607
    %2147 = vmatprep.subr.bf16.mxu0 %v1616
    %2148 = vmatpush1.bf16.msra.mxu0 %v1615
    %2149 = vmatprep.subr.bf16.mxu0 %v1624
    %2150 = vmatpush1.bf16.msra.mxu0 %v1623
    %2151 = vmatprep.subr.bf16.mxu0 %v1632
    %2152 = vmatpush1.bf16.msra.mxu0 %v1631
    %2153 = vmatprep.subr.bf16.mxu0 %v1640
    %2154 = vmatpush1.bf16.msra.mxu0 %v1639
    %2155 = vmatprep.subr.bf16.mxu0 %v1648
    %2156 = vmatpush1.bf16.msra.mxu0 %v1647
    %2157 = vmatprep.subr.bf16.mxu0 %v1656
    %2158 = vmatpush1.bf16.msra.mxu0 %v1655
    %2159 = vmatprep.mubr.bf16.mxu0 %v464
    %2160 = vmatmul.mubr.bf16.gmra.mrb[0].mxu0 %v463
    %v2161 = vpop.f32.mrb[0].mxu0
    %v2162 = vadd.f32 %v736, %v2161
    %v2163 = vpop.f32.mrb[0].mxu0
    %v2164 = vadd.f32 %v740, %v2163
    %v2165 = vpop.f32.mrb[0].mxu0
    %v2166 = vpop.f32.mrb[0].mxu0
    %2167 = vdwg.mxu0
    %2168 = vmatprep.subr.bf16.mxu0 %v1664
    %2169 = vmatpush1.bf16.msra.mxu0 %v1663
    %2170 = vmatprep.subr.bf16.mxu0 %v1672
    %2171 = vmatpush1.bf16.msra.mxu0 %v1671
    %2172 = vmatprep.subr.bf16.mxu0 %v1680
    %2173 = vmatpush1.bf16.msra.mxu0 %v1679
    %2174 = vmatprep.subr.bf16.mxu0 %v1688
    %2175 = vmatpush1.bf16.msra.mxu0 %v1687
    %2176 = vmatprep.subr.bf16.mxu0 %v1696
    %2177 = vmatpush1.bf16.msra.mxu0 %v1695
    %2178 = vmatprep.subr.bf16.mxu0 %v1704
    %2179 = vmatpush1.bf16.msra.mxu0 %v1703
    %2180 = vmatprep.subr.bf16.mxu0 %v1712
    %2181 = vmatpush1.bf16.msra.mxu0 %v1711
    %2182 = vmatprep.subr.bf16.mxu0 %v1720
    %2183 = vmatpush1.bf16.msra.mxu0 %v1719
    %2184 = vmatprep.subr.bf16.mxu0 %v1728
    %2185 = vmatpush1.bf16.msra.mxu0 %v1727
    %2186 = vmatprep.subr.bf16.mxu0 %v1736
    %2187 = vmatpush1.bf16.msra.mxu0 %v1735
    %2188 = vmatprep.subr.bf16.mxu0 %v1744
    %2189 = vmatpush1.bf16.msra.mxu0 %v1743
    %2190 = vmatprep.subr.bf16.mxu0 %v1752
    %2191 = vmatpush1.bf16.msra.mxu0 %v1751
    %2192 = vmatprep.subr.bf16.mxu0 %v1760
    %2193 = vmatpush1.bf16.msra.mxu0 %v1759
    %2194 = vmatprep.subr.bf16.mxu0 %v1768
    %2195 = vmatpush1.bf16.msra.mxu0 %v1767
    %2196 = vmatprep.subr.bf16.mxu0 %v1776
    %2197 = vmatpush1.bf16.msra.mxu0 %v1775
    %2198 = vmatprep.subr.bf16.mxu0 %v1784
    %2199 = vmatpush1.bf16.msra.mxu0 %v1783
    %2200 = vmatprep.mubr.bf16.mxu0 %v466
    %2201 = vmatmul.mubr.bf16.gmra.mrb[0].mxu0 %v465
    %v2202 = vpop.f32.mrb[0].mxu0
    %v2203 = vadd.f32 %v2162, %v2202
    %v2204 = vpop.f32.mrb[0].mxu0
    %v2205 = vadd.f32 %v2164, %v2204
    %v2206 = vpop.f32.mrb[0].mxu0
    %v2207 = vpop.f32.mrb[0].mxu0
    %2208 = vdwg.mxu0
    %2209 = vmatprep.subr.bf16.mxu0 %v1538
    %2210 = vmatpush1.bf16.msra.mxu0 %v1537
    %2211 = vmatprep.subr.bf16.mxu0 %v1546
    %2212 = vmatpush1.bf16.msra.mxu0 %v1545
    %2213 = vmatprep.subr.bf16.mxu0 %v1554
    %2214 = vmatpush1.bf16.msra.mxu0 %v1553
    %2215 = vmatprep.subr.bf16.mxu0 %v1562
    %2216 = vmatpush1.bf16.msra.mxu0 %v1561
    %2217 = vmatprep.subr.bf16.mxu0 %v1570
    %2218 = vmatpush1.bf16.msra.mxu0 %v1569
    %2219 = vmatprep.subr.bf16.mxu0 %v1578
    %2220 = vmatpush1.bf16.msra.mxu0 %v1577
    %2221 = vmatprep.subr.bf16.mxu0 %v1586
    %2222 = vmatpush1.bf16.msra.mxu0 %v1585
    %2223 = vmatprep.subr.bf16.mxu0 %v1594
    %2224 = vmatpush1.bf16.msra.mxu0 %v1593
    %2225 = vmatprep.subr.bf16.mxu0 %v1602
    %2226 = vmatpush1.bf16.msra.mxu0 %v1601
    %2227 = vmatprep.subr.bf16.mxu0 %v1610
    %2228 = vmatpush1.bf16.msra.mxu0 %v1609
    %2229 = vmatprep.subr.bf16.mxu0 %v1618
    %2230 = vmatpush1.bf16.msra.mxu0 %v1617
    %2231 = vmatprep.subr.bf16.mxu0 %v1626
    %2232 = vmatpush1.bf16.msra.mxu0 %v1625
    %2233 = vmatprep.subr.bf16.mxu0 %v1634
    %2234 = vmatpush1.bf16.msra.mxu0 %v1633
    %2235 = vmatprep.subr.bf16.mxu0 %v1642
    %2236 = vmatpush1.bf16.msra.mxu0 %v1641
    %2237 = vmatprep.subr.bf16.mxu0 %v1650
    %2238 = vmatpush1.bf16.msra.mxu0 %v1649
    %2239 = vmatprep.subr.bf16.mxu0 %v1658
    %2240 = vmatpush1.bf16.msra.mxu0 %v1657
    %2241 = vmatprep.mubr.bf16.mxu0 %v464
    %2242 = vmatmul.mubr.bf16.gmra.mrb[0].mxu0 %v463
    %v2243 = vpop.f32.mrb[0].mxu0
    %v2244 = vadd.f32 %v744, %v2243
    %v2245 = vpop.f32.mrb[0].mxu0
    %v2246 = vadd.f32 %v748, %v2245
    %v2247 = vpop.f32.mrb[0].mxu0
    %v2248 = vpop.f32.mrb[0].mxu0
    %2249 = vdwg.mxu0
    %2250 = vmatprep.subr.bf16.mxu0 %v1666
    %2251 = vmatpush1.bf16.msra.mxu0 %v1665
    %2252 = vmatprep.subr.bf16.mxu0 %v1674
    %2253 = vmatpush1.bf16.msra.mxu0 %v1673
    %2254 = vmatprep.subr.bf16.mxu0 %v1682
    %2255 = vmatpush1.bf16.msra.mxu0 %v1681
    %2256 = vmatprep.subr.bf16.mxu0 %v1690
    %2257 = vmatpush1.bf16.msra.mxu0 %v1689
    %2258 = vmatprep.subr.bf16.mxu0 %v1698
    %2259 = vmatpush1.bf16.msra.mxu0 %v1697
    %2260 = vmatprep.subr.bf16.mxu0 %v1706
    %2261 = vmatpush1.bf16.msra.mxu0 %v1705
    %2262 = vmatprep.subr.bf16.mxu0 %v1714
    %2263 = vmatpush1.bf16.msra.mxu0 %v1713
    %2264 = vmatprep.subr.bf16.mxu0 %v1722
    %2265 = vmatpush1.bf16.msra.mxu0 %v1721
    %2266 = vmatprep.subr.bf16.mxu0 %v1730
    %2267 = vmatpush1.bf16.msra.mxu0 %v1729
    %2268 = vmatprep.subr.bf16.mxu0 %v1738
    %2269 = vmatpush1.bf16.msra.mxu0 %v1737
    %2270 = vmatprep.subr.bf16.mxu0 %v1746
    %2271 = vmatpush1.bf16.msra.mxu0 %v1745
    %2272 = vmatprep.subr.bf16.mxu0 %v1754
    %2273 = vmatpush1.bf16.msra.mxu0 %v1753
    %2274 = vmatprep.subr.bf16.mxu0 %v1762
    %2275 = vmatpush1.bf16.msra.mxu0 %v1761
    %2276 = vmatprep.subr.bf16.mxu0 %v1770
    %2277 = vmatpush1.bf16.msra.mxu0 %v1769
    %2278 = vmatprep.subr.bf16.mxu0 %v1778
    %2279 = vmatpush1.bf16.msra.mxu0 %v1777
    %2280 = vmatprep.subr.bf16.mxu0 %v1786
    %2281 = vmatpush1.bf16.msra.mxu0 %v1785
    %2282 = vmatprep.mubr.bf16.mxu0 %v466
    %2283 = vmatmul.mubr.bf16.gmra.mrb[0].mxu0 %v465
    %v2284 = vpop.f32.mrb[0].mxu0
    %v2285 = vadd.f32 %v2244, %v2284
    %v2286 = vpop.f32.mrb[0].mxu0
    %v2287 = vadd.f32 %v2246, %v2286
    %v2288 = vpop.f32.mrb[0].mxu0
    %v2289 = vpop.f32.mrb[0].mxu0
    %2290 = vdwg.mxu0
    %2291 = vmatprep.subr.bf16.mxu0 %v1540
    %2292 = vmatpush1.bf16.msra.mxu0 %v1539
    %2293 = vmatprep.subr.bf16.mxu0 %v1548
    %2294 = vmatpush1.bf16.msra.mxu0 %v1547
    %2295 = vmatprep.subr.bf16.mxu0 %v1556
    %2296 = vmatpush1.bf16.msra.mxu0 %v1555
    %2297 = vmatprep.subr.bf16.mxu0 %v1564
    %2298 = vmatpush1.bf16.msra.mxu0 %v1563
    %2299 = vmatprep.subr.bf16.mxu0 %v1572
    %2300 = vmatpush1.bf16.msra.mxu0 %v1571
    %2301 = vmatprep.subr.bf16.mxu0 %v1580
    %2302 = vmatpush1.bf16.msra.mxu0 %v1579
    %2303 = vmatprep.subr.bf16.mxu0 %v1588
    %2304 = vmatpush1.bf16.msra.mxu0 %v1587
    %2305 = vmatprep.subr.bf16.mxu0 %v1596
    %2306 = vmatpush1.bf16.msra.mxu0 %v1595
    %2307 = vmatprep.subr.bf16.mxu0 %v1604
    %2308 = vmatpush1.bf16.msra.mxu0 %v1603
    %2309 = vmatprep.subr.bf16.mxu0 %v1612
    %2310 = vmatpush1.bf16.msra.mxu0 %v1611
    %2311 = vmatprep.subr.bf16.mxu0 %v1620
    %2312 = vmatpush1.bf16.msra.mxu0 %v1619
    %2313 = vmatprep.subr.bf16.mxu0 %v1628
    %2314 = vmatpush1.bf16.msra.mxu0 %v1627
    %2315 = vmatprep.subr.bf16.mxu0 %v1636
    %2316 = vmatpush1.bf16.msra.mxu0 %v1635
    %2317 = vmatprep.subr.bf16.mxu0 %v1644
    %2318 = vmatpush1.bf16.msra.mxu0 %v1643
    %2319 = vmatprep.subr.bf16.mxu0 %v1652
    %2320 = vmatpush1.bf16.msra.mxu0 %v1651
    %2321 = vmatprep.subr.bf16.mxu0 %v1660
    %2322 = vmatpush1.bf16.msra.mxu0 %v1659
    %2323 = vmatprep.mubr.bf16.mxu0 %v464
    %2324 = vmatmul.mubr.bf16.gmra.mrb[0].mxu0 %v463
    %v2325 = vpop.f32.mrb[0].mxu0
    %v2326 = vadd.f32 %v752, %v2325
    %v2327 = vpop.f32.mrb[0].mxu0
    %v2328 = vadd.f32 %v756, %v2327
    %v2329 = vpop.f32.mrb[0].mxu0
    %v2330 = vpop.f32.mrb[0].mxu0
    %2331 = vdwg.mxu0
    %2332 = vmatprep.subr.bf16.mxu0 %v1668
    %2333 = vmatpush1.bf16.msra.mxu0 %v1667
    %2334 = vmatprep.subr.bf16.mxu0 %v1676
    %2335 = vmatpush1.bf16.msra.mxu0 %v1675
    %2336 = vmatprep.subr.bf16.mxu0 %v1684
    %2337 = vmatpush1.bf16.msra.mxu0 %v1683
    %2338 = vmatprep.subr.bf16.mxu0 %v1692
    %2339 = vmatpush1.bf16.msra.mxu0 %v1691
    %2340 = vmatprep.subr.bf16.mxu0 %v1700
    %2341 = vmatpush1.bf16.msra.mxu0 %v1699
    %2342 = vmatprep.subr.bf16.mxu0 %v1708
    %2343 = vmatpush1.bf16.msra.mxu0 %v1707
    %2344 = vmatprep.subr.bf16.mxu0 %v1716
    %2345 = vmatpush1.bf16.msra.mxu0 %v1715
    %2346 = vmatprep.subr.bf16.mxu0 %v1724
    %2347 = vmatpush1.bf16.msra.mxu0 %v1723
    %2348 = vmatprep.subr.bf16.mxu0 %v1732
    %2349 = vmatpush1.bf16.msra.mxu0 %v1731
    %2350 = vmatprep.subr.bf16.mxu0 %v1740
    %2351 = vmatpush1.bf16.msra.mxu0 %v1739
    %2352 = vmatprep.subr.bf16.mxu0 %v1748
    %2353 = vmatpush1.bf16.msra.mxu0 %v1747
    %2354 = vmatprep.subr.bf16.mxu0 %v1756
    %2355 = vmatpush1.bf16.msra.mxu0 %v1755
    %2356 = vmatprep.subr.bf16.mxu0 %v1764
    %2357 = vmatpush1.bf16.msra.mxu0 %v1763
    %2358 = vmatprep.subr.bf16.mxu0 %v1772
    %2359 = vmatpush1.bf16.msra.mxu0 %v1771
    %2360 = vmatprep.subr.bf16.mxu0 %v1780
    %2361 = vmatpush1.bf16.msra.mxu0 %v1779
    %2362 = vmatprep.subr.bf16.mxu0 %v1788
    %2363 = vmatpush1.bf16.msra.mxu0 %v1787
    %2364 = vmatprep.mubr.bf16.mxu0 %v466
    %2365 = vmatmul.mubr.bf16.gmra.mrb[0].mxu0 %v465
    %v2366 = vpop.f32.mrb[0].mxu0
    %v2367 = vadd.f32 %v2326, %v2366
    %v2368 = vpop.f32.mrb[0].mxu0
    %v2369 = vadd.f32 %v2328, %v2368
    %v2370 = vpop.f32.mrb[0].mxu0
    %v2371 = vpop.f32.mrb[0].mxu0
    %2372 = vdwg.mxu0
    %v2373 = vmax.f32 %v2121, 0.0
    %v2374 = vmax.f32 %v2123, 0.0
    %v2375 = vmax.f32 %v2203, 0.0
    %v2376 = vmax.f32 %v2205, 0.0
    %v2377 = vmax.f32 %v2285, 0.0
    %v2378 = vmax.f32 %v2287, 0.0
    %v2379 = vmax.f32 %v2367, 0.0
    %v2380 = vmax.f32 %v2369, 0.0
    %v2381 = vpack.c.bf16 %v2373, %v2373
    %v2382 = vpack.c.bf16 %v2374, %v2374
    %v2383 = vpack.c.bf16 %v2375, %v2375
    %v2384 = vpack.c.bf16 %v2376, %v2376
    %v2385 = vpack.c.bf16 %v2377, %v2377
    %v2386 = vpack.c.bf16 %v2378, %v2378
    %v2387 = vpack.c.bf16 %v2379, %v2379
    %v2388 = vpack.c.bf16 %v2380, %v2380
    %s2389 = smul.u32 4, 128
    %s2390 = smul.u32 %s2389, 8
    %s2391 = sshll.u32 %s2390, 4
    %2392 = dma.done [#allocation4], %s2391
    %v2393 = vld [vmem:[#allocation2] sm:$0xff]
    %v2394 = vld [vmem:[#allocation2 + $0x8] sm:$0xff]
    %v2395 = vld [vmem:[#allocation2 + $0x10] sm:$0xff]
    %v2396 = vld [vmem:[#allocation2 + $0x18] sm:$0xff]
    %v2397 = vld [vmem:[#allocation2 + $0x20] sm:$0xff]
    %v2398 = vld [vmem:[#allocation2 + $0x28] sm:$0xff]
    %v2399 = vld [vmem:[#allocation2 + $0x30] sm:$0xff]
    %v2400 = vld [vmem:[#allocation2 + $0x38] sm:$0xff]
    %v2401 = vld [vmem:[#allocation2 + $0x40] sm:$0xff]
    %v2402 = vld [vmem:[#allocation2 + $0x48] sm:$0xff]
    %v2403 = vld [vmem:[#allocation2 + $0x50] sm:$0xff]
    %v2404 = vld [vmem:[#allocation2 + $0x58] sm:$0xff]
    %v2405 = vld [vmem:[#allocation2 + $0x60] sm:$0xff]
    %v2406 = vld [vmem:[#allocation2 + $0x68] sm:$0xff]
    %v2407 = vld [vmem:[#allocation2 + $0x70] sm:$0xff]
    %v2408 = vld [vmem:[#allocation2 + $0x78] sm:$0xff]
    %v2409 = vld [vmem:[#allocation2 + $0x80] sm:$0xff]
    %v2410 = vld [vmem:[#allocation2 + $0x88] sm:$0xff]
    %v2411 = vld [vmem:[#allocation2 + $0x90] sm:$0xff]
    %v2412 = vld [vmem:[#allocation2 + $0x98] sm:$0xff]
    %v2413 = vld [vmem:[#allocation2 + $0xa0] sm:$0xff]
    %v2414 = vld [vmem:[#allocation2 + $0xa8] sm:$0xff]
    %v2415 = vld [vmem:[#allocation2 + $0xb0] sm:$0xff]
    %v2416 = vld [vmem:[#allocation2 + $0xb8] sm:$0xff]
    %v2417 = vld [vmem:[#allocation2 + $0xc0] sm:$0xff]
    %v2418 = vld [vmem:[#allocation2 + $0xc8] sm:$0xff]
    %v2419 = vld [vmem:[#allocation2 + $0xd0] sm:$0xff]
    %v2420 = vld [vmem:[#allocation2 + $0xd8] sm:$0xff]
    %v2421 = vld [vmem:[#allocation2 + $0xe0] sm:$0xff]
    %v2422 = vld [vmem:[#allocation2 + $0xe8] sm:$0xff]
    %v2423 = vld [vmem:[#allocation2 + $0xf0] sm:$0xff]
    %v2424 = vld [vmem:[#allocation2 + $0xf8] sm:$0xff]
    %v2425 = vld [vmem:[#allocation2 + $0x100] sm:$0xff]
    %v2426 = vld [vmem:[#allocation2 + $0x108] sm:$0xff]
    %v2427 = vld [vmem:[#allocation2 + $0x110] sm:$0xff]
    %v2428 = vld [vmem:[#allocation2 + $0x118] sm:$0xff]
    %v2429 = vld [vmem:[#allocation2 + $0x120] sm:$0xff]
    %v2430 = vld [vmem:[#allocation2 + $0x128] sm:$0xff]
    %v2431 = vld [vmem:[#allocation2 + $0x130] sm:$0xff]
    %v2432 = vld [vmem:[#allocation2 + $0x138] sm:$0xff]
    %v2433 = vld [vmem:[#allocation2 + $0x140] sm:$0xff]
    %v2434 = vld [vmem:[#allocation2 + $0x148] sm:$0xff]
    %v2435 = vld [vmem:[#allocation2 + $0x150] sm:$0xff]
    %v2436 = vld [vmem:[#allocation2 + $0x158] sm:$0xff]
    %v2437 = vld [vmem:[#allocation2 + $0x160] sm:$0xff]
    %v2438 = vld [vmem:[#allocation2 + $0x168] sm:$0xff]
    %v2439 = vld [vmem:[#allocation2 + $0x170] sm:$0xff]
    %v2440 = vld [vmem:[#allocation2 + $0x178] sm:$0xff]
    %v2441 = vld [vmem:[#allocation2 + $0x180] sm:$0xff]
    %v2442 = vld [vmem:[#allocation2 + $0x188] sm:$0xff]
    %v2443 = vld [vmem:[#allocation2 + $0x190] sm:$0xff]
    %v2444 = vld [vmem:[#allocation2 + $0x198] sm:$0xff]
    %v2445 = vld [vmem:[#allocation2 + $0x1a0] sm:$0xff]
    %v2446 = vld [vmem:[#allocation2 + $0x1a8] sm:$0xff]
    %v2447 = vld [vmem:[#allocation2 + $0x1b0] sm:$0xff]
    %v2448 = vld [vmem:[#allocation2 + $0x1b8] sm:$0xff]
    %v2449 = vld [vmem:[#allocation2 + $0x1c0] sm:$0xff]
    %v2450 = vld [vmem:[#allocation2 + $0x1c8] sm:$0xff]
    %v2451 = vld [vmem:[#allocation2 + $0x1d0] sm:$0xff]
    %v2452 = vld [vmem:[#allocation2 + $0x1d8] sm:$0xff]
    %v2453 = vld [vmem:[#allocation2 + $0x1e0] sm:$0xff]
    %v2454 = vld [vmem:[#allocation2 + $0x1e8] sm:$0xff]
    %v2455 = vld [vmem:[#allocation2 + $0x1f0] sm:$0xff]
    %v2456 = vld [vmem:[#allocation2 + $0x1f8] sm:$0xff]
    %v2457 = vld [vmem:[#allocation2 + $0x200] sm:$0xff]
    %v2458 = vld [vmem:[#allocation2 + $0x208] sm:$0xff]
    %v2459 = vld [vmem:[#allocation2 + $0x210] sm:$0xff]
    %v2460 = vld [vmem:[#allocation2 + $0x218] sm:$0xff]
    %v2461 = vld [vmem:[#allocation2 + $0x220] sm:$0xff]
    %v2462 = vld [vmem:[#allocation2 + $0x228] sm:$0xff]
    %v2463 = vld [vmem:[#allocation2 + $0x230] sm:$0xff]
    %v2464 = vld [vmem:[#allocation2 + $0x238] sm:$0xff]
    %v2465 = vld [vmem:[#allocation2 + $0x240] sm:$0xff]
    %v2466 = vld [vmem:[#allocation2 + $0x248] sm:$0xff]
    %v2467 = vld [vmem:[#allocation2 + $0x250] sm:$0xff]
    %v2468 = vld [vmem:[#allocation2 + $0x258] sm:$0xff]
    %v2469 = vld [vmem:[#allocation2 + $0x260] sm:$0xff]
    %v2470 = vld [vmem:[#allocation2 + $0x268] sm:$0xff]
    %v2471 = vld [vmem:[#allocation2 + $0x270] sm:$0xff]
    %v2472 = vld [vmem:[#allocation2 + $0x278] sm:$0xff]
    %v2473 = vld [vmem:[#allocation2 + $0x280] sm:$0xff]
    %v2474 = vld [vmem:[#allocation2 + $0x288] sm:$0xff]
    %v2475 = vld [vmem:[#allocation2 + $0x290] sm:$0xff]
    %v2476 = vld [vmem:[#allocation2 + $0x298] sm:$0xff]
    %v2477 = vld [vmem:[#allocation2 + $0x2a0] sm:$0xff]
    %v2478 = vld [vmem:[#allocation2 + $0x2a8] sm:$0xff]
    %v2479 = vld [vmem:[#allocation2 + $0x2b0] sm:$0xff]
    %v2480 = vld [vmem:[#allocation2 + $0x2b8] sm:$0xff]
    %v2481 = vld [vmem:[#allocation2 + $0x2c0] sm:$0xff]
    %v2482 = vld [vmem:[#allocation2 + $0x2c8] sm:$0xff]
    %v2483 = vld [vmem:[#allocation2 + $0x2d0] sm:$0xff]
    %v2484 = vld [vmem:[#allocation2 + $0x2d8] sm:$0xff]
    %v2485 = vld [vmem:[#allocation2 + $0x2e0] sm:$0xff]
    %v2486 = vld [vmem:[#allocation2 + $0x2e8] sm:$0xff]
    %v2487 = vld [vmem:[#allocation2 + $0x2f0] sm:$0xff]
    %v2488 = vld [vmem:[#allocation2 + $0x2f8] sm:$0xff]
    %v2489 = vld [vmem:[#allocation2 + $0x300] sm:$0xff]
    %v2490 = vld [vmem:[#allocation2 + $0x308] sm:$0xff]
    %v2491 = vld [vmem:[#allocation2 + $0x310] sm:$0xff]
    %v2492 = vld [vmem:[#allocation2 + $0x318] sm:$0xff]
    %v2493 = vld [vmem:[#allocation2 + $0x320] sm:$0xff]
    %v2494 = vld [vmem:[#allocation2 + $0x328] sm:$0xff]
    %v2495 = vld [vmem:[#allocation2 + $0x330] sm:$0xff]
    %v2496 = vld [vmem:[#allocation2 + $0x338] sm:$0xff]
    %v2497 = vld [vmem:[#allocation2 + $0x340] sm:$0xff]
    %v2498 = vld [vmem:[#allocation2 + $0x348] sm:$0xff]
    %v2499 = vld [vmem:[#allocation2 + $0x350] sm:$0xff]
    %v2500 = vld [vmem:[#allocation2 + $0x358] sm:$0xff]
    %v2501 = vld [vmem:[#allocation2 + $0x360] sm:$0xff]
    %v2502 = vld [vmem:[#allocation2 + $0x368] sm:$0xff]
    %v2503 = vld [vmem:[#allocation2 + $0x370] sm:$0xff]
    %v2504 = vld [vmem:[#allocation2 + $0x378] sm:$0xff]
    %v2505 = vld [vmem:[#allocation2 + $0x380] sm:$0xff]
    %v2506 = vld [vmem:[#allocation2 + $0x388] sm:$0xff]
    %v2507 = vld [vmem:[#allocation2 + $0x390] sm:$0xff]
    %v2508 = vld [vmem:[#allocation2 + $0x398] sm:$0xff]
    %v2509 = vld [vmem:[#allocation2 + $0x3a0] sm:$0xff]
    %v2510 = vld [vmem:[#allocation2 + $0x3a8] sm:$0xff]
    %v2511 = vld [vmem:[#allocation2 + $0x3b0] sm:$0xff]
    %v2512 = vld [vmem:[#allocation2 + $0x3b8] sm:$0xff]
    %v2513 = vld [vmem:[#allocation2 + $0x3c0] sm:$0xff]
    %v2514 = vld [vmem:[#allocation2 + $0x3c8] sm:$0xff]
    %v2515 = vld [vmem:[#allocation2 + $0x3d0] sm:$0xff]
    %v2516 = vld [vmem:[#allocation2 + $0x3d8] sm:$0xff]
    %v2517 = vld [vmem:[#allocation2 + $0x3e0] sm:$0xff]
    %v2518 = vld [vmem:[#allocation2 + $0x3e8] sm:$0xff]
    %v2519 = vld [vmem:[#allocation2 + $0x3f0] sm:$0xff]
    %v2520 = vld [vmem:[#allocation2 + $0x3f8] sm:$0xff]
    %v2521 = vld [vmem:[#allocation2 + $0x400] sm:$0xff]
    %v2522 = vld [vmem:[#allocation2 + $0x408] sm:$0xff]
    %v2523 = vld [vmem:[#allocation2 + $0x410] sm:$0xff]
    %v2524 = vld [vmem:[#allocation2 + $0x418] sm:$0xff]
    %v2525 = vld [vmem:[#allocation2 + $0x420] sm:$0xff]
    %v2526 = vld [vmem:[#allocation2 + $0x428] sm:$0xff]
    %v2527 = vld [vmem:[#allocation2 + $0x430] sm:$0xff]
    %v2528 = vld [vmem:[#allocation2 + $0x438] sm:$0xff]
    %v2529 = vld [vmem:[#allocation2 + $0x440] sm:$0xff]
    %v2530 = vld [vmem:[#allocation2 + $0x448] sm:$0xff]
    %v2531 = vld [vmem:[#allocation2 + $0x450] sm:$0xff]
    %v2532 = vld [vmem:[#allocation2 + $0x458] sm:$0xff]
    %v2533 = vld [vmem:[#allocation2 + $0x460] sm:$0xff]
    %v2534 = vld [vmem:[#allocation2 + $0x468] sm:$0xff]
    %v2535 = vld [vmem:[#allocation2 + $0x470] sm:$0xff]
    %v2536 = vld [vmem:[#allocation2 + $0x478] sm:$0xff]
    %v2537 = vld [vmem:[#allocation2 + $0x480] sm:$0xff]
    %v2538 = vld [vmem:[#allocation2 + $0x488] sm:$0xff]
    %v2539 = vld [vmem:[#allocation2 + $0x490] sm:$0xff]
    %v2540 = vld [vmem:[#allocation2 + $0x498] sm:$0xff]
    %v2541 = vld [vmem:[#allocation2 + $0x4a0] sm:$0xff]
    %v2542 = vld [vmem:[#allocation2 + $0x4a8] sm:$0xff]
    %v2543 = vld [vmem:[#allocation2 + $0x4b0] sm:$0xff]
    %v2544 = vld [vmem:[#allocation2 + $0x4b8] sm:$0xff]
    %v2545 = vld [vmem:[#allocation2 + $0x4c0] sm:$0xff]
    %v2546 = vld [vmem:[#allocation2 + $0x4c8] sm:$0xff]
    %v2547 = vld [vmem:[#allocation2 + $0x4d0] sm:$0xff]
    %v2548 = vld [vmem:[#allocation2 + $0x4d8] sm:$0xff]
    %v2549 = vld [vmem:[#allocation2 + $0x4e0] sm:$0xff]
    %v2550 = vld [vmem:[#allocation2 + $0x4e8] sm:$0xff]
    %v2551 = vld [vmem:[#allocation2 + $0x4f0] sm:$0xff]
    %v2552 = vld [vmem:[#allocation2 + $0x4f8] sm:$0xff]
    %v2553 = vld [vmem:[#allocation2 + $0x500] sm:$0xff]
    %v2554 = vld [vmem:[#allocation2 + $0x508] sm:$0xff]
    %v2555 = vld [vmem:[#allocation2 + $0x510] sm:$0xff]
    %v2556 = vld [vmem:[#allocation2 + $0x518] sm:$0xff]
    %v2557 = vld [vmem:[#allocation2 + $0x520] sm:$0xff]
    %v2558 = vld [vmem:[#allocation2 + $0x528] sm:$0xff]
    %v2559 = vld [vmem:[#allocation2 + $0x530] sm:$0xff]
    %v2560 = vld [vmem:[#allocation2 + $0x538] sm:$0xff]
    %v2561 = vld [vmem:[#allocation2 + $0x540] sm:$0xff]
    %v2562 = vld [vmem:[#allocation2 + $0x548] sm:$0xff]
    %v2563 = vld [vmem:[#allocation2 + $0x550] sm:$0xff]
    %v2564 = vld [vmem:[#allocation2 + $0x558] sm:$0xff]
    %v2565 = vld [vmem:[#allocation2 + $0x560] sm:$0xff]
    %v2566 = vld [vmem:[#allocation2 + $0x568] sm:$0xff]
    %v2567 = vld [vmem:[#allocation2 + $0x570] sm:$0xff]
    %v2568 = vld [vmem:[#allocation2 + $0x578] sm:$0xff]
    %v2569 = vld [vmem:[#allocation2 + $0x580] sm:$0xff]
    %v2570 = vld [vmem:[#allocation2 + $0x588] sm:$0xff]
    %v2571 = vld [vmem:[#allocation2 + $0x590] sm:$0xff]
    %v2572 = vld [vmem:[#allocation2 + $0x598] sm:$0xff]
    %v2573 = vld [vmem:[#allocation2 + $0x5a0] sm:$0xff]
    %v2574 = vld [vmem:[#allocation2 + $0x5a8] sm:$0xff]
    %v2575 = vld [vmem:[#allocation2 + $0x5b0] sm:$0xff]
    %v2576 = vld [vmem:[#allocation2 + $0x5b8] sm:$0xff]
    %v2577 = vld [vmem:[#allocation2 + $0x5c0] sm:$0xff]
    %v2578 = vld [vmem:[#allocation2 + $0x5c8] sm:$0xff]
    %v2579 = vld [vmem:[#allocation2 + $0x5d0] sm:$0xff]
    %v2580 = vld [vmem:[#allocation2 + $0x5d8] sm:$0xff]
    %v2581 = vld [vmem:[#allocation2 + $0x5e0] sm:$0xff]
    %v2582 = vld [vmem:[#allocation2 + $0x5e8] sm:$0xff]
    %v2583 = vld [vmem:[#allocation2 + $0x5f0] sm:$0xff]
    %v2584 = vld [vmem:[#allocation2 + $0x5f8] sm:$0xff]
    %v2585 = vld [vmem:[#allocation2 + $0x600] sm:$0xff]
    %v2586 = vld [vmem:[#allocation2 + $0x608] sm:$0xff]
    %v2587 = vld [vmem:[#allocation2 + $0x610] sm:$0xff]
    %v2588 = vld [vmem:[#allocation2 + $0x618] sm:$0xff]
    %v2589 = vld [vmem:[#allocation2 + $0x620] sm:$0xff]
    %v2590 = vld [vmem:[#allocation2 + $0x628] sm:$0xff]
    %v2591 = vld [vmem:[#allocation2 + $0x630] sm:$0xff]
    %v2592 = vld [vmem:[#allocation2 + $0x638] sm:$0xff]
    %v2593 = vld [vmem:[#allocation2 + $0x640] sm:$0xff]
    %v2594 = vld [vmem:[#allocation2 + $0x648] sm:$0xff]
    %v2595 = vld [vmem:[#allocation2 + $0x650] sm:$0xff]
    %v2596 = vld [vmem:[#allocation2 + $0x658] sm:$0xff]
    %v2597 = vld [vmem:[#allocation2 + $0x660] sm:$0xff]
    %v2598 = vld [vmem:[#allocation2 + $0x668] sm:$0xff]
    %v2599 = vld [vmem:[#allocation2 + $0x670] sm:$0xff]
    %v2600 = vld [vmem:[#allocation2 + $0x678] sm:$0xff]
    %v2601 = vld [vmem:[#allocation2 + $0x680] sm:$0xff]
    %v2602 = vld [vmem:[#allocation2 + $0x688] sm:$0xff]
    %v2603 = vld [vmem:[#allocation2 + $0x690] sm:$0xff]
    %v2604 = vld [vmem:[#allocation2 + $0x698] sm:$0xff]
    %v2605 = vld [vmem:[#allocation2 + $0x6a0] sm:$0xff]
    %v2606 = vld [vmem:[#allocation2 + $0x6a8] sm:$0xff]
    %v2607 = vld [vmem:[#allocation2 + $0x6b0] sm:$0xff]
    %v2608 = vld [vmem:[#allocation2 + $0x6b8] sm:$0xff]
    %v2609 = vld [vmem:[#allocation2 + $0x6c0] sm:$0xff]
    %v2610 = vld [vmem:[#allocation2 + $0x6c8] sm:$0xff]
    %v2611 = vld [vmem:[#allocation2 + $0x6d0] sm:$0xff]
    %v2612 = vld [vmem:[#allocation2 + $0x6d8] sm:$0xff]
    %v2613 = vld [vmem:[#allocation2 + $0x6e0] sm:$0xff]
    %v2614 = vld [vmem:[#allocation2 + $0x6e8] sm:$0xff]
    %v2615 = vld [vmem:[#allocation2 + $0x6f0] sm:$0xff]
    %v2616 = vld [vmem:[#allocation2 + $0x6f8] sm:$0xff]
    %v2617 = vld [vmem:[#allocation2 + $0x700] sm:$0xff]
    %v2618 = vld [vmem:[#allocation2 + $0x708] sm:$0xff]
    %v2619 = vld [vmem:[#allocation2 + $0x710] sm:$0xff]
    %v2620 = vld [vmem:[#allocation2 + $0x718] sm:$0xff]
    %v2621 = vld [vmem:[#allocation2 + $0x720] sm:$0xff]
    %v2622 = vld [vmem:[#allocation2 + $0x728] sm:$0xff]
    %v2623 = vld [vmem:[#allocation2 + $0x730] sm:$0xff]
    %v2624 = vld [vmem:[#allocation2 + $0x738] sm:$0xff]
    %v2625 = vld [vmem:[#allocation2 + $0x740] sm:$0xff]
    %v2626 = vld [vmem:[#allocation2 + $0x748] sm:$0xff]
    %v2627 = vld [vmem:[#allocation2 + $0x750] sm:$0xff]
    %v2628 = vld [vmem:[#allocation2 + $0x758] sm:$0xff]
    %v2629 = vld [vmem:[#allocation2 + $0x760] sm:$0xff]
    %v2630 = vld [vmem:[#allocation2 + $0x768] sm:$0xff]
    %v2631 = vld [vmem:[#allocation2 + $0x770] sm:$0xff]
    %v2632 = vld [vmem:[#allocation2 + $0x778] sm:$0xff]
    %v2633 = vld [vmem:[#allocation2 + $0x780] sm:$0xff]
    %v2634 = vld [vmem:[#allocation2 + $0x788] sm:$0xff]
    %v2635 = vld [vmem:[#allocation2 + $0x790] sm:$0xff]
    %v2636 = vld [vmem:[#allocation2 + $0x798] sm:$0xff]
    %v2637 = vld [vmem:[#allocation2 + $0x7a0] sm:$0xff]
    %v2638 = vld [vmem:[#allocation2 + $0x7a8] sm:$0xff]
    %v2639 = vld [vmem:[#allocation2 + $0x7b0] sm:$0xff]
    %v2640 = vld [vmem:[#allocation2 + $0x7b8] sm:$0xff]
    %v2641 = vld [vmem:[#allocation2 + $0x7c0] sm:$0xff]
    %v2642 = vld [vmem:[#allocation2 + $0x7c8] sm:$0xff]
    %v2643 = vld [vmem:[#allocation2 + $0x7d0] sm:$0xff]
    %v2644 = vld [vmem:[#allocation2 + $0x7d8] sm:$0xff]
    %v2645 = vld [vmem:[#allocation2 + $0x7e0] sm:$0xff]
    %v2646 = vld [vmem:[#allocation2 + $0x7e8] sm:$0xff]
    %v2647 = vld [vmem:[#allocation2 + $0x7f0] sm:$0xff]
    %v2648 = vld [vmem:[#allocation2 + $0x7f8] sm:$0xff]
    %v2649 = vld [vmem:[#allocation2 + $0x800] sm:$0xff]
    %v2650 = vld [vmem:[#allocation2 + $0x808] sm:$0xff]
    %v2651 = vld [vmem:[#allocation2 + $0x810] sm:$0xff]
    %v2652 = vld [vmem:[#allocation2 + $0x818] sm:$0xff]
    %v2653 = vld [vmem:[#allocation2 + $0x820] sm:$0xff]
    %v2654 = vld [vmem:[#allocation2 + $0x828] sm:$0xff]
    %v2655 = vld [vmem:[#allocation2 + $0x830] sm:$0xff]
    %v2656 = vld [vmem:[#allocation2 + $0x838] sm:$0xff]
    %v2657 = vld [vmem:[#allocation2 + $0x840] sm:$0xff]
    %v2658 = vld [vmem:[#allocation2 + $0x848] sm:$0xff]
    %v2659 = vld [vmem:[#allocation2 + $0x850] sm:$0xff]
    %v2660 = vld [vmem:[#allocation2 + $0x858] sm:$0xff]
    %v2661 = vld [vmem:[#allocation2 + $0x860] sm:$0xff]
    %v2662 = vld [vmem:[#allocation2 + $0x868] sm:$0xff]
    %v2663 = vld [vmem:[#allocation2 + $0x870] sm:$0xff]
    %v2664 = vld [vmem:[#allocation2 + $0x878] sm:$0xff]
    %v2665 = vld [vmem:[#allocation2 + $0x880] sm:$0xff]
    %v2666 = vld [vmem:[#allocation2 + $0x888] sm:$0xff]
    %v2667 = vld [vmem:[#allocation2 + $0x890] sm:$0xff]
    %v2668 = vld [vmem:[#allocation2 + $0x898] sm:$0xff]
    %v2669 = vld [vmem:[#allocation2 + $0x8a0] sm:$0xff]
    %v2670 = vld [vmem:[#allocation2 + $0x8a8] sm:$0xff]
    %v2671 = vld [vmem:[#allocation2 + $0x8b0] sm:$0xff]
    %v2672 = vld [vmem:[#allocation2 + $0x8b8] sm:$0xff]
    %v2673 = vld [vmem:[#allocation2 + $0x8c0] sm:$0xff]
    %v2674 = vld [vmem:[#allocation2 + $0x8c8] sm:$0xff]
    %v2675 = vld [vmem:[#allocation2 + $0x8d0] sm:$0xff]
    %v2676 = vld [vmem:[#allocation2 + $0x8d8] sm:$0xff]
    %v2677 = vld [vmem:[#allocation2 + $0x8e0] sm:$0xff]
    %v2678 = vld [vmem:[#allocation2 + $0x8e8] sm:$0xff]
    %v2679 = vld [vmem:[#allocation2 + $0x8f0] sm:$0xff]
    %v2680 = vld [vmem:[#allocation2 + $0x8f8] sm:$0xff]
    %v2681 = vld [vmem:[#allocation2 + $0x900] sm:$0xff]
    %v2682 = vld [vmem:[#allocation2 + $0x908] sm:$0xff]
    %v2683 = vld [vmem:[#allocation2 + $0x910] sm:$0xff]
    %v2684 = vld [vmem:[#allocation2 + $0x918] sm:$0xff]
    %v2685 = vld [vmem:[#allocation2 + $0x920] sm:$0xff]
    %v2686 = vld [vmem:[#allocation2 + $0x928] sm:$0xff]
    %v2687 = vld [vmem:[#allocation2 + $0x930] sm:$0xff]
    %v2688 = vld [vmem:[#allocation2 + $0x938] sm:$0xff]
    %v2689 = vld [vmem:[#allocation2 + $0x940] sm:$0xff]
    %v2690 = vld [vmem:[#allocation2 + $0x948] sm:$0xff]
    %v2691 = vld [vmem:[#allocation2 + $0x950] sm:$0xff]
    %v2692 = vld [vmem:[#allocation2 + $0x958] sm:$0xff]
    %v2693 = vld [vmem:[#allocation2 + $0x960] sm:$0xff]
    %v2694 = vld [vmem:[#allocation2 + $0x968] sm:$0xff]
    %v2695 = vld [vmem:[#allocation2 + $0x970] sm:$0xff]
    %v2696 = vld [vmem:[#allocation2 + $0x978] sm:$0xff]
    %v2697 = vld [vmem:[#allocation2 + $0x980] sm:$0xff]
    %v2698 = vld [vmem:[#allocation2 + $0x988] sm:$0xff]
    %v2699 = vld [vmem:[#allocation2 + $0x990] sm:$0xff]
    %v2700 = vld [vmem:[#allocation2 + $0x998] sm:$0xff]
    %v2701 = vld [vmem:[#allocation2 + $0x9a0] sm:$0xff]
    %v2702 = vld [vmem:[#allocation2 + $0x9a8] sm:$0xff]
    %v2703 = vld [vmem:[#allocation2 + $0x9b0] sm:$0xff]
    %v2704 = vld [vmem:[#allocation2 + $0x9b8] sm:$0xff]
    %v2705 = vld [vmem:[#allocation2 + $0x9c0] sm:$0xff]
    %v2706 = vld [vmem:[#allocation2 + $0x9c8] sm:$0xff]
    %v2707 = vld [vmem:[#allocation2 + $0x9d0] sm:$0xff]
    %v2708 = vld [vmem:[#allocation2 + $0x9d8] sm:$0xff]
    %v2709 = vld [vmem:[#allocation2 + $0x9e0] sm:$0xff]
    %v2710 = vld [vmem:[#allocation2 + $0x9e8] sm:$0xff]
    %v2711 = vld [vmem:[#allocation2 + $0x9f0] sm:$0xff]
    %v2712 = vld [vmem:[#allocation2 + $0x9f8] sm:$0xff]
    %v2713 = vld [vmem:[#allocation2 + $0xa00] sm:$0xff]
    %v2714 = vld [vmem:[#allocation2 + $0xa08] sm:$0xff]
    %v2715 = vld [vmem:[#allocation2 + $0xa10] sm:$0xff]
    %v2716 = vld [vmem:[#allocation2 + $0xa18] sm:$0xff]
    %v2717 = vld [vmem:[#allocation2 + $0xa20] sm:$0xff]
    %v2718 = vld [vmem:[#allocation2 + $0xa28] sm:$0xff]
    %v2719 = vld [vmem:[#allocation2 + $0xa30] sm:$0xff]
    %v2720 = vld [vmem:[#allocation2 + $0xa38] sm:$0xff]
    %v2721 = vld [vmem:[#allocation2 + $0xa40] sm:$0xff]
    %v2722 = vld [vmem:[#allocation2 + $0xa48] sm:$0xff]
    %v2723 = vld [vmem:[#allocation2 + $0xa50] sm:$0xff]
    %v2724 = vld [vmem:[#allocation2 + $0xa58] sm:$0xff]
    %v2725 = vld [vmem:[#allocation2 + $0xa60] sm:$0xff]
    %v2726 = vld [vmem:[#allocation2 + $0xa68] sm:$0xff]
    %v2727 = vld [vmem:[#allocation2 + $0xa70] sm:$0xff]
    %v2728 = vld [vmem:[#allocation2 + $0xa78] sm:$0xff]
    %v2729 = vld [vmem:[#allocation2 + $0xa80] sm:$0xff]
    %v2730 = vld [vmem:[#allocation2 + $0xa88] sm:$0xff]
    %v2731 = vld [vmem:[#allocation2 + $0xa90] sm:$0xff]
    %v2732 = vld [vmem:[#allocation2 + $0xa98] sm:$0xff]
    %v2733 = vld [vmem:[#allocation2 + $0xaa0] sm:$0xff]
    %v2734 = vld [vmem:[#allocation2 + $0xaa8] sm:$0xff]
    %v2735 = vld [vmem:[#allocation2 + $0xab0] sm:$0xff]
    %v2736 = vld [vmem:[#allocation2 + $0xab8] sm:$0xff]
    %v2737 = vld [vmem:[#allocation2 + $0xac0] sm:$0xff]
    %v2738 = vld [vmem:[#allocation2 + $0xac8] sm:$0xff]
    %v2739 = vld [vmem:[#allocation2 + $0xad0] sm:$0xff]
    %v2740 = vld [vmem:[#allocation2 + $0xad8] sm:$0xff]
    %v2741 = vld [vmem:[#allocation2 + $0xae0] sm:$0xff]
    %v2742 = vld [vmem:[#allocation2 + $0xae8] sm:$0xff]
    %v2743 = vld [vmem:[#allocation2 + $0xaf0] sm:$0xff]
    %v2744 = vld [vmem:[#allocation2 + $0xaf8] sm:$0xff]
    %v2745 = vld [vmem:[#allocation2 + $0xb00] sm:$0xff]
    %v2746 = vld [vmem:[#allocation2 + $0xb08] sm:$0xff]
    %v2747 = vld [vmem:[#allocation2 + $0xb10] sm:$0xff]
    %v2748 = vld [vmem:[#allocation2 + $0xb18] sm:$0xff]
    %v2749 = vld [vmem:[#allocation2 + $0xb20] sm:$0xff]
    %v2750 = vld [vmem:[#allocation2 + $0xb28] sm:$0xff]
    %v2751 = vld [vmem:[#allocation2 + $0xb30] sm:$0xff]
    %v2752 = vld [vmem:[#allocation2 + $0xb38] sm:$0xff]
    %v2753 = vld [vmem:[#allocation2 + $0xb40] sm:$0xff]
    %v2754 = vld [vmem:[#allocation2 + $0xb48] sm:$0xff]
    %v2755 = vld [vmem:[#allocation2 + $0xb50] sm:$0xff]
    %v2756 = vld [vmem:[#allocation2 + $0xb58] sm:$0xff]
    %v2757 = vld [vmem:[#allocation2 + $0xb60] sm:$0xff]
    %v2758 = vld [vmem:[#allocation2 + $0xb68] sm:$0xff]
    %v2759 = vld [vmem:[#allocation2 + $0xb70] sm:$0xff]
    %v2760 = vld [vmem:[#allocation2 + $0xb78] sm:$0xff]
    %v2761 = vld [vmem:[#allocation2 + $0xb80] sm:$0xff]
    %v2762 = vld [vmem:[#allocation2 + $0xb88] sm:$0xff]
    %v2763 = vld [vmem:[#allocation2 + $0xb90] sm:$0xff]
    %v2764 = vld [vmem:[#allocation2 + $0xb98] sm:$0xff]
    %v2765 = vld [vmem:[#allocation2 + $0xba0] sm:$0xff]
    %v2766 = vld [vmem:[#allocation2 + $0xba8] sm:$0xff]
    %v2767 = vld [vmem:[#allocation2 + $0xbb0] sm:$0xff]
    %v2768 = vld [vmem:[#allocation2 + $0xbb8] sm:$0xff]
    %v2769 = vld [vmem:[#allocation2 + $0xbc0] sm:$0xff]
    %v2770 = vld [vmem:[#allocation2 + $0xbc8] sm:$0xff]
    %v2771 = vld [vmem:[#allocation2 + $0xbd0] sm:$0xff]
    %v2772 = vld [vmem:[#allocation2 + $0xbd8] sm:$0xff]
    %v2773 = vld [vmem:[#allocation2 + $0xbe0] sm:$0xff]
    %v2774 = vld [vmem:[#allocation2 + $0xbe8] sm:$0xff]
    %v2775 = vld [vmem:[#allocation2 + $0xbf0] sm:$0xff]
    %v2776 = vld [vmem:[#allocation2 + $0xbf8] sm:$0xff]
    %v2777 = vld [vmem:[#allocation2 + $0xc00] sm:$0xff]
    %v2778 = vld [vmem:[#allocation2 + $0xc08] sm:$0xff]
    %v2779 = vld [vmem:[#allocation2 + $0xc10] sm:$0xff]
    %v2780 = vld [vmem:[#allocation2 + $0xc18] sm:$0xff]
    %v2781 = vld [vmem:[#allocation2 + $0xc20] sm:$0xff]
    %v2782 = vld [vmem:[#allocation2 + $0xc28] sm:$0xff]
    %v2783 = vld [vmem:[#allocation2 + $0xc30] sm:$0xff]
    %v2784 = vld [vmem:[#allocation2 + $0xc38] sm:$0xff]
    %v2785 = vld [vmem:[#allocation2 + $0xc40] sm:$0xff]
    %v2786 = vld [vmem:[#allocation2 + $0xc48] sm:$0xff]
    %v2787 = vld [vmem:[#allocation2 + $0xc50] sm:$0xff]
    %v2788 = vld [vmem:[#allocation2 + $0xc58] sm:$0xff]
    %v2789 = vld [vmem:[#allocation2 + $0xc60] sm:$0xff]
    %v2790 = vld [vmem:[#allocation2 + $0xc68] sm:$0xff]
    %v2791 = vld [vmem:[#allocation2 + $0xc70] sm:$0xff]
    %v2792 = vld [vmem:[#allocation2 + $0xc78] sm:$0xff]
    %v2793 = vld [vmem:[#allocation2 + $0xc80] sm:$0xff]
    %v2794 = vld [vmem:[#allocation2 + $0xc88] sm:$0xff]
    %v2795 = vld [vmem:[#allocation2 + $0xc90] sm:$0xff]
    %v2796 = vld [vmem:[#allocation2 + $0xc98] sm:$0xff]
    %v2797 = vld [vmem:[#allocation2 + $0xca0] sm:$0xff]
    %v2798 = vld [vmem:[#allocation2 + $0xca8] sm:$0xff]
    %v2799 = vld [vmem:[#allocation2 + $0xcb0] sm:$0xff]
    %v2800 = vld [vmem:[#allocation2 + $0xcb8] sm:$0xff]
    %v2801 = vld [vmem:[#allocation2 + $0xcc0] sm:$0xff]
    %v2802 = vld [vmem:[#allocation2 + $0xcc8] sm:$0xff]
    %v2803 = vld [vmem:[#allocation2 + $0xcd0] sm:$0xff]
    %v2804 = vld [vmem:[#allocation2 + $0xcd8] sm:$0xff]
    %v2805 = vld [vmem:[#allocation2 + $0xce0] sm:$0xff]
    %v2806 = vld [vmem:[#allocation2 + $0xce8] sm:$0xff]
    %v2807 = vld [vmem:[#allocation2 + $0xcf0] sm:$0xff]
    %v2808 = vld [vmem:[#allocation2 + $0xcf8] sm:$0xff]
    %v2809 = vld [vmem:[#allocation2 + $0xd00] sm:$0xff]
    %v2810 = vld [vmem:[#allocation2 + $0xd08] sm:$0xff]
    %v2811 = vld [vmem:[#allocation2 + $0xd10] sm:$0xff]
    %v2812 = vld [vmem:[#allocation2 + $0xd18] sm:$0xff]
    %v2813 = vld [vmem:[#allocation2 + $0xd20] sm:$0xff]
    %v2814 = vld [vmem:[#allocation2 + $0xd28] sm:$0xff]
    %v2815 = vld [vmem:[#allocation2 + $0xd30] sm:$0xff]
    %v2816 = vld [vmem:[#allocation2 + $0xd38] sm:$0xff]
    %v2817 = vld [vmem:[#allocation2 + $0xd40] sm:$0xff]
    %v2818 = vld [vmem:[#allocation2 + $0xd48] sm:$0xff]
    %v2819 = vld [vmem:[#allocation2 + $0xd50] sm:$0xff]
    %v2820 = vld [vmem:[#allocation2 + $0xd58] sm:$0xff]
    %v2821 = vld [vmem:[#allocation2 + $0xd60] sm:$0xff]
    %v2822 = vld [vmem:[#allocation2 + $0xd68] sm:$0xff]
    %v2823 = vld [vmem:[#allocation2 + $0xd70] sm:$0xff]
    %v2824 = vld [vmem:[#allocation2 + $0xd78] sm:$0xff]
    %v2825 = vld [vmem:[#allocation2 + $0xd80] sm:$0xff]
    %v2826 = vld [vmem:[#allocation2 + $0xd88] sm:$0xff]
    %v2827 = vld [vmem:[#allocation2 + $0xd90] sm:$0xff]
    %v2828 = vld [vmem:[#allocation2 + $0xd98] sm:$0xff]
    %v2829 = vld [vmem:[#allocation2 + $0xda0] sm:$0xff]
    %v2830 = vld [vmem:[#allocation2 + $0xda8] sm:$0xff]
    %v2831 = vld [vmem:[#allocation2 + $0xdb0] sm:$0xff]
    %v2832 = vld [vmem:[#allocation2 + $0xdb8] sm:$0xff]
    %v2833 = vld [vmem:[#allocation2 + $0xdc0] sm:$0xff]
    %v2834 = vld [vmem:[#allocation2 + $0xdc8] sm:$0xff]
    %v2835 = vld [vmem:[#allocation2 + $0xdd0] sm:$0xff]
    %v2836 = vld [vmem:[#allocation2 + $0xdd8] sm:$0xff]
    %v2837 = vld [vmem:[#allocation2 + $0xde0] sm:$0xff]
    %v2838 = vld [vmem:[#allocation2 + $0xde8] sm:$0xff]
    %v2839 = vld [vmem:[#allocation2 + $0xdf0] sm:$0xff]
    %v2840 = vld [vmem:[#allocation2 + $0xdf8] sm:$0xff]
    %v2841 = vld [vmem:[#allocation2 + $0xe00] sm:$0xff]
    %v2842 = vld [vmem:[#allocation2 + $0xe08] sm:$0xff]
    %v2843 = vld [vmem:[#allocation2 + $0xe10] sm:$0xff]
    %v2844 = vld [vmem:[#allocation2 + $0xe18] sm:$0xff]
    %v2845 = vld [vmem:[#allocation2 + $0xe20] sm:$0xff]
    %v2846 = vld [vmem:[#allocation2 + $0xe28] sm:$0xff]
    %v2847 = vld [vmem:[#allocation2 + $0xe30] sm:$0xff]
    %v2848 = vld [vmem:[#allocation2 + $0xe38] sm:$0xff]
    %v2849 = vld [vmem:[#allocation2 + $0xe40] sm:$0xff]
    %v2850 = vld [vmem:[#allocation2 + $0xe48] sm:$0xff]
    %v2851 = vld [vmem:[#allocation2 + $0xe50] sm:$0xff]
    %v2852 = vld [vmem:[#allocation2 + $0xe58] sm:$0xff]
    %v2853 = vld [vmem:[#allocation2 + $0xe60] sm:$0xff]
    %v2854 = vld [vmem:[#allocation2 + $0xe68] sm:$0xff]
    %v2855 = vld [vmem:[#allocation2 + $0xe70] sm:$0xff]
    %v2856 = vld [vmem:[#allocation2 + $0xe78] sm:$0xff]
    %v2857 = vld [vmem:[#allocation2 + $0xe80] sm:$0xff]
    %v2858 = vld [vmem:[#allocation2 + $0xe88] sm:$0xff]
    %v2859 = vld [vmem:[#allocation2 + $0xe90] sm:$0xff]
    %v2860 = vld [vmem:[#allocation2 + $0xe98] sm:$0xff]
    %v2861 = vld [vmem:[#allocation2 + $0xea0] sm:$0xff]
    %v2862 = vld [vmem:[#allocation2 + $0xea8] sm:$0xff]
    %v2863 = vld [vmem:[#allocation2 + $0xeb0] sm:$0xff]
    %v2864 = vld [vmem:[#allocation2 + $0xeb8] sm:$0xff]
    %v2865 = vld [vmem:[#allocation2 + $0xec0] sm:$0xff]
    %v2866 = vld [vmem:[#allocation2 + $0xec8] sm:$0xff]
    %v2867 = vld [vmem:[#allocation2 + $0xed0] sm:$0xff]
    %v2868 = vld [vmem:[#allocation2 + $0xed8] sm:$0xff]
    %v2869 = vld [vmem:[#allocation2 + $0xee0] sm:$0xff]
    %v2870 = vld [vmem:[#allocation2 + $0xee8] sm:$0xff]
    %v2871 = vld [vmem:[#allocation2 + $0xef0] sm:$0xff]
    %v2872 = vld [vmem:[#allocation2 + $0xef8] sm:$0xff]
    %v2873 = vld [vmem:[#allocation2 + $0xf00] sm:$0xff]
    %v2874 = vld [vmem:[#allocation2 + $0xf08] sm:$0xff]
    %v2875 = vld [vmem:[#allocation2 + $0xf10] sm:$0xff]
    %v2876 = vld [vmem:[#allocation2 + $0xf18] sm:$0xff]
    %v2877 = vld [vmem:[#allocation2 + $0xf20] sm:$0xff]
    %v2878 = vld [vmem:[#allocation2 + $0xf28] sm:$0xff]
    %v2879 = vld [vmem:[#allocation2 + $0xf30] sm:$0xff]
    %v2880 = vld [vmem:[#allocation2 + $0xf38] sm:$0xff]
    %v2881 = vld [vmem:[#allocation2 + $0xf40] sm:$0xff]
    %v2882 = vld [vmem:[#allocation2 + $0xf48] sm:$0xff]
    %v2883 = vld [vmem:[#allocation2 + $0xf50] sm:$0xff]
    %v2884 = vld [vmem:[#allocation2 + $0xf58] sm:$0xff]
    %v2885 = vld [vmem:[#allocation2 + $0xf60] sm:$0xff]
    %v2886 = vld [vmem:[#allocation2 + $0xf68] sm:$0xff]
    %v2887 = vld [vmem:[#allocation2 + $0xf70] sm:$0xff]
    %v2888 = vld [vmem:[#allocation2 + $0xf78] sm:$0xff]
    %v2889 = vld [vmem:[#allocation2 + $0xf80] sm:$0xff]
    %v2890 = vld [vmem:[#allocation2 + $0xf88] sm:$0xff]
    %v2891 = vld [vmem:[#allocation2 + $0xf90] sm:$0xff]
    %v2892 = vld [vmem:[#allocation2 + $0xf98] sm:$0xff]
    %v2893 = vld [vmem:[#allocation2 + $0xfa0] sm:$0xff]
    %v2894 = vld [vmem:[#allocation2 + $0xfa8] sm:$0xff]
    %v2895 = vld [vmem:[#allocation2 + $0xfb0] sm:$0xff]
    %v2896 = vld [vmem:[#allocation2 + $0xfb8] sm:$0xff]
    %v2897 = vld [vmem:[#allocation2 + $0xfc0] sm:$0xff]
    %v2898 = vld [vmem:[#allocation2 + $0xfc8] sm:$0xff]
    %v2899 = vld [vmem:[#allocation2 + $0xfd0] sm:$0xff]
    %v2900 = vld [vmem:[#allocation2 + $0xfd8] sm:$0xff]
    %v2901 = vld [vmem:[#allocation2 + $0xfe0] sm:$0xff]
    %v2902 = vld [vmem:[#allocation2 + $0xfe8] sm:$0xff]
    %v2903 = vld [vmem:[#allocation2 + $0xff0] sm:$0xff]
    %v2904 = vld [vmem:[#allocation2 + $0xff8] sm:$0xff]
    %v2905 = vld [vmem:[#allocation14] sm:$0xff]
    %v2907 = vlaneseq
    %v2908 = vshrl.u32 %v2907, 7
    %v2909 = vsub.s32 0, %v2908
    %v2910 = vrot.slane %v2905, %v2909
    %v2911 = vlaneseq
    %v2912 = vshrl.u32 %v2911, 7
    %v2913 = vsub.s32 1, %v2912
    %v2914 = vrot.slane %v2905, %v2913
    %v2915 = vlaneseq
    %v2916 = vshrl.u32 %v2915, 7
    %v2917 = vsub.s32 2, %v2916
    %v2918 = vrot.slane %v2905, %v2917
    %v2919 = vlaneseq
    %v2920 = vshrl.u32 %v2919, 7
    %v2921 = vsub.s32 3, %v2920
    %v2922 = vrot.slane %v2905, %v2921
    %v2923 = vlaneseq
    %v2924 = vshrl.u32 %v2923, 7
    %v2925 = vsub.s32 4, %v2924
    %v2926 = vrot.slane %v2905, %v2925
    %v2927 = vlaneseq
    %v2928 = vshrl.u32 %v2927, 7
    %v2929 = vsub.s32 5, %v2928
    %v2930 = vrot.slane %v2905, %v2929
    %v2931 = vlaneseq
    %v2932 = vshrl.u32 %v2931, 7
    %v2933 = vsub.s32 6, %v2932
    %v2934 = vrot.slane %v2905, %v2933
    %v2935 = vlaneseq
    %v2936 = vshrl.u32 %v2935, 7
    %v2937 = vsub.s32 7, %v2936
    %v2938 = vrot.slane %v2905, %v2937
    %2947 = vmatprep.subr.bf16.mxu0 %v2394
    %2948 = vmatpush1.bf16.msra.mxu0 %v2393
    %2949 = vmatprep.subr.bf16.mxu0 %v2402
    %2950 = vmatpush1.bf16.msra.mxu0 %v2401
    %2951 = vmatprep.subr.bf16.mxu0 %v2410
    %2952 = vmatpush1.bf16.msra.mxu0 %v2409
    %2953 = vmatprep.subr.bf16.mxu0 %v2418
    %2954 = vmatpush1.bf16.msra.mxu0 %v2417
    %2955 = vmatprep.subr.bf16.mxu0 %v2426
    %2956 = vmatpush1.bf16.msra.mxu0 %v2425
    %2957 = vmatprep.subr.bf16.mxu0 %v2434
    %2958 = vmatpush1.bf16.msra.mxu0 %v2433
    %2959 = vmatprep.subr.bf16.mxu0 %v2442
    %2960 = vmatpush1.bf16.msra.mxu0 %v2441
    %2961 = vmatprep.subr.bf16.mxu0 %v2450
    %2962 = vmatpush1.bf16.msra.mxu0 %v2449
    %2963 = vmatprep.subr.bf16.mxu0 %v2458
    %2964 = vmatpush1.bf16.msra.mxu0 %v2457
    %2965 = vmatprep.subr.bf16.mxu0 %v2466
    %2966 = vmatpush1.bf16.msra.mxu0 %v2465
    %2967 = vmatprep.subr.bf16.mxu0 %v2474
    %2968 = vmatpush1.bf16.msra.mxu0 %v2473
    %2969 = vmatprep.subr.bf16.mxu0 %v2482
    %2970 = vmatpush1.bf16.msra.mxu0 %v2481
    %2971 = vmatprep.subr.bf16.mxu0 %v2490
    %2972 = vmatpush1.bf16.msra.mxu0 %v2489
    %2973 = vmatprep.subr.bf16.mxu0 %v2498
    %2974 = vmatpush1.bf16.msra.mxu0 %v2497
    %2975 = vmatprep.subr.bf16.mxu0 %v2506
    %2976 = vmatpush1.bf16.msra.mxu0 %v2505
    %2977 = vmatprep.subr.bf16.mxu0 %v2514
    %2978 = vmatpush1.bf16.msra.mxu0 %v2513
    %2979 = vmatprep.mubr.bf16.mxu0 %v2382
    %2980 = vmatmul.mubr.bf16.gmra.mrb[0].mxu0 %v2381
    %v2981 = vpop.f32.mrb[0].mxu0
    %v2982 = vadd.f32 %v2910, %v2981
    %v2983 = vpop.f32.mrb[0].mxu0
    %v2984 = vadd.f32 %v2914, %v2983
    %v2985 = vpop.f32.mrb[0].mxu0
    %v2986 = vpop.f32.mrb[0].mxu0
    %2987 = vdwg.mxu0
    %2988 = vmatprep.subr.bf16.mxu0 %v2522
    %2989 = vmatpush1.bf16.msra.mxu0 %v2521
    %2990 = vmatprep.subr.bf16.mxu0 %v2530
    %2991 = vmatpush1.bf16.msra.mxu0 %v2529
    %2992 = vmatprep.subr.bf16.mxu0 %v2538
    %2993 = vmatpush1.bf16.msra.mxu0 %v2537
    %2994 = vmatprep.subr.bf16.mxu0 %v2546
    %2995 = vmatpush1.bf16.msra.mxu0 %v2545
    %2996 = vmatprep.subr.bf16.mxu0 %v2554
    %2997 = vmatpush1.bf16.msra.mxu0 %v2553
    %2998 = vmatprep.subr.bf16.mxu0 %v2562
    %2999 = vmatpush1.bf16.msra.mxu0 %v2561
    %3000 = vmatprep.subr.bf16.mxu0 %v2570
    %3001 = vmatpush1.bf16.msra.mxu0 %v2569
    %3002 = vmatprep.subr.bf16.mxu0 %v2578
    %3003 = vmatpush1.bf16.msra.mxu0 %v2577
    %3004 = vmatprep.subr.bf16.mxu0 %v2586
    %3005 = vmatpush1.bf16.msra.mxu0 %v2585
    %3006 = vmatprep.subr.bf16.mxu0 %v2594
    %3007 = vmatpush1.bf16.msra.mxu0 %v2593
    %3008 = vmatprep.subr.bf16.mxu0 %v2602
    %3009 = vmatpush1.bf16.msra.mxu0 %v2601
    %3010 = vmatprep.subr.bf16.mxu0 %v2610
    %3011 = vmatpush1.bf16.msra.mxu0 %v2609
    %3012 = vmatprep.subr.bf16.mxu0 %v2618
    %3013 = vmatpush1.bf16.msra.mxu0 %v2617
    %3014 = vmatprep.subr.bf16.mxu0 %v2626
    %3015 = vmatpush1.bf16.msra.mxu0 %v2625
    %3016 = vmatprep.subr.bf16.mxu0 %v2634
    %3017 = vmatpush1.bf16.msra.mxu0 %v2633
    %3018 = vmatprep.subr.bf16.mxu0 %v2642
    %3019 = vmatpush1.bf16.msra.mxu0 %v2641
    %3020 = vmatprep.mubr.bf16.mxu0 %v2384
    %3021 = vmatmul.mubr.bf16.gmra.mrb[0].mxu0 %v2383
    %v3022 = vpop.f32.mrb[0].mxu0
    %v3023 = vadd.f32 %v2982, %v3022
    %v3024 = vpop.f32.mrb[0].mxu0
    %v3025 = vadd.f32 %v2984, %v3024
    %v3026 = vpop.f32.mrb[0].mxu0
    %v3027 = vpop.f32.mrb[0].mxu0
    %3028 = vdwg.mxu0
    %3029 = vmatprep.subr.bf16.mxu0 %v2650
    %3030 = vmatpush1.bf16.msra.mxu0 %v2649
    %3031 = vmatprep.subr.bf16.mxu0 %v2658
    %3032 = vmatpush1.bf16.msra.mxu0 %v2657
    %3033 = vmatprep.subr.bf16.mxu0 %v2666
    %3034 = vmatpush1.bf16.msra.mxu0 %v2665
    %3035 = vmatprep.subr.bf16.mxu0 %v2674
    %3036 = vmatpush1.bf16.msra.mxu0 %v2673
    %3037 = vmatprep.subr.bf16.mxu0 %v2682
    %3038 = vmatpush1.bf16.msra.mxu0 %v2681
    %3039 = vmatprep.subr.bf16.mxu0 %v2690
    %3040 = vmatpush1.bf16.msra.mxu0 %v2689
    %3041 = vmatprep.subr.bf16.mxu0 %v2698
    %3042 = vmatpush1.bf16.msra.mxu0 %v2697
    %3043 = vmatprep.subr.bf16.mxu0 %v2706
    %3044 = vmatpush1.bf16.msra.mxu0 %v2705
    %3045 = vmatprep.subr.bf16.mxu0 %v2714
    %3046 = vmatpush1.bf16.msra.mxu0 %v2713
    %3047 = vmatprep.subr.bf16.mxu0 %v2722
    %3048 = vmatpush1.bf16.msra.mxu0 %v2721
    %3049 = vmatprep.subr.bf16.mxu0 %v2730
    %3050 = vmatpush1.bf16.msra.mxu0 %v2729
    %3051 = vmatprep.subr.bf16.mxu0 %v2738
    %3052 = vmatpush1.bf16.msra.mxu0 %v2737
    %3053 = vmatprep.subr.bf16.mxu0 %v2746
    %3054 = vmatpush1.bf16.msra.mxu0 %v2745
    %3055 = vmatprep.subr.bf16.mxu0 %v2754
    %3056 = vmatpush1.bf16.msra.mxu0 %v2753
    %3057 = vmatprep.subr.bf16.mxu0 %v2762
    %3058 = vmatpush1.bf16.msra.mxu0 %v2761
    %3059 = vmatprep.subr.bf16.mxu0 %v2770
    %3060 = vmatpush1.bf16.msra.mxu0 %v2769
    %3061 = vmatprep.mubr.bf16.mxu0 %v2386
    %3062 = vmatmul.mubr.bf16.gmra.mrb[0].mxu0 %v2385
    %v3063 = vpop.f32.mrb[0].mxu0
    %v3064 = vadd.f32 %v3023, %v3063
    %v3065 = vpop.f32.mrb[0].mxu0
    %v3066 = vadd.f32 %v3025, %v3065
    %v3067 = vpop.f32.mrb[0].mxu0
    %v3068 = vpop.f32.mrb[0].mxu0
    %3069 = vdwg.mxu0
    %3070 = vmatprep.subr.bf16.mxu0 %v2778
    %3071 = vmatpush1.bf16.msra.mxu0 %v2777
    %3072 = vmatprep.subr.bf16.mxu0 %v2786
    %3073 = vmatpush1.bf16.msra.mxu0 %v2785
    %3074 = vmatprep.subr.bf16.mxu0 %v2794
    %3075 = vmatpush1.bf16.msra.mxu0 %v2793
    %3076 = vmatprep.subr.bf16.mxu0 %v2802
    %3077 = vmatpush1.bf16.msra.mxu0 %v2801
    %3078 = vmatprep.subr.bf16.mxu0 %v2810
    %3079 = vmatpush1.bf16.msra.mxu0 %v2809
    %3080 = vmatprep.subr.bf16.mxu0 %v2818
    %3081 = vmatpush1.bf16.msra.mxu0 %v2817
    %3082 = vmatprep.subr.bf16.mxu0 %v2826
    %3083 = vmatpush1.bf16.msra.mxu0 %v2825
    %3084 = vmatprep.subr.bf16.mxu0 %v2834
    %3085 = vmatpush1.bf16.msra.mxu0 %v2833
    %3086 = vmatprep.subr.bf16.mxu0 %v2842
    %3087 = vmatpush1.bf16.msra.mxu0 %v2841
    %3088 = vmatprep.subr.bf16.mxu0 %v2850
    %3089 = vmatpush1.bf16.msra.mxu0 %v2849
    %3090 = vmatprep.subr.bf16.mxu0 %v2858
    %3091 = vmatpush1.bf16.msra.mxu0 %v2857
    %3092 = vmatprep.subr.bf16.mxu0 %v2866
    %3093 = vmatpush1.bf16.msra.mxu0 %v2865
    %3094 = vmatprep.subr.bf16.mxu0 %v2874
    %3095 = vmatpush1.bf16.msra.mxu0 %v2873
    %3096 = vmatprep.subr.bf16.mxu0 %v2882
    %3097 = vmatpush1.bf16.msra.mxu0 %v2881
    %3098 = vmatprep.subr.bf16.mxu0 %v2890
    %3099 = vmatpush1.bf16.msra.mxu0 %v2889
    %3100 = vmatprep.subr.bf16.mxu0 %v2898
    %3101 = vmatpush1.bf16.msra.mxu0 %v2897
    %3102 = vmatprep.mubr.bf16.mxu0 %v2388
    %3103 = vmatmul.mubr.bf16.gmra.mrb[0].mxu0 %v2387
    %v3104 = vpop.f32.mrb[0].mxu0
    %v3105 = vadd.f32 %v3064, %v3104
    %v3106 = vpop.f32.mrb[0].mxu0
    %v3107 = vadd.f32 %v3066, %v3106
    %v3108 = vpop.f32.mrb[0].mxu0
    %v3109 = vpop.f32.mrb[0].mxu0
    %3110 = vdwg.mxu0
    %3111 = vmatprep.subr.bf16.mxu0 %v2396
    %3112 = vmatpush1.bf16.msra.mxu0 %v2395
    %3113 = vmatprep.subr.bf16.mxu0 %v2404
    %3114 = vmatpush1.bf16.msra.mxu0 %v2403
    %3115 = vmatprep.subr.bf16.mxu0 %v2412
    %3116 = vmatpush1.bf16.msra.mxu0 %v2411
    %3117 = vmatprep.subr.bf16.mxu0 %v2420
    %3118 = vmatpush1.bf16.msra.mxu0 %v2419
    %3119 = vmatprep.subr.bf16.mxu0 %v2428
    %3120 = vmatpush1.bf16.msra.mxu0 %v2427
    %3121 = vmatprep.subr.bf16.mxu0 %v2436
    %3122 = vmatpush1.bf16.msra.mxu0 %v2435
    %3123 = vmatprep.subr.bf16.mxu0 %v2444
    %3124 = vmatpush1.bf16.msra.mxu0 %v2443
    %3125 = vmatprep.subr.bf16.mxu0 %v2452
    %3126 = vmatpush1.bf16.msra.mxu0 %v2451
    %3127 = vmatprep.subr.bf16.mxu0 %v2460
    %3128 = vmatpush1.bf16.msra.mxu0 %v2459
    %3129 = vmatprep.subr.bf16.mxu0 %v2468
    %3130 = vmatpush1.bf16.msra.mxu0 %v2467
    %3131 = vmatprep.subr.bf16.mxu0 %v2476
    %3132 = vmatpush1.bf16.msra.mxu0 %v2475
    %3133 = vmatprep.subr.bf16.mxu0 %v2484
    %3134 = vmatpush1.bf16.msra.mxu0 %v2483
    %3135 = vmatprep.subr.bf16.mxu0 %v2492
    %3136 = vmatpush1.bf16.msra.mxu0 %v2491
    %3137 = vmatprep.subr.bf16.mxu0 %v2500
    %3138 = vmatpush1.bf16.msra.mxu0 %v2499
    %3139 = vmatprep.subr.bf16.mxu0 %v2508
    %3140 = vmatpush1.bf16.msra.mxu0 %v2507
    %3141 = vmatprep.subr.bf16.mxu0 %v2516
    %3142 = vmatpush1.bf16.msra.mxu0 %v2515
    %3143 = vmatprep.mubr.bf16.mxu0 %v2382
    %3144 = vmatmul.mubr.bf16.gmra.mrb[0].mxu0 %v2381
    %v3145 = vpop.f32.mrb[0].mxu0
    %v3146 = vadd.f32 %v2918, %v3145
    %v3147 = vpop.f32.mrb[0].mxu0
    %v3148 = vadd.f32 %v2922, %v3147
    %v3149 = vpop.f32.mrb[0].mxu0
    %v3150 = vpop.f32.mrb[0].mxu0
    %3151 = vdwg.mxu0
    %3152 = vmatprep.subr.bf16.mxu0 %v2524
    %3153 = vmatpush1.bf16.msra.mxu0 %v2523
    %3154 = vmatprep.subr.bf16.mxu0 %v2532
    %3155 = vmatpush1.bf16.msra.mxu0 %v2531
    %3156 = vmatprep.subr.bf16.mxu0 %v2540
    %3157 = vmatpush1.bf16.msra.mxu0 %v2539
    %3158 = vmatprep.subr.bf16.mxu0 %v2548
    %3159 = vmatpush1.bf16.msra.mxu0 %v2547
    %3160 = vmatprep.subr.bf16.mxu0 %v2556
    %3161 = vmatpush1.bf16.msra.mxu0 %v2555
    %3162 = vmatprep.subr.bf16.mxu0 %v2564
    %3163 = vmatpush1.bf16.msra.mxu0 %v2563
    %3164 = vmatprep.subr.bf16.mxu0 %v2572
    %3165 = vmatpush1.bf16.msra.mxu0 %v2571
    %3166 = vmatprep.subr.bf16.mxu0 %v2580
    %3167 = vmatpush1.bf16.msra.mxu0 %v2579
    %3168 = vmatprep.subr.bf16.mxu0 %v2588
    %3169 = vmatpush1.bf16.msra.mxu0 %v2587
    %3170 = vmatprep.subr.bf16.mxu0 %v2596
    %3171 = vmatpush1.bf16.msra.mxu0 %v2595
    %3172 = vmatprep.subr.bf16.mxu0 %v2604
    %3173 = vmatpush1.bf16.msra.mxu0 %v2603
    %3174 = vmatprep.subr.bf16.mxu0 %v2612
    %3175 = vmatpush1.bf16.msra.mxu0 %v2611
    %3176 = vmatprep.subr.bf16.mxu0 %v2620
    %3177 = vmatpush1.bf16.msra.mxu0 %v2619
    %3178 = vmatprep.subr.bf16.mxu0 %v2628
    %3179 = vmatpush1.bf16.msra.mxu0 %v2627
    %3180 = vmatprep.subr.bf16.mxu0 %v2636
    %3181 = vmatpush1.bf16.msra.mxu0 %v2635
    %3182 = vmatprep.subr.bf16.mxu0 %v2644
    %3183 = vmatpush1.bf16.msra.mxu0 %v2643
    %3184 = vmatprep.mubr.bf16.mxu0 %v2384
    %3185 = vmatmul.mubr.bf16.gmra.mrb[0].mxu0 %v2383
    %v3186 = vpop.f32.mrb[0].mxu0
    %v3187 = vadd.f32 %v3146, %v3186
    %v3188 = vpop.f32.mrb[0].mxu0
    %v3189 = vadd.f32 %v3148, %v3188
    %v3190 = vpop.f32.mrb[0].mxu0
    %v3191 = vpop.f32.mrb[0].mxu0
    %3192 = vdwg.mxu0
    %3193 = vmatprep.subr.bf16.mxu0 %v2652
    %3194 = vmatpush1.bf16.msra.mxu0 %v2651
    %3195 = vmatprep.subr.bf16.mxu0 %v2660
    %3196 = vmatpush1.bf16.msra.mxu0 %v2659
    %3197 = vmatprep.subr.bf16.mxu0 %v2668
    %3198 = vmatpush1.bf16.msra.mxu0 %v2667
    %3199 = vmatprep.subr.bf16.mxu0 %v2676
    %3200 = vmatpush1.bf16.msra.mxu0 %v2675
    %3201 = vmatprep.subr.bf16.mxu0 %v2684
    %3202 = vmatpush1.bf16.msra.mxu0 %v2683
    %3203 = vmatprep.subr.bf16.mxu0 %v2692
    %3204 = vmatpush1.bf16.msra.mxu0 %v2691
    %3205 = vmatprep.subr.bf16.mxu0 %v2700
    %3206 = vmatpush1.bf16.msra.mxu0 %v2699
    %3207 = vmatprep.subr.bf16.mxu0 %v2708
    %3208 = vmatpush1.bf16.msra.mxu0 %v2707
    %3209 = vmatprep.subr.bf16.mxu0 %v2716
    %3210 = vmatpush1.bf16.msra.mxu0 %v2715
    %3211 = vmatprep.subr.bf16.mxu0 %v2724
    %3212 = vmatpush1.bf16.msra.mxu0 %v2723
    %3213 = vmatprep.subr.bf16.mxu0 %v2732
    %3214 = vmatpush1.bf16.msra.mxu0 %v2731
    %3215 = vmatprep.subr.bf16.mxu0 %v2740
    %3216 = vmatpush1.bf16.msra.mxu0 %v2739
    %3217 = vmatprep.subr.bf16.mxu0 %v2748
    %3218 = vmatpush1.bf16.msra.mxu0 %v2747
    %3219 = vmatprep.subr.bf16.mxu0 %v2756
    %3220 = vmatpush1.bf16.msra.mxu0 %v2755
    %3221 = vmatprep.subr.bf16.mxu0 %v2764
    %3222 = vmatpush1.bf16.msra.mxu0 %v2763
    %3223 = vmatprep.subr.bf16.mxu0 %v2772
    %3224 = vmatpush1.bf16.msra.mxu0 %v2771
    %3225 = vmatprep.mubr.bf16.mxu0 %v2386
    %3226 = vmatmul.mubr.bf16.gmra.mrb[0].mxu0 %v2385
    %v3227 = vpop.f32.mrb[0].mxu0
    %v3228 = vadd.f32 %v3187, %v3227
    %v3229 = vpop.f32.mrb[0].mxu0
    %v3230 = vadd.f32 %v3189, %v3229
    %v3231 = vpop.f32.mrb[0].mxu0
    %v3232 = vpop.f32.mrb[0].mxu0
    %3233 = vdwg.mxu0
    %3234 = vmatprep.subr.bf16.mxu0 %v2780
    %3235 = vmatpush1.bf16.msra.mxu0 %v2779
    %3236 = vmatprep.subr.bf16.mxu0 %v2788
    %3237 = vmatpush1.bf16.msra.mxu0 %v2787
    %3238 = vmatprep.subr.bf16.mxu0 %v2796
    %3239 = vmatpush1.bf16.msra.mxu0 %v2795
    %3240 = vmatprep.subr.bf16.mxu0 %v2804
    %3241 = vmatpush1.bf16.msra.mxu0 %v2803
    %3242 = vmatprep.subr.bf16.mxu0 %v2812
    %3243 = vmatpush1.bf16.msra.mxu0 %v2811
    %3244 = vmatprep.subr.bf16.mxu0 %v2820
    %3245 = vmatpush1.bf16.msra.mxu0 %v2819
    %3246 = vmatprep.subr.bf16.mxu0 %v2828
    %3247 = vmatpush1.bf16.msra.mxu0 %v2827
    %3248 = vmatprep.subr.bf16.mxu0 %v2836
    %3249 = vmatpush1.bf16.msra.mxu0 %v2835
    %3250 = vmatprep.subr.bf16.mxu0 %v2844
    %3251 = vmatpush1.bf16.msra.mxu0 %v2843
    %3252 = vmatprep.subr.bf16.mxu0 %v2852
    %3253 = vmatpush1.bf16.msra.mxu0 %v2851
    %3254 = vmatprep.subr.bf16.mxu0 %v2860
    %3255 = vmatpush1.bf16.msra.mxu0 %v2859
    %3256 = vmatprep.subr.bf16.mxu0 %v2868
    %3257 = vmatpush1.bf16.msra.mxu0 %v2867
    %3258 = vmatprep.subr.bf16.mxu0 %v2876
    %3259 = vmatpush1.bf16.msra.mxu0 %v2875
    %3260 = vmatprep.subr.bf16.mxu0 %v2884
    %3261 = vmatpush1.bf16.msra.mxu0 %v2883
    %3262 = vmatprep.subr.bf16.mxu0 %v2892
    %3263 = vmatpush1.bf16.msra.mxu0 %v2891
    %3264 = vmatprep.subr.bf16.mxu0 %v2900
    %3265 = vmatpush1.bf16.msra.mxu0 %v2899
    %3266 = vmatprep.mubr.bf16.mxu0 %v2388
    %3267 = vmatmul.mubr.bf16.gmra.mrb[0].mxu0 %v2387
    %v3268 = vpop.f32.mrb[0].mxu0
    %v3269 = vadd.f32 %v3228, %v3268
    %v3270 = vpop.f32.mrb[0].mxu0
    %v3271 = vadd.f32 %v3230, %v3270
    %v3272 = vpop.f32.mrb[0].mxu0
    %v3273 = vpop.f32.mrb[0].mxu0
    %3274 = vdwg.mxu0
    %3275 = vmatprep.subr.bf16.mxu0 %v2398
    %3276 = vmatpush1.bf16.msra.mxu0 %v2397
    %3277 = vmatprep.subr.bf16.mxu0 %v2406
    %3278 = vmatpush1.bf16.msra.mxu0 %v2405
    %3279 = vmatprep.subr.bf16.mxu0 %v2414
    %3280 = vmatpush1.bf16.msra.mxu0 %v2413
    %3281 = vmatprep.subr.bf16.mxu0 %v2422
    %3282 = vmatpush1.bf16.msra.mxu0 %v2421
    %3283 = vmatprep.subr.bf16.mxu0 %v2430
    %3284 = vmatpush1.bf16.msra.mxu0 %v2429
    %3285 = vmatprep.subr.bf16.mxu0 %v2438
    %3286 = vmatpush1.bf16.msra.mxu0 %v2437
    %3287 = vmatprep.subr.bf16.mxu0 %v2446
    %3288 = vmatpush1.bf16.msra.mxu0 %v2445
    %3289 = vmatprep.subr.bf16.mxu0 %v2454
    %3290 = vmatpush1.bf16.msra.mxu0 %v2453
    %3291 = vmatprep.subr.bf16.mxu0 %v2462
    %3292 = vmatpush1.bf16.msra.mxu0 %v2461
    %3293 = vmatprep.subr.bf16.mxu0 %v2470
    %3294 = vmatpush1.bf16.msra.mxu0 %v2469
    %3295 = vmatprep.subr.bf16.mxu0 %v2478
    %3296 = vmatpush1.bf16.msra.mxu0 %v2477
    %3297 = vmatprep.subr.bf16.mxu0 %v2486
    %3298 = vmatpush1.bf16.msra.mxu0 %v2485
    %3299 = vmatprep.subr.bf16.mxu0 %v2494
    %3300 = vmatpush1.bf16.msra.mxu0 %v2493
    %3301 = vmatprep.subr.bf16.mxu0 %v2502
    %3302 = vmatpush1.bf16.msra.mxu0 %v2501
    %3303 = vmatprep.subr.bf16.mxu0 %v2510
    %3304 = vmatpush1.bf16.msra.mxu0 %v2509
    %3305 = vmatprep.subr.bf16.mxu0 %v2518
    %3306 = vmatpush1.bf16.msra.mxu0 %v2517
    %3307 = vmatprep.mubr.bf16.mxu0 %v2382
    %3308 = vmatmul.mubr.bf16.gmra.mrb[0].mxu0 %v2381
    %v3309 = vpop.f32.mrb[0].mxu0
    %v3310 = vadd.f32 %v2926, %v3309
    %v3311 = vpop.f32.mrb[0].mxu0
    %v3312 = vadd.f32 %v2930, %v3311
    %v3313 = vpop.f32.mrb[0].mxu0
    %v3314 = vpop.f32.mrb[0].mxu0
    %3315 = vdwg.mxu0
    %3316 = vmatprep.subr.bf16.mxu0 %v2526
    %3317 = vmatpush1.bf16.msra.mxu0 %v2525
    %3318 = vmatprep.subr.bf16.mxu0 %v2534
    %3319 = vmatpush1.bf16.msra.mxu0 %v2533
    %3320 = vmatprep.subr.bf16.mxu0 %v2542
    %3321 = vmatpush1.bf16.msra.mxu0 %v2541
    %3322 = vmatprep.subr.bf16.mxu0 %v2550
    %3323 = vmatpush1.bf16.msra.mxu0 %v2549
    %3324 = vmatprep.subr.bf16.mxu0 %v2558
    %3325 = vmatpush1.bf16.msra.mxu0 %v2557
    %3326 = vmatprep.subr.bf16.mxu0 %v2566
    %3327 = vmatpush1.bf16.msra.mxu0 %v2565
    %3328 = vmatprep.subr.bf16.mxu0 %v2574
    %3329 = vmatpush1.bf16.msra.mxu0 %v2573
    %3330 = vmatprep.subr.bf16.mxu0 %v2582
    %3331 = vmatpush1.bf16.msra.mxu0 %v2581
    %3332 = vmatprep.subr.bf16.mxu0 %v2590
    %3333 = vmatpush1.bf16.msra.mxu0 %v2589
    %3334 = vmatprep.subr.bf16.mxu0 %v2598
    %3335 = vmatpush1.bf16.msra.mxu0 %v2597
    %3336 = vmatprep.subr.bf16.mxu0 %v2606
    %3337 = vmatpush1.bf16.msra.mxu0 %v2605
    %3338 = vmatprep.subr.bf16.mxu0 %v2614
    %3339 = vmatpush1.bf16.msra.mxu0 %v2613
    %3340 = vmatprep.subr.bf16.mxu0 %v2622
    %3341 = vmatpush1.bf16.msra.mxu0 %v2621
    %3342 = vmatprep.subr.bf16.mxu0 %v2630
    %3343 = vmatpush1.bf16.msra.mxu0 %v2629
    %3344 = vmatprep.subr.bf16.mxu0 %v2638
    %3345 = vmatpush1.bf16.msra.mxu0 %v2637
    %3346 = vmatprep.subr.bf16.mxu0 %v2646
    %3347 = vmatpush1.bf16.msra.mxu0 %v2645
    %3348 = vmatprep.mubr.bf16.mxu0 %v2384
    %3349 = vmatmul.mubr.bf16.gmra.mrb[0].mxu0 %v2383
    %v3350 = vpop.f32.mrb[0].mxu0
    %v3351 = vadd.f32 %v3310, %v3350
    %v3352 = vpop.f32.mrb[0].mxu0
    %v3353 = vadd.f32 %v3312, %v3352
    %v3354 = vpop.f32.mrb[0].mxu0
    %v3355 = vpop.f32.mrb[0].mxu0
    %3356 = vdwg.mxu0
    %3357 = vmatprep.subr.bf16.mxu0 %v2654
    %3358 = vmatpush1.bf16.msra.mxu0 %v2653
    %3359 = vmatprep.subr.bf16.mxu0 %v2662
    %3360 = vmatpush1.bf16.msra.mxu0 %v2661
    %3361 = vmatprep.subr.bf16.mxu0 %v2670
    %3362 = vmatpush1.bf16.msra.mxu0 %v2669
    %3363 = vmatprep.subr.bf16.mxu0 %v2678
    %3364 = vmatpush1.bf16.msra.mxu0 %v2677
    %3365 = vmatprep.subr.bf16.mxu0 %v2686
    %3366 = vmatpush1.bf16.msra.mxu0 %v2685
    %3367 = vmatprep.subr.bf16.mxu0 %v2694
    %3368 = vmatpush1.bf16.msra.mxu0 %v2693
    %3369 = vmatprep.subr.bf16.mxu0 %v2702
    %3370 = vmatpush1.bf16.msra.mxu0 %v2701
    %3371 = vmatprep.subr.bf16.mxu0 %v2710
    %3372 = vmatpush1.bf16.msra.mxu0 %v2709
    %3373 = vmatprep.subr.bf16.mxu0 %v2718
    %3374 = vmatpush1.bf16.msra.mxu0 %v2717
    %3375 = vmatprep.subr.bf16.mxu0 %v2726
    %3376 = vmatpush1.bf16.msra.mxu0 %v2725
    %3377 = vmatprep.subr.bf16.mxu0 %v2734
    %3378 = vmatpush1.bf16.msra.mxu0 %v2733
    %3379 = vmatprep.subr.bf16.mxu0 %v2742
    %3380 = vmatpush1.bf16.msra.mxu0 %v2741
    %3381 = vmatprep.subr.bf16.mxu0 %v2750
    %3382 = vmatpush1.bf16.msra.mxu0 %v2749
    %3383 = vmatprep.subr.bf16.mxu0 %v2758
    %3384 = vmatpush1.bf16.msra.mxu0 %v2757
    %3385 = vmatprep.subr.bf16.mxu0 %v2766
    %3386 = vmatpush1.bf16.msra.mxu0 %v2765
    %3387 = vmatprep.subr.bf16.mxu0 %v2774
    %3388 = vmatpush1.bf16.msra.mxu0 %v2773
    %3389 = vmatprep.mubr.bf16.mxu0 %v2386
    %3390 = vmatmul.mubr.bf16.gmra.mrb[0].mxu0 %v2385
    %v3391 = vpop.f32.mrb[0].mxu0
    %v3392 = vadd.f32 %v3351, %v3391
    %v3393 = vpop.f32.mrb[0].mxu0
    %v3394 = vadd.f32 %v3353, %v3393
    %v3395 = vpop.f32.mrb[0].mxu0
    %v3396 = vpop.f32.mrb[0].mxu0
    %3397 = vdwg.mxu0
    %3398 = vmatprep.subr.bf16.mxu0 %v2782
    %3399 = vmatpush1.bf16.msra.mxu0 %v2781
    %3400 = vmatprep.subr.bf16.mxu0 %v2790
    %3401 = vmatpush1.bf16.msra.mxu0 %v2789
    %3402 = vmatprep.subr.bf16.mxu0 %v2798
    %3403 = vmatpush1.bf16.msra.mxu0 %v2797
    %3404 = vmatprep.subr.bf16.mxu0 %v2806
    %3405 = vmatpush1.bf16.msra.mxu0 %v2805
    %3406 = vmatprep.subr.bf16.mxu0 %v2814
    %3407 = vmatpush1.bf16.msra.mxu0 %v2813
    %3408 = vmatprep.subr.bf16.mxu0 %v2822
    %3409 = vmatpush1.bf16.msra.mxu0 %v2821
    %3410 = vmatprep.subr.bf16.mxu0 %v2830
    %3411 = vmatpush1.bf16.msra.mxu0 %v2829
    %3412 = vmatprep.subr.bf16.mxu0 %v2838
    %3413 = vmatpush1.bf16.msra.mxu0 %v2837
    %3414 = vmatprep.subr.bf16.mxu0 %v2846
    %3415 = vmatpush1.bf16.msra.mxu0 %v2845
    %3416 = vmatprep.subr.bf16.mxu0 %v2854
    %3417 = vmatpush1.bf16.msra.mxu0 %v2853
    %3418 = vmatprep.subr.bf16.mxu0 %v2862
    %3419 = vmatpush1.bf16.msra.mxu0 %v2861
    %3420 = vmatprep.subr.bf16.mxu0 %v2870
    %3421 = vmatpush1.bf16.msra.mxu0 %v2869
    %3422 = vmatprep.subr.bf16.mxu0 %v2878
    %3423 = vmatpush1.bf16.msra.mxu0 %v2877
    %3424 = vmatprep.subr.bf16.mxu0 %v2886
    %3425 = vmatpush1.bf16.msra.mxu0 %v2885
    %3426 = vmatprep.subr.bf16.mxu0 %v2894
    %3427 = vmatpush1.bf16.msra.mxu0 %v2893
    %3428 = vmatprep.subr.bf16.mxu0 %v2902
    %3429 = vmatpush1.bf16.msra.mxu0 %v2901
    %3430 = vmatprep.mubr.bf16.mxu0 %v2388
    %3431 = vmatmul.mubr.bf16.gmra.mrb[0].mxu0 %v2387
    %v3432 = vpop.f32.mrb[0].mxu0
    %v3433 = vadd.f32 %v3392, %v3432
    %v3434 = vpop.f32.mrb[0].mxu0
    %v3435 = vadd.f32 %v3394, %v3434
    %v3436 = vpop.f32.mrb[0].mxu0
    %v3437 = vpop.f32.mrb[0].mxu0
    %3438 = vdwg.mxu0
    %3439 = vmatprep.subr.bf16.mxu0 %v2400
    %3440 = vmatpush1.bf16.msra.mxu0 %v2399
    %3441 = vmatprep.subr.bf16.mxu0 %v2408
    %3442 = vmatpush1.bf16.msra.mxu0 %v2407
    %3443 = vmatprep.subr.bf16.mxu0 %v2416
    %3444 = vmatpush1.bf16.msra.mxu0 %v2415
    %3445 = vmatprep.subr.bf16.mxu0 %v2424
    %3446 = vmatpush1.bf16.msra.mxu0 %v2423
    %3447 = vmatprep.subr.bf16.mxu0 %v2432
    %3448 = vmatpush1.bf16.msra.mxu0 %v2431
    %3449 = vmatprep.subr.bf16.mxu0 %v2440
    %3450 = vmatpush1.bf16.msra.mxu0 %v2439
    %3451 = vmatprep.subr.bf16.mxu0 %v2448
    %3452 = vmatpush1.bf16.msra.mxu0 %v2447
    %3453 = vmatprep.subr.bf16.mxu0 %v2456
    %3454 = vmatpush1.bf16.msra.mxu0 %v2455
    %3455 = vmatprep.subr.bf16.mxu0 %v2464
    %3456 = vmatpush1.bf16.msra.mxu0 %v2463
    %3457 = vmatprep.subr.bf16.mxu0 %v2472
    %3458 = vmatpush1.bf16.msra.mxu0 %v2471
    %3459 = vmatprep.subr.bf16.mxu0 %v2480
    %3460 = vmatpush1.bf16.msra.mxu0 %v2479
    %3461 = vmatprep.subr.bf16.mxu0 %v2488
    %3462 = vmatpush1.bf16.msra.mxu0 %v2487
    %3463 = vmatprep.subr.bf16.mxu0 %v2496
    %3464 = vmatpush1.bf16.msra.mxu0 %v2495
    %3465 = vmatprep.subr.bf16.mxu0 %v2504
    %3466 = vmatpush1.bf16.msra.mxu0 %v2503
    %3467 = vmatprep.subr.bf16.mxu0 %v2512
    %3468 = vmatpush1.bf16.msra.mxu0 %v2511
    %3469 = vmatprep.subr.bf16.mxu0 %v2520
    %3470 = vmatpush1.bf16.msra.mxu0 %v2519
    %3471 = vmatprep.mubr.bf16.mxu0 %v2382
    %3472 = vmatmul.mubr.bf16.gmra.mrb[0].mxu0 %v2381
    %v3473 = vpop.f32.mrb[0].mxu0
    %v3474 = vadd.f32 %v2934, %v3473
    %v3475 = vpop.f32.mrb[0].mxu0
    %v3476 = vadd.f32 %v2938, %v3475
    %v3477 = vpop.f32.mrb[0].mxu0
    %v3478 = vpop.f32.mrb[0].mxu0
    %3479 = vdwg.mxu0
    %3480 = vmatprep.subr.bf16.mxu0 %v2528
    %3481 = vmatpush1.bf16.msra.mxu0 %v2527
    %3482 = vmatprep.subr.bf16.mxu0 %v2536
    %3483 = vmatpush1.bf16.msra.mxu0 %v2535
    %3484 = vmatprep.subr.bf16.mxu0 %v2544
    %3485 = vmatpush1.bf16.msra.mxu0 %v2543
    %3486 = vmatprep.subr.bf16.mxu0 %v2552
    %3487 = vmatpush1.bf16.msra.mxu0 %v2551
    %3488 = vmatprep.subr.bf16.mxu0 %v2560
    %3489 = vmatpush1.bf16.msra.mxu0 %v2559
    %3490 = vmatprep.subr.bf16.mxu0 %v2568
    %3491 = vmatpush1.bf16.msra.mxu0 %v2567
    %3492 = vmatprep.subr.bf16.mxu0 %v2576
    %3493 = vmatpush1.bf16.msra.mxu0 %v2575
    %3494 = vmatprep.subr.bf16.mxu0 %v2584
    %3495 = vmatpush1.bf16.msra.mxu0 %v2583
    %3496 = vmatprep.subr.bf16.mxu0 %v2592
    %3497 = vmatpush1.bf16.msra.mxu0 %v2591
    %3498 = vmatprep.subr.bf16.mxu0 %v2600
    %3499 = vmatpush1.bf16.msra.mxu0 %v2599
    %3500 = vmatprep.subr.bf16.mxu0 %v2608
    %3501 = vmatpush1.bf16.msra.mxu0 %v2607
    %3502 = vmatprep.subr.bf16.mxu0 %v2616
    %3503 = vmatpush1.bf16.msra.mxu0 %v2615
    %3504 = vmatprep.subr.bf16.mxu0 %v2624
    %3505 = vmatpush1.bf16.msra.mxu0 %v2623
    %3506 = vmatprep.subr.bf16.mxu0 %v2632
    %3507 = vmatpush1.bf16.msra.mxu0 %v2631
    %3508 = vmatprep.subr.bf16.mxu0 %v2640
    %3509 = vmatpush1.bf16.msra.mxu0 %v2639
    %3510 = vmatprep.subr.bf16.mxu0 %v2648
    %3511 = vmatpush1.bf16.msra.mxu0 %v2647
    %3512 = vmatprep.mubr.bf16.mxu0 %v2384
    %3513 = vmatmul.mubr.bf16.gmra.mrb[0].mxu0 %v2383
    %v3514 = vpop.f32.mrb[0].mxu0
    %v3515 = vadd.f32 %v3474, %v3514
    %v3516 = vpop.f32.mrb[0].mxu0
    %v3517 = vadd.f32 %v3476, %v3516
    %v3518 = vpop.f32.mrb[0].mxu0
    %v3519 = vpop.f32.mrb[0].mxu0
    %3520 = vdwg.mxu0
    %3521 = vmatprep.subr.bf16.mxu0 %v2656
    %3522 = vmatpush1.bf16.msra.mxu0 %v2655
    %3523 = vmatprep.subr.bf16.mxu0 %v2664
    %3524 = vmatpush1.bf16.msra.mxu0 %v2663
    %3525 = vmatprep.subr.bf16.mxu0 %v2672
    %3526 = vmatpush1.bf16.msra.mxu0 %v2671
    %3527 = vmatprep.subr.bf16.mxu0 %v2680
    %3528 = vmatpush1.bf16.msra.mxu0 %v2679
    %3529 = vmatprep.subr.bf16.mxu0 %v2688
    %3530 = vmatpush1.bf16.msra.mxu0 %v2687
    %3531 = vmatprep.subr.bf16.mxu0 %v2696
    %3532 = vmatpush1.bf16.msra.mxu0 %v2695
    %3533 = vmatprep.subr.bf16.mxu0 %v2704
    %3534 = vmatpush1.bf16.msra.mxu0 %v2703
    %3535 = vmatprep.subr.bf16.mxu0 %v2712
    %3536 = vmatpush1.bf16.msra.mxu0 %v2711
    %3537 = vmatprep.subr.bf16.mxu0 %v2720
    %3538 = vmatpush1.bf16.msra.mxu0 %v2719
    %3539 = vmatprep.subr.bf16.mxu0 %v2728
    %3540 = vmatpush1.bf16.msra.mxu0 %v2727
    %3541 = vmatprep.subr.bf16.mxu0 %v2736
    %3542 = vmatpush1.bf16.msra.mxu0 %v2735
    %3543 = vmatprep.subr.bf16.mxu0 %v2744
    %3544 = vmatpush1.bf16.msra.mxu0 %v2743
    %3545 = vmatprep.subr.bf16.mxu0 %v2752
    %3546 = vmatpush1.bf16.msra.mxu0 %v2751
    %3547 = vmatprep.subr.bf16.mxu0 %v2760
    %3548 = vmatpush1.bf16.msra.mxu0 %v2759
    %3549 = vmatprep.subr.bf16.mxu0 %v2768
    %3550 = vmatpush1.bf16.msra.mxu0 %v2767
    %3551 = vmatprep.subr.bf16.mxu0 %v2776
    %3552 = vmatpush1.bf16.msra.mxu0 %v2775
    %3553 = vmatprep.mubr.bf16.mxu0 %v2386
    %3554 = vmatmul.mubr.bf16.gmra.mrb[0].mxu0 %v2385
    %v3555 = vpop.f32.mrb[0].mxu0
    %v3556 = vadd.f32 %v3515, %v3555
    %v3557 = vpop.f32.mrb[0].mxu0
    %v3558 = vadd.f32 %v3517, %v3557
    %v3559 = vpop.f32.mrb[0].mxu0
    %v3560 = vpop.f32.mrb[0].mxu0
    %3561 = vdwg.mxu0
    %3562 = vmatprep.subr.bf16.mxu0 %v2784
    %3563 = vmatpush1.bf16.msra.mxu0 %v2783
    %3564 = vmatprep.subr.bf16.mxu0 %v2792
    %3565 = vmatpush1.bf16.msra.mxu0 %v2791
    %3566 = vmatprep.subr.bf16.mxu0 %v2800
    %3567 = vmatpush1.bf16.msra.mxu0 %v2799
    %3568 = vmatprep.subr.bf16.mxu0 %v2808
    %3569 = vmatpush1.bf16.msra.mxu0 %v2807
    %3570 = vmatprep.subr.bf16.mxu0 %v2816
    %3571 = vmatpush1.bf16.msra.mxu0 %v2815
    %3572 = vmatprep.subr.bf16.mxu0 %v2824
    %3573 = vmatpush1.bf16.msra.mxu0 %v2823
    %3574 = vmatprep.subr.bf16.mxu0 %v2832
    %3575 = vmatpush1.bf16.msra.mxu0 %v2831
    %3576 = vmatprep.subr.bf16.mxu0 %v2840
    %3577 = vmatpush1.bf16.msra.mxu0 %v2839
    %3578 = vmatprep.subr.bf16.mxu0 %v2848
    %3579 = vmatpush1.bf16.msra.mxu0 %v2847
    %3580 = vmatprep.subr.bf16.mxu0 %v2856
    %3581 = vmatpush1.bf16.msra.mxu0 %v2855
    %3582 = vmatprep.subr.bf16.mxu0 %v2864
    %3583 = vmatpush1.bf16.msra.mxu0 %v2863
    %3584 = vmatprep.subr.bf16.mxu0 %v2872
    %3585 = vmatpush1.bf16.msra.mxu0 %v2871
    %3586 = vmatprep.subr.bf16.mxu0 %v2880
    %3587 = vmatpush1.bf16.msra.mxu0 %v2879
    %3588 = vmatprep.subr.bf16.mxu0 %v2888
    %3589 = vmatpush1.bf16.msra.mxu0 %v2887
    %3590 = vmatprep.subr.bf16.mxu0 %v2896
    %3591 = vmatpush1.bf16.msra.mxu0 %v2895
    %3592 = vmatprep.subr.bf16.mxu0 %v2904
    %3593 = vmatpush1.bf16.msra.mxu0 %v2903
    %3594 = vmatprep.mubr.bf16.mxu0 %v2388
    %3595 = vmatmul.mubr.bf16.gmra.mrb[0].mxu0 %v2387
    %v3596 = vpop.f32.mrb[0].mxu0
    %v3597 = vadd.f32 %v3556, %v3596
    %v3598 = vpop.f32.mrb[0].mxu0
    %v3599 = vadd.f32 %v3558, %v3598
    %v3600 = vpop.f32.mrb[0].mxu0
    %v3601 = vpop.f32.mrb[0].mxu0
    %3602 = vdwg.mxu0
    %v3603 = vmax.f32 %v3105, 0.0
    %v3604 = vmax.f32 %v3107, 0.0
    %v3605 = vmax.f32 %v3269, 0.0
    %v3606 = vmax.f32 %v3271, 0.0
    %v3607 = vmax.f32 %v3433, 0.0
    %v3608 = vmax.f32 %v3435, 0.0
    %v3609 = vmax.f32 %v3597, 0.0
    %v3610 = vmax.f32 %v3599, 0.0
    %v3611 = vpack.c.bf16 %v3603, %v3603
    %v3612 = vpack.c.bf16 %v3604, %v3604
    %v3613 = vpack.c.bf16 %v3605, %v3605
    %v3614 = vpack.c.bf16 %v3606, %v3606
    %v3615 = vpack.c.bf16 %v3607, %v3607
    %v3616 = vpack.c.bf16 %v3608, %v3608
    %v3617 = vpack.c.bf16 %v3609, %v3609
    %v3618 = vpack.c.bf16 %v3610, %v3610
    %s3619 = smul.u32 %s2389, 1
    %s3620 = sshll.u32 %s3619, 4
    %3621 = dma.done %s150, %s3620
    %v3622 = vld [vmem:[#allocation3] sm:$0xff]
    %v3623 = vld [vmem:[#allocation3 + $0x8] sm:$0xff]
    %v3624 = vld [vmem:[#allocation3 + $0x10] sm:$0xff]
    %v3625 = vld [vmem:[#allocation3 + $0x18] sm:$0xff]
    %v3626 = vld [vmem:[#allocation3 + $0x20] sm:$0xff]
    %v3627 = vld [vmem:[#allocation3 + $0x28] sm:$0xff]
    %v3628 = vld [vmem:[#allocation3 + $0x30] sm:$0xff]
    %v3629 = vld [vmem:[#allocation3 + $0x38] sm:$0xff]
    %v3630 = vld [vmem:[#allocation3 + $0x40] sm:$0xff]
    %v3631 = vld [vmem:[#allocation3 + $0x48] sm:$0xff]
    %v3632 = vld [vmem:[#allocation3 + $0x50] sm:$0xff]
    %v3633 = vld [vmem:[#allocation3 + $0x58] sm:$0xff]
    %v3634 = vld [vmem:[#allocation3 + $0x60] sm:$0xff]
    %v3635 = vld [vmem:[#allocation3 + $0x68] sm:$0xff]
    %v3636 = vld [vmem:[#allocation3 + $0x70] sm:$0xff]
    %v3637 = vld [vmem:[#allocation3 + $0x78] sm:$0xff]
    %v3638 = vld [vmem:[#allocation3 + $0x80] sm:$0xff]
    %v3639 = vld [vmem:[#allocation3 + $0x88] sm:$0xff]
    %v3640 = vld [vmem:[#allocation3 + $0x90] sm:$0xff]
    %v3641 = vld [vmem:[#allocation3 + $0x98] sm:$0xff]
    %v3642 = vld [vmem:[#allocation3 + $0xa0] sm:$0xff]
    %v3643 = vld [vmem:[#allocation3 + $0xa8] sm:$0xff]
    %v3644 = vld [vmem:[#allocation3 + $0xb0] sm:$0xff]
    %v3645 = vld [vmem:[#allocation3 + $0xb8] sm:$0xff]
    %v3646 = vld [vmem:[#allocation3 + $0xc0] sm:$0xff]
    %v3647 = vld [vmem:[#allocation3 + $0xc8] sm:$0xff]
    %v3648 = vld [vmem:[#allocation3 + $0xd0] sm:$0xff]
    %v3649 = vld [vmem:[#allocation3 + $0xd8] sm:$0xff]
    %v3650 = vld [vmem:[#allocation3 + $0xe0] sm:$0xff]
    %v3651 = vld [vmem:[#allocation3 + $0xe8] sm:$0xff]
    %v3652 = vld [vmem:[#allocation3 + $0xf0] sm:$0xff]
    %v3653 = vld [vmem:[#allocation3 + $0xf8] sm:$0xff]
    %v3654 = vld [vmem:[#allocation3 + $0x100] sm:$0xff]
    %v3655 = vld [vmem:[#allocation3 + $0x108] sm:$0xff]
    %v3656 = vld [vmem:[#allocation3 + $0x110] sm:$0xff]
    %v3657 = vld [vmem:[#allocation3 + $0x118] sm:$0xff]
    %v3658 = vld [vmem:[#allocation3 + $0x120] sm:$0xff]
    %v3659 = vld [vmem:[#allocation3 + $0x128] sm:$0xff]
    %v3660 = vld [vmem:[#allocation3 + $0x130] sm:$0xff]
    %v3661 = vld [vmem:[#allocation3 + $0x138] sm:$0xff]
    %v3662 = vld [vmem:[#allocation3 + $0x140] sm:$0xff]
    %v3663 = vld [vmem:[#allocation3 + $0x148] sm:$0xff]
    %v3664 = vld [vmem:[#allocation3 + $0x150] sm:$0xff]
    %v3665 = vld [vmem:[#allocation3 + $0x158] sm:$0xff]
    %v3666 = vld [vmem:[#allocation3 + $0x160] sm:$0xff]
    %v3667 = vld [vmem:[#allocation3 + $0x168] sm:$0xff]
    %v3668 = vld [vmem:[#allocation3 + $0x170] sm:$0xff]
    %v3669 = vld [vmem:[#allocation3 + $0x178] sm:$0xff]
    %v3670 = vld [vmem:[#allocation3 + $0x180] sm:$0xff]
    %v3671 = vld [vmem:[#allocation3 + $0x188] sm:$0xff]
    %v3672 = vld [vmem:[#allocation3 + $0x190] sm:$0xff]
    %v3673 = vld [vmem:[#allocation3 + $0x198] sm:$0xff]
    %v3674 = vld [vmem:[#allocation3 + $0x1a0] sm:$0xff]
    %v3675 = vld [vmem:[#allocation3 + $0x1a8] sm:$0xff]
    %v3676 = vld [vmem:[#allocation3 + $0x1b0] sm:$0xff]
    %v3677 = vld [vmem:[#allocation3 + $0x1b8] sm:$0xff]
    %v3678 = vld [vmem:[#allocation3 + $0x1c0] sm:$0xff]
    %v3679 = vld [vmem:[#allocation3 + $0x1c8] sm:$0xff]
    %v3680 = vld [vmem:[#allocation3 + $0x1d0] sm:$0xff]
    %v3681 = vld [vmem:[#allocation3 + $0x1d8] sm:$0xff]
    %v3682 = vld [vmem:[#allocation3 + $0x1e0] sm:$0xff]
    %v3683 = vld [vmem:[#allocation3 + $0x1e8] sm:$0xff]
    %v3684 = vld [vmem:[#allocation3 + $0x1f0] sm:$0xff]
    %v3685 = vld [vmem:[#allocation3 + $0x1f8] sm:$0xff]
    %v3686 = vld [vmem:[#allocation16] sm:$0x1]
    %v3688 = vlaneseq
    %v3689 = vshrl.u32 %v3688, 7
    %v3690 = vsub.s32 0, %v3689
    %v3691 = vrot.slane %v3686, %v3690
    %3693 = vmatprep.subr.bf16.mxu0 0
    %3694 = vmatpush1.bf16.msra.mxu0 %v3622
    %3695 = vmatprep.subr.bf16.mxu0 0
    %3696 = vmatpush1.bf16.msra.mxu0 %v3623
    %3697 = vmatprep.subr.bf16.mxu0 0
    %3698 = vmatpush1.bf16.msra.mxu0 %v3624
    %3699 = vmatprep.subr.bf16.mxu0 0
    %3700 = vmatpush1.bf16.msra.mxu0 %v3625
    %3701 = vmatprep.subr.bf16.mxu0 0
    %3702 = vmatpush1.bf16.msra.mxu0 %v3626
    %3703 = vmatprep.subr.bf16.mxu0 0
    %3704 = vmatpush1.bf16.msra.mxu0 %v3627
    %3705 = vmatprep.subr.bf16.mxu0 0
    %3706 = vmatpush1.bf16.msra.mxu0 %v3628
    %3707 = vmatprep.subr.bf16.mxu0 0
    %3708 = vmatpush1.bf16.msra.mxu0 %v3629
    %3709 = vmatprep.subr.bf16.mxu0 0
    %3710 = vmatpush1.bf16.msra.mxu0 %v3630
    %3711 = vmatprep.subr.bf16.mxu0 0
    %3712 = vmatpush1.bf16.msra.mxu0 %v3631
    %3713 = vmatprep.subr.bf16.mxu0 0
    %3714 = vmatpush1.bf16.msra.mxu0 %v3632
    %3715 = vmatprep.subr.bf16.mxu0 0
    %3716 = vmatpush1.bf16.msra.mxu0 %v3633
    %3717 = vmatprep.subr.bf16.mxu0 0
    %3718 = vmatpush1.bf16.msra.mxu0 %v3634
    %3719 = vmatprep.subr.bf16.mxu0 0
    %3720 = vmatpush1.bf16.msra.mxu0 %v3635
    %3721 = vmatprep.subr.bf16.mxu0 0
    %3722 = vmatpush1.bf16.msra.mxu0 %v3636
    %3723 = vmatprep.subr.bf16.mxu0 0
    %3724 = vmatpush1.bf16.msra.mxu0 %v3637
    %3725 = vmatprep.mubr.bf16.mxu0 %v3612
    %3726 = vmatmul.mubr.bf16.gmra.mrb[0].mxu0 %v3611
    %v3727 = vpop.f32.mrb[0].mxu0
    %v3728 = vadd.f32 %v3691, %v3727
    %v3729 = vpop.f32.mrb[0].mxu0
    %v3730 = vpop.f32.mrb[0].mxu0
    %v3731 = vpop.f32.mrb[0].mxu0
    %3732 = vdwg.mxu0
    %3733 = vmatprep.subr.bf16.mxu0 0
    %3734 = vmatpush1.bf16.msra.mxu0 %v3638
    %3735 = vmatprep.subr.bf16.mxu0 0
    %3736 = vmatpush1.bf16.msra.mxu0 %v3639
    %3737 = vmatprep.subr.bf16.mxu0 0
    %3738 = vmatpush1.bf16.msra.mxu0 %v3640
    %3739 = vmatprep.subr.bf16.mxu0 0
    %3740 = vmatpush1.bf16.msra.mxu0 %v3641
    %3741 = vmatprep.subr.bf16.mxu0 0
    %3742 = vmatpush1.bf16.msra.mxu0 %v3642
    %3743 = vmatprep.subr.bf16.mxu0 0
    %3744 = vmatpush1.bf16.msra.mxu0 %v3643
    %3745 = vmatprep.subr.bf16.mxu0 0
    %3746 = vmatpush1.bf16.msra.mxu0 %v3644
    %3747 = vmatprep.subr.bf16.mxu0 0
    %3748 = vmatpush1.bf16.msra.mxu0 %v3645
    %3749 = vmatprep.subr.bf16.mxu0 0
    %3750 = vmatpush1.bf16.msra.mxu0 %v3646
    %3751 = vmatprep.subr.bf16.mxu0 0
    %3752 = vmatpush1.bf16.msra.mxu0 %v3647
    %3753 = vmatprep.subr.bf16.mxu0 0
    %3754 = vmatpush1.bf16.msra.mxu0 %v3648
    %3755 = vmatprep.subr.bf16.mxu0 0
    %3756 = vmatpush1.bf16.msra.mxu0 %v3649
    %3757 = vmatprep.subr.bf16.mxu0 0
    %3758 = vmatpush1.bf16.msra.mxu0 %v3650
    %3759 = vmatprep.subr.bf16.mxu0 0
    %3760 = vmatpush1.bf16.msra.mxu0 %v3651
    %3761 = vmatprep.subr.bf16.mxu0 0
    %3762 = vmatpush1.bf16.msra.mxu0 %v3652
    %3763 = vmatprep.subr.bf16.mxu0 0
    %3764 = vmatpush1.bf16.msra.mxu0 %v3653
    %3765 = vmatprep.mubr.bf16.mxu0 %v3614
    %3766 = vmatmul.mubr.bf16.gmra.mrb[0].mxu0 %v3613
    %v3767 = vpop.f32.mrb[0].mxu0
    %v3768 = vadd.f32 %v3728, %v3767
    %v3769 = vpop.f32.mrb[0].mxu0
    %v3770 = vpop.f32.mrb[0].mxu0
    %v3771 = vpop.f32.mrb[0].mxu0
    %3772 = vdwg.mxu0
    %3773 = vmatprep.subr.bf16.mxu0 0
    %3774 = vmatpush1.bf16.msra.mxu0 %v3654
    %3775 = vmatprep.subr.bf16.mxu0 0
    %3776 = vmatpush1.bf16.msra.mxu0 %v3655
    %3777 = vmatprep.subr.bf16.mxu0 0
    %3778 = vmatpush1.bf16.msra.mxu0 %v3656
    %3779 = vmatprep.subr.bf16.mxu0 0
    %3780 = vmatpush1.bf16.msra.mxu0 %v3657
    %3781 = vmatprep.subr.bf16.mxu0 0
    %3782 = vmatpush1.bf16.msra.mxu0 %v3658
    %3783 = vmatprep.subr.bf16.mxu0 0
    %3784 = vmatpush1.bf16.msra.mxu0 %v3659
    %3785 = vmatprep.subr.bf16.mxu0 0
    %3786 = vmatpush1.bf16.msra.mxu0 %v3660
    %3787 = vmatprep.subr.bf16.mxu0 0
    %3788 = vmatpush1.bf16.msra.mxu0 %v3661
    %3789 = vmatprep.subr.bf16.mxu0 0
    %3790 = vmatpush1.bf16.msra.mxu0 %v3662
    %3791 = vmatprep.subr.bf16.mxu0 0
    %3792 = vmatpush1.bf16.msra.mxu0 %v3663
    %3793 = vmatprep.subr.bf16.mxu0 0
    %3794 = vmatpush1.bf16.msra.mxu0 %v3664
    %3795 = vmatprep.subr.bf16.mxu0 0
    %3796 = vmatpush1.bf16.msra.mxu0 %v3665
    %3797 = vmatprep.subr.bf16.mxu0 0
    %3798 = vmatpush1.bf16.msra.mxu0 %v3666
    %3799 = vmatprep.subr.bf16.mxu0 0
    %3800 = vmatpush1.bf16.msra.mxu0 %v3667
    %3801 = vmatprep.subr.bf16.mxu0 0
    %3802 = vmatpush1.bf16.msra.mxu0 %v3668
    %3803 = vmatprep.subr.bf16.mxu0 0
    %3804 = vmatpush1.bf16.msra.mxu0 %v3669
    %3805 = vmatprep.mubr.bf16.mxu0 %v3616
    %3806 = vmatmul.mubr.bf16.gmra.mrb[0].mxu0 %v3615
    %v3807 = vpop.f32.mrb[0].mxu0
    %v3808 = vadd.f32 %v3768, %v3807
    %v3809 = vpop.f32.mrb[0].mxu0
    %v3810 = vpop.f32.mrb[0].mxu0
    %v3811 = vpop.f32.mrb[0].mxu0
    %3812 = vdwg.mxu0
    %3813 = vmatprep.subr.bf16.mxu0 0
    %3814 = vmatpush1.bf16.msra.mxu0 %v3670
    %3815 = vmatprep.subr.bf16.mxu0 0
    %3816 = vmatpush1.bf16.msra.mxu0 %v3671
    %3817 = vmatprep.subr.bf16.mxu0 0
    %3818 = vmatpush1.bf16.msra.mxu0 %v3672
    %3819 = vmatprep.subr.bf16.mxu0 0
    %3820 = vmatpush1.bf16.msra.mxu0 %v3673
    %3821 = vmatprep.subr.bf16.mxu0 0
    %3822 = vmatpush1.bf16.msra.mxu0 %v3674
    %3823 = vmatprep.subr.bf16.mxu0 0
    %3824 = vmatpush1.bf16.msra.mxu0 %v3675
    %3825 = vmatprep.subr.bf16.mxu0 0
    %3826 = vmatpush1.bf16.msra.mxu0 %v3676
    %3827 = vmatprep.subr.bf16.mxu0 0
    %3828 = vmatpush1.bf16.msra.mxu0 %v3677
    %3829 = vmatprep.subr.bf16.mxu0 0
    %3830 = vmatpush1.bf16.msra.mxu0 %v3678
    %3831 = vmatprep.subr.bf16.mxu0 0
    %3832 = vmatpush1.bf16.msra.mxu0 %v3679
    %3833 = vmatprep.subr.bf16.mxu0 0
    %3834 = vmatpush1.bf16.msra.mxu0 %v3680
    %3835 = vmatprep.subr.bf16.mxu0 0
    %3836 = vmatpush1.bf16.msra.mxu0 %v3681
    %3837 = vmatprep.subr.bf16.mxu0 0
    %3838 = vmatpush1.bf16.msra.mxu0 %v3682
    %3839 = vmatprep.subr.bf16.mxu0 0
    %3840 = vmatpush1.bf16.msra.mxu0 %v3683
    %3841 = vmatprep.subr.bf16.mxu0 0
    %3842 = vmatpush1.bf16.msra.mxu0 %v3684
    %3843 = vmatprep.subr.bf16.mxu0 0
    %3844 = vmatpush1.bf16.msra.mxu0 %v3685
    %3845 = vmatprep.mubr.bf16.mxu0 %v3618
    %3846 = vmatmul.mubr.bf16.gmra.mrb[0].mxu0 %v3617
    %v3847 = vpop.f32.mrb[0].mxu0
    %v3848 = vadd.f32 %v3808, %v3847
    %v3849 = vpop.f32.mrb[0].mxu0
    %v3850 = vpop.f32.mrb[0].mxu0
    %v3851 = vpop.f32.mrb[0].mxu0
    %3852 = vdwg.mxu0
    %3853 = vst [vmem:[#allocation17] sm:$0xff] %v3848
    // Predicated region
    $region62: #{tpu_custom_call.1} parent=1 // pred_check
      _
    $region63: #{tpu_custom_call.1} parent=1 // pred_check_branch
      %3855 = sbr.rel (0) target = $region65
    $region64: #{tpu_custom_call.1} parent=1 // pred_region
      %s3857 = ssub.s32 128, 128
      %3858 = vsyncadd [#allocation7], %s3857
      %s3860 = sshll.u32 [#allocation17], 4
      %s3861 = int_to_ptr.vmem [resolvable:$true] %s3860
      %3863 = dma.vmem_to_hbm [thread:$0]  %s3861, 128, %s9, [#allocation7]
    $region65: #{tpu_custom_call.1} parent=1 // pred_fallthru
      _
    // Predicated region
    $region66: #{tpu_custom_call.1} parent=1 // pred_check
      _
    $region67: #{tpu_custom_call.1} parent=1 // pred_check_branch
      %3865 = sbr.rel (0) target = $region69
    $region68: #{tpu_custom_call.1} parent=1 // pred_region
      %3866 = dma.done [#allocation7], 128
    $region69: #{tpu_custom_call.1} parent=1 // pred_fallthru
      _
    %3867 = vsyncpa [#allocation6], 1
    %3868 = vsyncpa [#allocation9], 1
    %3869 = vsyncpa [#allocation12], 1
    %3870 = vsyncpa [#allocation15], 1
    %3871 = vsyncpa [#allocation7], 1
  %3872 = vsyncmov [#allocation4]
  %s3873 = vpop.sfrf %3872
  %p3874 = scmp.eq.s32.totalorder %s3873, 0
  %p3875 = pneg %p3874
  %3877 = shalt.err (%p3875)
  %s3878 = scalar_lea.sflag [#allocation4], 1
  %3879 = vsyncmov %s3878
  %s3880 = vpop.sfrf %3879
  %p3881 = scmp.eq.s32.totalorder %s3880, 0
  %p3882 = pneg %p3881
  %3884 = shalt.err (%p3882)

</llo_original>
